<compile_context>
chip_gen: v7x
topology: tpu7x:2x2x1
jax: 0.10.0
libtpu: 0.0.40
codegen_flags: <defaults>
</compile_context>

<pallas_src>
import functools

import jax
import jax.numpy as jnp
from jax import lax
from jax.experimental import pallas as pl
from jax.experimental.pallas import tpu as pltpu

# Small, forward-consistent config (module defaults scaled down).
VOCAB = 32
EMB = 16
HID = 32
NUM_LAYERS = 2
BATCH = 2
SEQ = 8

_VMEM = pl.BlockSpec(memory_space=pltpu.MemorySpace.VMEM)


# ----------------------------------------------------------------------------
# Fused Pallas kernel: embedding + 2x biLSTM + LayerNorm + ff1 + GELU + fc
# ----------------------------------------------------------------------------
def _titano_fused_kernel(tok_ref, emb_ref,
                         wx0_ref, wh0_ref, bg0_ref,
                         wx1_ref, wh1_ref, bg1_ref,
                         gamma_ref, beta_ref,
                         w1_ref, b1_ref, w2_ref, b2_ref,
                         out_ref,
                         gx_ref, y1_ref, y2_ref, *, T, B):
    """Recurrence is time-major (row r = t*B + b); final output is batch-major.

    tok_ref:  (T*B, 1) int32 token ids (time-major flat)
    emb_ref:  (V, E)
    wx*_ref:  (Din, 8H)  [fwd i,f,o,g | bwd i,f,o,g] input->gate weights
    wh*_ref:  (H, 8H)    [fwd i,f,o,g | bwd i,f,o,g] hidden->gate weights (dense)
    bg*_ref:  (1, 8H)    packed (b_ih + b_hh) for both directions
    head params: gamma/beta (1,2H), w1 (2H,H), b1 (1,H), w2 (H,V), b2 (1,V)
    out_ref:  (B*T, V) logits, batch-major (row = b*T + t)
    scratches: gx_ref (2*T*B, 4H), y1_ref/y2_ref (T*B, 2H)
    """
    H = wh0_ref.shape[0]
    V = emb_ref.shape[0]
    N = T * B

    # ---- embedding lookup as a one-hot MXU matmul: (N, V) @ (V, E) ----
    tok = tok_ref[...]                                                  # (N, 1)
    onehot = (tok == lax.broadcasted_iota(jnp.int32, (N, V), 1)
              ).astype(jnp.float32)                                     # (N, V)
    x = jnp.dot(onehot, emb_ref[...], preferred_element_type=jnp.float32)

    # Constant row mask: rows [0:B] of direction-on-sublane tensors are forward.
    row_is_fwd = lax.broadcasted_iota(jnp.int32, (2 * B, 4 * H), 0) < B

    def bilstm_layer(x, wx_ref, wh_ref, bg_ref, y_ref, batch_major_out):
        # Hoisted input projection for both directions (one wide MXU pass).
        gates = (jnp.dot(x, wx_ref[...], preferred_element_type=jnp.float32)
                 + bg_ref[...])                                      # (N, 8H)
        # Pre-assemble per-step gate inputs off the serial path:
        #   rows [2Bs : 2Bs+B]  = fwd gates for time s        (cols [i,f,o,g])
        #   rows [2Bs+B : 2B(s+1)] = bwd gates for time T-1-s (cols [i,f,o,g])
        for s in range(T):
            r = 2 * B * s
            gx_ref[r:r + B, :] = gates[s * B:(s + 1) * B, :4 * H]
            gx_ref[r + B:r + 2 * B, :] = gates[(T - 1 - s) * B:(T - s) * B, 4 * H:]

        h = jnp.zeros((2 * B, H), jnp.float32)    # rows: [h_fwd ; h_bwd]
        c = jnp.zeros((2 * B, H), jnp.float32)
        for s in range(T):                        # static unroll (T small, fixed)
            gx = gx_ref[2 * B * s:2 * B * (s + 1), :]               # (2B, 4H)
            # one dense recurrent matmul; pick fwd/bwd columns per row group
            gh_all = jnp.dot(h, wh_ref[...],
                             preferred_element_type=jnp.float32)    # (2B, 8H)
            gh = jnp.where(row_is_fwd, gh_all[:, :4 * H], gh_all[:, 4 * H:])
            g = gx + gh
            sg = jax.nn.sigmoid(g[:, :3 * H])     # [i | f | o], both directions
            gg = jnp.tanh(g[:, 3 * H:])           # g, both directions
            c = sg[:, H:2 * H] * c + sg[:, :H] * gg
            h = sg[:, 2 * H:3 * H] * jnp.tanh(c)
            # Retire this step's hidden states to VMEM scratch (bounded live ranges).
            if batch_major_out:                   # row = b*T + t
                for b in range(B):
                    y_ref[b * T + s:b * T + s + 1, :H] = h[b:b + 1, :]
                    y_ref[b * T + (T - 1 - s):b * T + (T - s), H:] = \
                        h[B + b:B + b + 1, :]
            else:                                 # row = t*B + b (time-major)
                y_ref[s * B:(s + 1) * B, :H] = h[:B, :]
                y_ref[(T - 1 - s) * B:(T - s) * B, H:] = h[B:, :]
        return y_ref[...]                         # (N, 2H)

    x = bilstm_layer(x, wx0_ref, wh0_ref, bg0_ref, y1_ref, batch_major_out=False)
    # inter-layer LSTM dropout is inactive in eval mode.
    x = bilstm_layer(x, wx1_ref, wh1_ref, bg1_ref, y2_ref, batch_major_out=True)

    # ---- head: LayerNorm -> ff1 -> exact GELU -> (dropout: identity) -> fc ----
    mu = jnp.mean(x, axis=-1, keepdims=True)
    var = jnp.mean(jnp.square(x - mu), axis=-1, keepdims=True)
    xn = (x - mu) * lax.rsqrt(var + 1e-5)
    xn = xn * gamma_ref[...] + beta_ref[...]
    hh = jnp.dot(xn, w1_ref[...], preferred_element_type=jnp.float32) + b1_ref[...]
    hh = 0.5 * hh * (1.0 + lax.erf(hh * 0.7071067811865476))
    out_ref[...] = (jnp.dot(hh, w2_ref[...], preferred_element_type=jnp.float32)
                    + b2_ref[...])


# ----------------------------------------------------------------------------
# Weight packing (wrapper-side, tiny constant ops)
# ----------------------------------------------------------------------------
def _reorder_gates(m):
    """Torch gate order [i, f, g, o] along axis 0 -> kernel order [i, f, o, g]."""
    H = HID
    return jnp.concatenate([m[:2 * H], m[3 * H:4 * H], m[2 * H:3 * H]], axis=0)


def _pack_bilstm_layer(pf, pb):
    """Pack fwd/bwd LSTM weights into fused-gate form.

    Returns wx (Din, 8H), wh (H, 8H) dense [fwd|bwd], bg (1, 8H).
    Column layout: [fwd i,f,o,g | bwd i,f,o,g], each gate block H wide.
    """
    wih_f = _reorder_gates(pf["w_ih"]).T       # (Din, 4H)
    wih_b = _reorder_gates(pb["w_ih"]).T
    whh_f = _reorder_gates(pf["w_hh"]).T       # (H, 4H)
    whh_b = _reorder_gates(pb["w_hh"]).T
    b_f = _reorder_gates(pf["b"])              # (4H,)  (= b_ih + b_hh)
    b_b = _reorder_gates(pb["b"])
    wx = jnp.concatenate([wih_f, wih_b], axis=1)            # (Din, 8H)
    wh = jnp.concatenate([whh_f, whh_b], axis=1)            # (H, 8H), no zeros
    bg = jnp.concatenate([b_f, b_b]).reshape(1, 8 * HID)
    return wx, wh, bg


# ----------------------------------------------------------------------------
# Forward wrapper (single pallas_call)
# ----------------------------------------------------------------------------
@jax.jit
def titano_forward(params, tokens):
    """tokens: int32 (B, T) -> logits (B, T, VOCAB)."""
    B, T = tokens.shape
    tok_tm = tokens.T.reshape(T * B, 1).astype(jnp.int32)   # time-major flat ids
    wx0, wh0, bg0 = _pack_bilstm_layer(params["lstm"][0]["fwd"],
                                       params["lstm"][0]["bwd"])
    wx1, wh1, bg1 = _pack_bilstm_layer(params["lstm"][1]["fwd"],
                                       params["lstm"][1]["bwd"])
    kernel = functools.partial(_titano_fused_kernel, T=T, B=B)
    logits_bm = pl.pallas_call(
        kernel,
        out_shape=jax.ShapeDtypeStruct((B * T, VOCAB), jnp.float32),
        in_specs=[_VMEM] * 14,
        out_specs=_VMEM,
        scratch_shapes=[
            pltpu.VMEM((2 * T * B, 4 * HID), jnp.float32),  # assembled gate inputs
            pltpu.VMEM((T * B, 2 * HID), jnp.float32),      # layer-1 output (time-major)
            pltpu.VMEM((T * B, 2 * HID), jnp.float32),      # layer-2 output (batch-major)
        ],
    )(tok_tm, params["embedding"],
      wx0, wh0, bg0, wx1, wh1, bg1,
      params["ln_gamma"].reshape(1, -1), params["ln_beta"].reshape(1, -1),
      params["w1"], params["b1"].reshape(1, -1),
      params["w2"], params["b2"].reshape(1, -1))
    # Kernel writes batch-major rows (b*T + t) -> plain reshape, no transpose op.
    return logits_bm.reshape(B, T, VOCAB)


# ----------------------------------------------------------------------------
# Deterministic parameter init (mirrors _init_weights shapes/schemes)
# ----------------------------------------------------------------------------
def init_params(key):
    keys = iter(jax.random.split(key, 64))
    orth = jax.nn.initializers.orthogonal()
    glorot = jax.nn.initializers.glorot_uniform()
    params = {}
    params["embedding"] = 0.1 * jax.random.normal(next(keys), (VOCAB, EMB),
                                                  jnp.float32)
    lstm = []
    for layer in range(NUM_LAYERS):
        din = EMB if layer == 0 else 2 * HID
        layer_p = {}
        for d in ("fwd", "bwd"):
            layer_p[d] = {
                "w_ih": orth(next(keys), (4 * HID, din), jnp.float32),
                "w_hh": orth(next(keys), (4 * HID, HID), jnp.float32),
                "b": jnp.zeros((4 * HID,), jnp.float32),  # b_ih + b_hh (zeros)
            }
        lstm.append(layer_p)
    params["lstm"] = lstm
    params["ln_gamma"] = jnp.ones((2 * HID,), jnp.float32)
    params["ln_beta"] = jnp.zeros((2 * HID,), jnp.float32)
    params["w1"] = glorot(next(keys), (2 * HID, HID), jnp.float32)
    params["b1"] = jnp.zeros((HID,), jnp.float32)
    params["w2"] = glorot(next(keys), (HID, VOCAB), jnp.float32)
    params["b2"] = jnp.zeros((VOCAB,), jnp.float32)
    return params


# ----------------------------------------------------------------------------
# Pure-JAX reference (correctness check only; torch gate order i,f,g,o)
# ----------------------------------------------------------------------------
def _lstm_dir_ref(x, w_ih, w_hh, b):
    B, _, _ = x.shape
    H = w_hh.shape[1]

    def step(carry, x_t):
        h, c = carry
        gates = x_t @ w_ih.T + h @ w_hh.T + b
        i = jax.nn.sigmoid(gates[:, :H])
        f = jax.nn.sigmoid(gates[:, H:2 * H])
        g = jnp.tanh(gates[:, 2 * H:3 * H])
        o = jax.nn.sigmoid(gates[:, 3 * H:])
        c = f * c + i * g
        h = o * jnp.tanh(c)
        return (h, c), h

    x_t = jnp.transpose(x, (1, 0, 2))
    (_, _), hs = lax.scan(step, (jnp.zeros((B, H)), jnp.zeros((B, H))), x_t)
    return jnp.transpose(hs, (1, 0, 2))


def forward_ref(params, tokens):
    x = jnp.take(params["embedding"], tokens, axis=0)
    for layer in range(NUM_LAYERS):
        pf = params["lstm"][layer]["fwd"]
        pb = params["lstm"][layer]["bwd"]
        f = _lstm_dir_ref(x, pf["w_ih"], pf["w_hh"], pf["b"])
        b = _lstm_dir_ref(x[:, ::-1], pb["w_ih"], pb["w_hh"], pb["b"])[:, ::-1]
        x = jnp.concatenate([f, b], axis=-1)
    mu = x.mean(-1, keepdims=True)
    var = ((x - mu) ** 2).mean(-1, keepdims=True)
    xn = (x - mu) / jnp.sqrt(var + 1e-5) * params["ln_gamma"] + params["ln_beta"]
    h = xn @ params["w1"] + params["b1"]
    h = 0.5 * h * (1.0 + lax.erf(h * 0.7071067811865476))
    return h @ params["w2"] + params["b2"]


# ----------------------------------------------------------------------------
if __name__ == "__main__":
    key = jax.random.PRNGKey(0)
    k_params, k_tok = jax.random.split(key)
    params = init_params(k_params)
    tokens = jax.random.randint(k_tok, (BATCH, SEQ), 0, VOCAB, dtype=jnp.int32)

    logits = titano_forward(params, tokens)
    logits = jax.block_until_ready(logits)
    assert logits.shape == (BATCH, SEQ, VOCAB)

    ref = jax.block_until_ready(forward_ref(params, tokens))
    assert jnp.allclose(logits, ref, atol=3e-4, rtol=3e-4), (
        float(jnp.max(jnp.abs(logits - ref))))

    print("KERNEL_OK")
</pallas_src>

<mosaic_0001>
module attributes {stable_mosaic.version = 11 : i64} {
  func.func @_titano_fused_kernel(%arg0: memref<16x1xi32, #tpu.memory_space<vmem>>, %arg1: memref<32x16xf32, #tpu.memory_space<vmem>>, %arg2: memref<16x256xf32, #tpu.memory_space<vmem>>, %arg3: memref<32x256xf32, #tpu.memory_space<vmem>>, %arg4: memref<1x256xf32, #tpu.memory_space<vmem>>, %arg5: memref<64x256xf32, #tpu.memory_space<vmem>>, %arg6: memref<32x256xf32, #tpu.memory_space<vmem>>, %arg7: memref<1x256xf32, #tpu.memory_space<vmem>>, %arg8: memref<1x64xf32, #tpu.memory_space<vmem>>, %arg9: memref<1x64xf32, #tpu.memory_space<vmem>>, %arg10: memref<64x32xf32, #tpu.memory_space<vmem>>, %arg11: memref<1x32xf32, #tpu.memory_space<vmem>>, %arg12: memref<32x32xf32, #tpu.memory_space<vmem>>, %arg13: memref<1x32xf32, #tpu.memory_space<vmem>>, %arg14: memref<16x32xf32, #tpu.memory_space<vmem>>, %arg15: memref<32x128xf32, #tpu.memory_space<vmem>>, %arg16: memref<16x64xf32, #tpu.memory_space<vmem>>, %arg17: memref<16x64xf32, #tpu.memory_space<vmem>>) attributes {dimension_semantics = [], scalar_prefetch = 0 : i64, scratch_operands = 3 : i64, tpu.core_type = #tpu.core_type<tc>} {
    %c0 = arith.constant 0 : index
    %c0_0 = arith.constant 0 : index
    %0 = vector.load %arg0[%c0, %c0_0] : memref<16x1xi32, #tpu.memory_space<vmem>>, vector<16x1xi32>
    %1 = tpu.iota {dimensions = array<i32: 1>} : vector<16x32xi32>
    %2 = vector.broadcast %0 : vector<16x1xi32> to vector<16x32xi32>
    %3 = arith.cmpi eq, %2, %1 : vector<16x32xi32>
    %4 = arith.extui %3 : vector<16x32xi1> to vector<16x32xi32>
    %5 = arith.sitofp %4 : vector<16x32xi32> to vector<16x32xf32>
    %c0_1 = arith.constant 0 : index
    %c0_2 = arith.constant 0 : index
    %6 = vector.load %arg1[%c0_1, %c0_2] : memref<32x16xf32, #tpu.memory_space<vmem>>, vector<32x16xf32>
    %cst = arith.constant dense<0.000000e+00> : vector<16x16xf32>
    %7 = tpu.matmul %5, %6, %cst {dimension_numbers = #tpu.dot_dimension_numbers<[1], [0], [0], [1], [0, 0, 1, 1], [], []>} : vector<16x32xf32>, vector<32x16xf32>, vector<16x16xf32> -> vector<16x16xf32>
    %8 = tpu.iota {dimensions = array<i32: 0>} : vector<4x128xi32>
    %c2_i32 = arith.constant 2 : i32
    %9 = vector.broadcast %c2_i32 : i32 to vector<4x128xi32>
    %10 = arith.cmpi slt, %8, %9 : vector<4x128xi32>
    %c0_3 = arith.constant 0 : index
    %c0_4 = arith.constant 0 : index
    %11 = vector.load %arg2[%c0_3, %c0_4] : memref<16x256xf32, #tpu.memory_space<vmem>>, vector<16x256xf32>
    %cst_5 = arith.constant dense<0.000000e+00> : vector<16x256xf32>
    %12 = tpu.matmul %7, %11, %cst_5 {dimension_numbers = #tpu.dot_dimension_numbers<[1], [0], [0], [1], [0, 0, 1, 1], [], []>} : vector<16x16xf32>, vector<16x256xf32>, vector<16x256xf32> -> vector<16x256xf32>
    %c0_6 = arith.constant 0 : index
    %c0_7 = arith.constant 0 : index
    %13 = vector.load %arg4[%c0_6, %c0_7] : memref<1x256xf32, #tpu.memory_space<vmem>>, vector<1x256xf32>
    %14 = vector.broadcast %13 : vector<1x256xf32> to vector<16x256xf32>
    %15 = arith.addf %12, %14 : vector<16x256xf32>
    %16 = vector.extract_strided_slice %15 {offsets = [0, 0], sizes = [2, 128], strides = [1, 1]} : vector<16x256xf32> to vector<2x128xf32>
    %c0_8 = arith.constant 0 : index
    %c0_9 = arith.constant 0 : index
    %17 = vector.load %arg15[%c0_8, %c0_9] : memref<32x128xf32, #tpu.memory_space<vmem>>, vector<2x128xf32>
    tpu.vector_store %arg15[%c0_8, %c0_9], %16 {strides = array<i32>} : memref<32x128xf32, #tpu.memory_space<vmem>>, vector<2x128xf32>,
    %18 = vector.extract_strided_slice %15 {offsets = [14, 128], sizes = [2, 128], strides = [1, 1]} : vector<16x256xf32> to vector<2x128xf32>
    %c2 = arith.constant 2 : index
    %c0_10 = arith.constant 0 : index
    %19 = vector.load %arg15[%c2, %c0_10] : memref<32x128xf32, #tpu.memory_space<vmem>>, vector<2x128xf32>
    tpu.vector_store %arg15[%c2, %c0_10], %18 {strides = array<i32>} : memref<32x128xf32, #tpu.memory_space<vmem>>, vector<2x128xf32>,
    %20 = vector.extract_strided_slice %15 {offsets = [2, 0], sizes = [2, 128], strides = [1, 1]} : vector<16x256xf32> to vector<2x128xf32>
    %c4 = arith.constant 4 : index
    %c0_11 = arith.constant 0 : index
    %21 = vector.load %arg15[%c4, %c0_11] : memref<32x128xf32, #tpu.memory_space<vmem>>, vector<2x128xf32>
    tpu.vector_store %arg15[%c4, %c0_11], %20 {strides = array<i32>} : memref<32x128xf32, #tpu.memory_space<vmem>>, vector<2x128xf32>,
    %22 = vector.extract_strided_slice %15 {offsets = [12, 128], sizes = [2, 128], strides = [1, 1]} : vector<16x256xf32> to vector<2x128xf32>
    %c6 = arith.constant 6 : index
    %c0_12 = arith.constant 0 : index
    %23 = vector.load %arg15[%c6, %c0_12] : memref<32x128xf32, #tpu.memory_space<vmem>>, vector<2x128xf32>
    tpu.vector_store %arg15[%c6, %c0_12], %22 {strides = array<i32>} : memref<32x128xf32, #tpu.memory_space<vmem>>, vector<2x128xf32>,
    %24 = vector.extract_strided_slice %15 {offsets = [4, 0], sizes = [2, 128], strides = [1, 1]} : vector<16x256xf32> to vector<2x128xf32>
    %c8 = arith.constant 8 : index
    %c0_13 = arith.constant 0 : index
    %25 = vector.load %arg15[%c8, %c0_13] : memref<32x128xf32, #tpu.memory_space<vmem>>, vector<2x128xf32>
    tpu.vector_store %arg15[%c8, %c0_13], %24 {strides = array<i32>} : memref<32x128xf32, #tpu.memory_space<vmem>>, vector<2x128xf32>,
    %26 = vector.extract_strided_slice %15 {offsets = [10, 128], sizes = [2, 128], strides = [1, 1]} : vector<16x256xf32> to vector<2x128xf32>
    %c10 = arith.constant 10 : index
    %c0_14 = arith.constant 0 : index
    %27 = vector.load %arg15[%c10, %c0_14] : memref<32x128xf32, #tpu.memory_space<vmem>>, vector<2x128xf32>
    tpu.vector_store %arg15[%c10, %c0_14], %26 {strides = array<i32>} : memref<32x128xf32, #tpu.memory_space<vmem>>, vector<2x128xf32>,
    %28 = vector.extract_strided_slice %15 {offsets = [6, 0], sizes = [2, 128], strides = [1, 1]} : vector<16x256xf32> to vector<2x128xf32>
    %c12 = arith.constant 12 : index
    %c0_15 = arith.constant 0 : index
    %29 = vector.load %arg15[%c12, %c0_15] : memref<32x128xf32, #tpu.memory_space<vmem>>, vector<2x128xf32>
    tpu.vector_store %arg15[%c12, %c0_15], %28 {strides = array<i32>} : memref<32x128xf32, #tpu.memory_space<vmem>>, vector<2x128xf32>,
    %30 = vector.extract_strided_slice %15 {offsets = [8, 128], sizes = [2, 128], strides = [1, 1]} : vector<16x256xf32> to vector<2x128xf32>
    %c14 = arith.constant 14 : index
    %c0_16 = arith.constant 0 : index
    %31 = vector.load %arg15[%c14, %c0_16] : memref<32x128xf32, #tpu.memory_space<vmem>>, vector<2x128xf32>
    tpu.vector_store %arg15[%c14, %c0_16], %30 {strides = array<i32>} : memref<32x128xf32, #tpu.memory_space<vmem>>, vector<2x128xf32>,
    %32 = vector.extract_strided_slice %15 {offsets = [8, 0], sizes = [2, 128], strides = [1, 1]} : vector<16x256xf32> to vector<2x128xf32>
    %c16 = arith.constant 16 : index
    %c0_17 = arith.constant 0 : index
    %33 = vector.load %arg15[%c16, %c0_17] : memref<32x128xf32, #tpu.memory_space<vmem>>, vector<2x128xf32>
    tpu.vector_store %arg15[%c16, %c0_17], %32 {strides = array<i32>} : memref<32x128xf32, #tpu.memory_space<vmem>>, vector<2x128xf32>,
    %34 = vector.extract_strided_slice %15 {offsets = [6, 128], sizes = [2, 128], strides = [1, 1]} : vector<16x256xf32> to vector<2x128xf32>
    %c18 = arith.constant 18 : index
    %c0_18 = arith.constant 0 : index
    %35 = vector.load %arg15[%c18, %c0_18] : memref<32x128xf32, #tpu.memory_space<vmem>>, vector<2x128xf32>
    tpu.vector_store %arg15[%c18, %c0_18], %34 {strides = array<i32>} : memref<32x128xf32, #tpu.memory_space<vmem>>, vector<2x128xf32>,
    %36 = vector.extract_strided_slice %15 {offsets = [10, 0], sizes = [2, 128], strides = [1, 1]} : vector<16x256xf32> to vector<2x128xf32>
    %c20 = arith.constant 20 : index
    %c0_19 = arith.constant 0 : index
    %37 = vector.load %arg15[%c20, %c0_19] : memref<32x128xf32, #tpu.memory_space<vmem>>, vector<2x128xf32>
    tpu.vector_store %arg15[%c20, %c0_19], %36 {strides = array<i32>} : memref<32x128xf32, #tpu.memory_space<vmem>>, vector<2x128xf32>,
    %38 = vector.extract_strided_slice %15 {offsets = [4, 128], sizes = [2, 128], strides = [1, 1]} : vector<16x256xf32> to vector<2x128xf32>
    %c22 = arith.constant 22 : index
    %c0_20 = arith.constant 0 : index
    %39 = vector.load %arg15[%c22, %c0_20] : memref<32x128xf32, #tpu.memory_space<vmem>>, vector<2x128xf32>
    tpu.vector_store %arg15[%c22, %c0_20], %38 {strides = array<i32>} : memref<32x128xf32, #tpu.memory_space<vmem>>, vector<2x128xf32>,
    %40 = vector.extract_strided_slice %15 {offsets = [12, 0], sizes = [2, 128], strides = [1, 1]} : vector<16x256xf32> to vector<2x128xf32>
    %c24 = arith.constant 24 : index
    %c0_21 = arith.constant 0 : index
    %41 = vector.load %arg15[%c24, %c0_21] : memref<32x128xf32, #tpu.memory_space<vmem>>, vector<2x128xf32>
    tpu.vector_store %arg15[%c24, %c0_21], %40 {strides = array<i32>} : memref<32x128xf32, #tpu.memory_space<vmem>>, vector<2x128xf32>,
    %42 = vector.extract_strided_slice %15 {offsets = [2, 128], sizes = [2, 128], strides = [1, 1]} : vector<16x256xf32> to vector<2x128xf32>
    %c26 = arith.constant 26 : index
    %c0_22 = arith.constant 0 : index
    %43 = vector.load %arg15[%c26, %c0_22] : memref<32x128xf32, #tpu.memory_space<vmem>>, vector<2x128xf32>
    tpu.vector_store %arg15[%c26, %c0_22], %42 {strides = array<i32>} : memref<32x128xf32, #tpu.memory_space<vmem>>, vector<2x128xf32>,
    %44 = vector.extract_strided_slice %15 {offsets = [14, 0], sizes = [2, 128], strides = [1, 1]} : vector<16x256xf32> to vector<2x128xf32>
    %c28 = arith.constant 28 : index
    %c0_23 = arith.constant 0 : index
    %45 = vector.load %arg15[%c28, %c0_23] : memref<32x128xf32, #tpu.memory_space<vmem>>, vector<2x128xf32>
    tpu.vector_store %arg15[%c28, %c0_23], %44 {strides = array<i32>} : memref<32x128xf32, #tpu.memory_space<vmem>>, vector<2x128xf32>,
    %46 = vector.extract_strided_slice %15 {offsets = [0, 128], sizes = [2, 128], strides = [1, 1]} : vector<16x256xf32> to vector<2x128xf32>
    %c30 = arith.constant 30 : index
    %c0_24 = arith.constant 0 : index
    %47 = vector.load %arg15[%c30, %c0_24] : memref<32x128xf32, #tpu.memory_space<vmem>>, vector<2x128xf32>
    tpu.vector_store %arg15[%c30, %c0_24], %46 {strides = array<i32>} : memref<32x128xf32, #tpu.memory_space<vmem>>, vector<2x128xf32>,
    %cst_25 = arith.constant 0.000000e+00 : f32
    %48 = vector.broadcast %cst_25 : f32 to vector<4x32xf32>
    %cst_26 = arith.constant 0.000000e+00 : f32
    %49 = vector.broadcast %cst_26 : f32 to vector<4x32xf32>
    %c0_27 = arith.constant 0 : index
    %c0_28 = arith.constant 0 : index
    %50 = vector.load %arg15[%c0_27, %c0_28] : memref<32x128xf32, #tpu.memory_space<vmem>>, vector<4x128xf32>
    %c0_29 = arith.constant 0 : index
    %c0_30 = arith.constant 0 : index
    %51 = vector.load %arg3[%c0_29, %c0_30] : memref<32x256xf32, #tpu.memory_space<vmem>>, vector<32x256xf32>
    %cst_31 = arith.constant dense<0.000000e+00> : vector<4x256xf32>
    %52 = tpu.matmul %48, %51, %cst_31 {dimension_numbers = #tpu.dot_dimension_numbers<[1], [0], [0], [1], [0, 0, 1, 1], [], []>} : vector<4x32xf32>, vector<32x256xf32>, vector<4x256xf32> -> vector<4x256xf32>
    %53 = vector.extract_strided_slice %52 {offsets = [0, 0], sizes = [4, 128], strides = [1, 1]} : vector<4x256xf32> to vector<4x128xf32>
    %54 = vector.extract_strided_slice %52 {offsets = [0, 128], sizes = [4, 128], strides = [1, 1]} : vector<4x256xf32> to vector<4x128xf32>
    %55 = arith.select %10, %53, %54 : vector<4x128xi1>, vector<4x128xf32>
    %56 = arith.addf %50, %55 : vector<4x128xf32>
    %57 = vector.extract_strided_slice %56 {offsets = [0, 0], sizes = [4, 96], strides = [1, 1]} : vector<4x128xf32> to vector<4x96xf32>
    %58 = arith.negf %57 : vector<4x96xf32>
    %59 = math.exp %58 : vector<4x96xf32>
    %cst_32 = arith.constant 1.000000e+00 : f32
    %60 = vector.broadcast %cst_32 : f32 to vector<4x96xf32>
    %61 = arith.addf %60, %59 : vector<4x96xf32>
    %62 = arith.divf %60, %61 : vector<4x96xf32>
    %63 = vector.extract_strided_slice %56 {offsets = [0, 96], sizes = [4, 32], strides = [1, 1]} : vector<4x128xf32> to vector<4x32xf32>
    %64 = math.tanh %63 : vector<4x32xf32>
    %65 = vector.extract_strided_slice %62 {offsets = [0, 32], sizes = [4, 32], strides = [1, 1]} : vector<4x96xf32> to vector<4x32xf32>
    %66 = arith.mulf %65, %49 : vector<4x32xf32>
    %67 = vector.extract_strided_slice %62 {offsets = [0, 0], sizes = [4, 32], strides = [1, 1]} : vector<4x96xf32> to vector<4x32xf32>
    %68 = arith.mulf %67, %64 : vector<4x32xf32>
    %69 = arith.addf %66, %68 : vector<4x32xf32>
    %70 = vector.extract_strided_slice %62 {offsets = [0, 64], sizes = [4, 32], strides = [1, 1]} : vector<4x96xf32> to vector<4x32xf32>
    %71 = math.tanh %69 : vector<4x32xf32>
    %72 = arith.mulf %70, %71 : vector<4x32xf32>
    %73 = vector.extract_strided_slice %72 {offsets = [0, 0], sizes = [2, 32], strides = [1, 1]} : vector<4x32xf32> to vector<2x32xf32>
    %c0_33 = arith.constant 0 : index
    %c0_34 = arith.constant 0 : index
    %74 = vector.load %arg16[%c0_33, %c0_34] : memref<16x64xf32, #tpu.memory_space<vmem>>, vector<2x32xf32>
    tpu.vector_store %arg16[%c0_33, %c0_34], %73 {strides = array<i32>} : memref<16x64xf32, #tpu.memory_space<vmem>>, vector<2x32xf32>,
    %75 = vector.extract_strided_slice %72 {offsets = [2, 0], sizes = [2, 32], strides = [1, 1]} : vector<4x32xf32> to vector<2x32xf32>
    %c14_35 = arith.constant 14 : index
    %c32 = arith.constant 32 : index
    %76 = vector.load %arg16[%c14_35, %c32] : memref<16x64xf32, #tpu.memory_space<vmem>>, vector<2x32xf32>
    tpu.vector_store %arg16[%c14_35, %c32], %75 {strides = array<i32>} : memref<16x64xf32, #tpu.memory_space<vmem>>, vector<2x32xf32>,
    %c4_36 = arith.constant 4 : index
    %c0_37 = arith.constant 0 : index
    %77 = vector.load %arg15[%c4_36, %c0_37] : memref<32x128xf32, #tpu.memory_space<vmem>>, vector<4x128xf32>
    %c0_38 = arith.constant 0 : index
    %c0_39 = arith.constant 0 : index
    %78 = vector.load %arg3[%c0_38, %c0_39] : memref<32x256xf32, #tpu.memory_space<vmem>>, vector<32x256xf32>
    %cst_40 = arith.constant dense<0.000000e+00> : vector<4x256xf32>
    %79 = tpu.matmul %72, %78, %cst_40 {dimension_numbers = #tpu.dot_dimension_numbers<[1], [0], [0], [1], [0, 0, 1, 1], [], []>} : vector<4x32xf32>, vector<32x256xf32>, vector<4x256xf32> -> vector<4x256xf32>
    %80 = vector.extract_strided_slice %79 {offsets = [0, 0], sizes = [4, 128], strides = [1, 1]} : vector<4x256xf32> to vector<4x128xf32>
    %81 = vector.extract_strided_slice %79 {offsets = [0, 128], sizes = [4, 128], strides = [1, 1]} : vector<4x256xf32> to vector<4x128xf32>
    %82 = arith.select %10, %80, %81 : vector<4x128xi1>, vector<4x128xf32>
    %83 = arith.addf %77, %82 : vector<4x128xf32>
    %84 = vector.extract_strided_slice %83 {offsets = [0, 0], sizes = [4, 96], strides = [1, 1]} : vector<4x128xf32> to vector<4x96xf32>
    %85 = arith.negf %84 : vector<4x96xf32>
    %86 = math.exp %85 : vector<4x96xf32>
    %cst_41 = arith.constant 1.000000e+00 : f32
    %87 = vector.broadcast %cst_41 : f32 to vector<4x96xf32>
    %88 = arith.addf %87, %86 : vector<4x96xf32>
    %89 = arith.divf %87, %88 : vector<4x96xf32>
    %90 = vector.extract_strided_slice %83 {offsets = [0, 96], sizes = [4, 32], strides = [1, 1]} : vector<4x128xf32> to vector<4x32xf32>
    %91 = math.tanh %90 : vector<4x32xf32>
    %92 = vector.extract_strided_slice %89 {offsets = [0, 32], sizes = [4, 32], strides = [1, 1]} : vector<4x96xf32> to vector<4x32xf32>
    %93 = arith.mulf %92, %69 : vector<4x32xf32>
    %94 = vector.extract_strided_slice %89 {offsets = [0, 0], sizes = [4, 32], strides = [1, 1]} : vector<4x96xf32> to vector<4x32xf32>
    %95 = arith.mulf %94, %91 : vector<4x32xf32>
    %96 = arith.addf %93, %95 : vector<4x32xf32>
    %97 = vector.extract_strided_slice %89 {offsets = [0, 64], sizes = [4, 32], strides = [1, 1]} : vector<4x96xf32> to vector<4x32xf32>
    %98 = math.tanh %96 : vector<4x32xf32>
    %99 = arith.mulf %97, %98 : vector<4x32xf32>
    %100 = vector.extract_strided_slice %99 {offsets = [0, 0], sizes = [2, 32], strides = [1, 1]} : vector<4x32xf32> to vector<2x32xf32>
    %c2_42 = arith.constant 2 : index
    %c0_43 = arith.constant 0 : index
    %101 = vector.load %arg16[%c2_42, %c0_43] : memref<16x64xf32, #tpu.memory_space<vmem>>, vector<2x32xf32>
    tpu.vector_store %arg16[%c2_42, %c0_43], %100 {strides = array<i32>} : memref<16x64xf32, #tpu.memory_space<vmem>>, vector<2x32xf32>,
    %102 = vector.extract_strided_slice %99 {offsets = [2, 0], sizes = [2, 32], strides = [1, 1]} : vector<4x32xf32> to vector<2x32xf32>
    %c12_44 = arith.constant 12 : index
    %c32_45 = arith.constant 32 : index
    %103 = vector.load %arg16[%c12_44, %c32_45] : memref<16x64xf32, #tpu.memory_space<vmem>>, vector<2x32xf32>
    tpu.vector_store %arg16[%c12_44, %c32_45], %102 {strides = array<i32>} : memref<16x64xf32, #tpu.memory_space<vmem>>, vector<2x32xf32>,
    %c8_46 = arith.constant 8 : index
    %c0_47 = arith.constant 0 : index
    %104 = vector.load %arg15[%c8_46, %c0_47] : memref<32x128xf32, #tpu.memory_space<vmem>>, vector<4x128xf32>
    %c0_48 = arith.constant 0 : index
    %c0_49 = arith.constant 0 : index
    %105 = vector.load %arg3[%c0_48, %c0_49] : memref<32x256xf32, #tpu.memory_space<vmem>>, vector<32x256xf32>
    %cst_50 = arith.constant dense<0.000000e+00> : vector<4x256xf32>
    %106 = tpu.matmul %99, %105, %cst_50 {dimension_numbers = #tpu.dot_dimension_numbers<[1], [0], [0], [1], [0, 0, 1, 1], [], []>} : vector<4x32xf32>, vector<32x256xf32>, vector<4x256xf32> -> vector<4x256xf32>
    %107 = vector.extract_strided_slice %106 {offsets = [0, 0], sizes = [4, 128], strides = [1, 1]} : vector<4x256xf32> to vector<4x128xf32>
    %108 = vector.extract_strided_slice %106 {offsets = [0, 128], sizes = [4, 128], strides = [1, 1]} : vector<4x256xf32> to vector<4x128xf32>
    %109 = arith.select %10, %107, %108 : vector<4x128xi1>, vector<4x128xf32>
    %110 = arith.addf %104, %109 : vector<4x128xf32>
    %111 = vector.extract_strided_slice %110 {offsets = [0, 0], sizes = [4, 96], strides = [1, 1]} : vector<4x128xf32> to vector<4x96xf32>
    %112 = arith.negf %111 : vector<4x96xf32>
    %113 = math.exp %112 : vector<4x96xf32>
    %cst_51 = arith.constant 1.000000e+00 : f32
    %114 = vector.broadcast %cst_51 : f32 to vector<4x96xf32>
    %115 = arith.addf %114, %113 : vector<4x96xf32>
    %116 = arith.divf %114, %115 : vector<4x96xf32>
    %117 = vector.extract_strided_slice %110 {offsets = [0, 96], sizes = [4, 32], strides = [1, 1]} : vector<4x128xf32> to vector<4x32xf32>
    %118 = math.tanh %117 : vector<4x32xf32>
    %119 = vector.extract_strided_slice %116 {offsets = [0, 32], sizes = [4, 32], strides = [1, 1]} : vector<4x96xf32> to vector<4x32xf32>
    %120 = arith.mulf %119, %96 : vector<4x32xf32>
    %121 = vector.extract_strided_slice %116 {offsets = [0, 0], sizes = [4, 32], strides = [1, 1]} : vector<4x96xf32> to vector<4x32xf32>
    %122 = arith.mulf %121, %118 : vector<4x32xf32>
    %123 = arith.addf %120, %122 : vector<4x32xf32>
    %124 = vector.extract_strided_slice %116 {offsets = [0, 64], sizes = [4, 32], strides = [1, 1]} : vector<4x96xf32> to vector<4x32xf32>
    %125 = math.tanh %123 : vector<4x32xf32>
    %126 = arith.mulf %124, %125 : vector<4x32xf32>
    %127 = vector.extract_strided_slice %126 {offsets = [0, 0], sizes = [2, 32], strides = [1, 1]} : vector<4x32xf32> to vector<2x32xf32>
    %c4_52 = arith.constant 4 : index
    %c0_53 = arith.constant 0 : index
    %128 = vector.load %arg16[%c4_52, %c0_53] : memref<16x64xf32, #tpu.memory_space<vmem>>, vector<2x32xf32>
    tpu.vector_store %arg16[%c4_52, %c0_53], %127 {strides = array<i32>} : memref<16x64xf32, #tpu.memory_space<vmem>>, vector<2x32xf32>,
    %129 = vector.extract_strided_slice %126 {offsets = [2, 0], sizes = [2, 32], strides = [1, 1]} : vector<4x32xf32> to vector<2x32xf32>
    %c10_54 = arith.constant 10 : index
    %c32_55 = arith.constant 32 : index
    %130 = vector.load %arg16[%c10_54, %c32_55] : memref<16x64xf32, #tpu.memory_space<vmem>>, vector<2x32xf32>
    tpu.vector_store %arg16[%c10_54, %c32_55], %129 {strides = array<i32>} : memref<16x64xf32, #tpu.memory_space<vmem>>, vector<2x32xf32>,
    %c12_56 = arith.constant 12 : index
    %c0_57 = arith.constant 0 : index
    %131 = vector.load %arg15[%c12_56, %c0_57] : memref<32x128xf32, #tpu.memory_space<vmem>>, vector<4x128xf32>
    %c0_58 = arith.constant 0 : index
    %c0_59 = arith.constant 0 : index
    %132 = vector.load %arg3[%c0_58, %c0_59] : memref<32x256xf32, #tpu.memory_space<vmem>>, vector<32x256xf32>
    %cst_60 = arith.constant dense<0.000000e+00> : vector<4x256xf32>
    %133 = tpu.matmul %126, %132, %cst_60 {dimension_numbers = #tpu.dot_dimension_numbers<[1], [0], [0], [1], [0, 0, 1, 1], [], []>} : vector<4x32xf32>, vector<32x256xf32>, vector<4x256xf32> -> vector<4x256xf32>
    %134 = vector.extract_strided_slice %133 {offsets = [0, 0], sizes = [4, 128], strides = [1, 1]} : vector<4x256xf32> to vector<4x128xf32>
    %135 = vector.extract_strided_slice %133 {offsets = [0, 128], sizes = [4, 128], strides = [1, 1]} : vector<4x256xf32> to vector<4x128xf32>
    %136 = arith.select %10, %134, %135 : vector<4x128xi1>, vector<4x128xf32>
    %137 = arith.addf %131, %136 : vector<4x128xf32>
    %138 = vector.extract_strided_slice %137 {offsets = [0, 0], sizes = [4, 96], strides = [1, 1]} : vector<4x128xf32> to vector<4x96xf32>
    %139 = arith.negf %138 : vector<4x96xf32>
    %140 = math.exp %139 : vector<4x96xf32>
    %cst_61 = arith.constant 1.000000e+00 : f32
    %141 = vector.broadcast %cst_61 : f32 to vector<4x96xf32>
    %142 = arith.addf %141, %140 : vector<4x96xf32>
    %143 = arith.divf %141, %142 : vector<4x96xf32>
    %144 = vector.extract_strided_slice %137 {offsets = [0, 96], sizes = [4, 32], strides = [1, 1]} : vector<4x128xf32> to vector<4x32xf32>
    %145 = math.tanh %144 : vector<4x32xf32>
    %146 = vector.extract_strided_slice %143 {offsets = [0, 32], sizes = [4, 32], strides = [1, 1]} : vector<4x96xf32> to vector<4x32xf32>
    %147 = arith.mulf %146, %123 : vector<4x32xf32>
    %148 = vector.extract_strided_slice %143 {offsets = [0, 0], sizes = [4, 32], strides = [1, 1]} : vector<4x96xf32> to vector<4x32xf32>
    %149 = arith.mulf %148, %145 : vector<4x32xf32>
    %150 = arith.addf %147, %149 : vector<4x32xf32>
    %151 = vector.extract_strided_slice %143 {offsets = [0, 64], sizes = [4, 32], strides = [1, 1]} : vector<4x96xf32> to vector<4x32xf32>
    %152 = math.tanh %150 : vector<4x32xf32>
    %153 = arith.mulf %151, %152 : vector<4x32xf32>
    %154 = vector.extract_strided_slice %153 {offsets = [0, 0], sizes = [2, 32], strides = [1, 1]} : vector<4x32xf32> to vector<2x32xf32>
    %c6_62 = arith.constant 6 : index
    %c0_63 = arith.constant 0 : index
    %155 = vector.load %arg16[%c6_62, %c0_63] : memref<16x64xf32, #tpu.memory_space<vmem>>, vector<2x32xf32>
    tpu.vector_store %arg16[%c6_62, %c0_63], %154 {strides = array<i32>} : memref<16x64xf32, #tpu.memory_space<vmem>>, vector<2x32xf32>,
    %156 = vector.extract_strided_slice %153 {offsets = [2, 0], sizes = [2, 32], strides = [1, 1]} : vector<4x32xf32> to vector<2x32xf32>
    %c8_64 = arith.constant 8 : index
    %c32_65 = arith.constant 32 : index
    %157 = vector.load %arg16[%c8_64, %c32_65] : memref<16x64xf32, #tpu.memory_space<vmem>>, vector<2x32xf32>
    tpu.vector_store %arg16[%c8_64, %c32_65], %156 {strides = array<i32>} : memref<16x64xf32, #tpu.memory_space<vmem>>, vector<2x32xf32>,
    %c16_66 = arith.constant 16 : index
    %c0_67 = arith.constant 0 : index
    %158 = vector.load %arg15[%c16_66, %c0_67] : memref<32x128xf32, #tpu.memory_space<vmem>>, vector<4x128xf32>
    %c0_68 = arith.constant 0 : index
    %c0_69 = arith.constant 0 : index
    %159 = vector.load %arg3[%c0_68, %c0_69] : memref<32x256xf32, #tpu.memory_space<vmem>>, vector<32x256xf32>
    %cst_70 = arith.constant dense<0.000000e+00> : vector<4x256xf32>
    %160 = tpu.matmul %153, %159, %cst_70 {dimension_numbers = #tpu.dot_dimension_numbers<[1], [0], [0], [1], [0, 0, 1, 1], [], []>} : vector<4x32xf32>, vector<32x256xf32>, vector<4x256xf32> -> vector<4x256xf32>
    %161 = vector.extract_strided_slice %160 {offsets = [0, 0], sizes = [4, 128], strides = [1, 1]} : vector<4x256xf32> to vector<4x128xf32>
    %162 = vector.extract_strided_slice %160 {offsets = [0, 128], sizes = [4, 128], strides = [1, 1]} : vector<4x256xf32> to vector<4x128xf32>
    %163 = arith.select %10, %161, %162 : vector<4x128xi1>, vector<4x128xf32>
    %164 = arith.addf %158, %163 : vector<4x128xf32>
    %165 = vector.extract_strided_slice %164 {offsets = [0, 0], sizes = [4, 96], strides = [1, 1]} : vector<4x128xf32> to vector<4x96xf32>
    %166 = arith.negf %165 : vector<4x96xf32>
    %167 = math.exp %166 : vector<4x96xf32>
    %cst_71 = arith.constant 1.000000e+00 : f32
    %168 = vector.broadcast %cst_71 : f32 to vector<4x96xf32>
    %169 = arith.addf %168, %167 : vector<4x96xf32>
    %170 = arith.divf %168, %169 : vector<4x96xf32>
    %171 = vector.extract_strided_slice %164 {offsets = [0, 96], sizes = [4, 32], strides = [1, 1]} : vector<4x128xf32> to vector<4x32xf32>
    %172 = math.tanh %171 : vector<4x32xf32>
    %173 = vector.extract_strided_slice %170 {offsets = [0, 32], sizes = [4, 32], strides = [1, 1]} : vector<4x96xf32> to vector<4x32xf32>
    %174 = arith.mulf %173, %150 : vector<4x32xf32>
    %175 = vector.extract_strided_slice %170 {offsets = [0, 0], sizes = [4, 32], strides = [1, 1]} : vector<4x96xf32> to vector<4x32xf32>
    %176 = arith.mulf %175, %172 : vector<4x32xf32>
    %177 = arith.addf %174, %176 : vector<4x32xf32>
    %178 = vector.extract_strided_slice %170 {offsets = [0, 64], sizes = [4, 32], strides = [1, 1]} : vector<4x96xf32> to vector<4x32xf32>
    %179 = math.tanh %177 : vector<4x32xf32>
    %180 = arith.mulf %178, %179 : vector<4x32xf32>
    %181 = vector.extract_strided_slice %180 {offsets = [0, 0], sizes = [2, 32], strides = [1, 1]} : vector<4x32xf32> to vector<2x32xf32>
    %c8_72 = arith.constant 8 : index
    %c0_73 = arith.constant 0 : index
    %182 = vector.load %arg16[%c8_72, %c0_73] : memref<16x64xf32, #tpu.memory_space<vmem>>, vector<2x32xf32>
    tpu.vector_store %arg16[%c8_72, %c0_73], %181 {strides = array<i32>} : memref<16x64xf32, #tpu.memory_space<vmem>>, vector<2x32xf32>,
    %183 = vector.extract_strided_slice %180 {offsets = [2, 0], sizes = [2, 32], strides = [1, 1]} : vector<4x32xf32> to vector<2x32xf32>
    %c6_74 = arith.constant 6 : index
    %c32_75 = arith.constant 32 : index
    %184 = vector.load %arg16[%c6_74, %c32_75] : memref<16x64xf32, #tpu.memory_space<vmem>>, vector<2x32xf32>
    tpu.vector_store %arg16[%c6_74, %c32_75], %183 {strides = array<i32>} : memref<16x64xf32, #tpu.memory_space<vmem>>, vector<2x32xf32>,
    %c20_76 = arith.constant 20 : index
    %c0_77 = arith.constant 0 : index
    %185 = vector.load %arg15[%c20_76, %c0_77] : memref<32x128xf32, #tpu.memory_space<vmem>>, vector<4x128xf32>
    %c0_78 = arith.constant 0 : index
    %c0_79 = arith.constant 0 : index
    %186 = vector.load %arg3[%c0_78, %c0_79] : memref<32x256xf32, #tpu.memory_space<vmem>>, vector<32x256xf32>
    %cst_80 = arith.constant dense<0.000000e+00> : vector<4x256xf32>
    %187 = tpu.matmul %180, %186, %cst_80 {dimension_numbers = #tpu.dot_dimension_numbers<[1], [0], [0], [1], [0, 0, 1, 1], [], []>} : vector<4x32xf32>, vector<32x256xf32>, vector<4x256xf32> -> vector<4x256xf32>
    %188 = vector.extract_strided_slice %187 {offsets = [0, 0], sizes = [4, 128], strides = [1, 1]} : vector<4x256xf32> to vector<4x128xf32>
    %189 = vector.extract_strided_slice %187 {offsets = [0, 128], sizes = [4, 128], strides = [1, 1]} : vector<4x256xf32> to vector<4x128xf32>
    %190 = arith.select %10, %188, %189 : vector<4x128xi1>, vector<4x128xf32>
    %191 = arith.addf %185, %190 : vector<4x128xf32>
    %192 = vector.extract_strided_slice %191 {offsets = [0, 0], sizes = [4, 96], strides = [1, 1]} : vector<4x128xf32> to vector<4x96xf32>
    %193 = arith.negf %192 : vector<4x96xf32>
    %194 = math.exp %193 : vector<4x96xf32>
    %cst_81 = arith.constant 1.000000e+00 : f32
    %195 = vector.broadcast %cst_81 : f32 to vector<4x96xf32>
    %196 = arith.addf %195, %194 : vector<4x96xf32>
    %197 = arith.divf %195, %196 : vector<4x96xf32>
    %198 = vector.extract_strided_slice %191 {offsets = [0, 96], sizes = [4, 32], strides = [1, 1]} : vector<4x128xf32> to vector<4x32xf32>
    %199 = math.tanh %198 : vector<4x32xf32>
    %200 = vector.extract_strided_slice %197 {offsets = [0, 32], sizes = [4, 32], strides = [1, 1]} : vector<4x96xf32> to vector<4x32xf32>
    %201 = arith.mulf %200, %177 : vector<4x32xf32>
    %202 = vector.extract_strided_slice %197 {offsets = [0, 0], sizes = [4, 32], strides = [1, 1]} : vector<4x96xf32> to vector<4x32xf32>
    %203 = arith.mulf %202, %199 : vector<4x32xf32>
    %204 = arith.addf %201, %203 : vector<4x32xf32>
    %205 = vector.extract_strided_slice %197 {offsets = [0, 64], sizes = [4, 32], strides = [1, 1]} : vector<4x96xf32> to vector<4x32xf32>
    %206 = math.tanh %204 : vector<4x32xf32>
    %207 = arith.mulf %205, %206 : vector<4x32xf32>
    %208 = vector.extract_strided_slice %207 {offsets = [0, 0], sizes = [2, 32], strides = [1, 1]} : vector<4x32xf32> to vector<2x32xf32>
    %c10_82 = arith.constant 10 : index
    %c0_83 = arith.constant 0 : index
    %209 = vector.load %arg16[%c10_82, %c0_83] : memref<16x64xf32, #tpu.memory_space<vmem>>, vector<2x32xf32>
    tpu.vector_store %arg16[%c10_82, %c0_83], %208 {strides = array<i32>} : memref<16x64xf32, #tpu.memory_space<vmem>>, vector<2x32xf32>,
    %210 = vector.extract_strided_slice %207 {offsets = [2, 0], sizes = [2, 32], strides = [1, 1]} : vector<4x32xf32> to vector<2x32xf32>
    %c4_84 = arith.constant 4 : index
    %c32_85 = arith.constant 32 : index
    %211 = vector.load %arg16[%c4_84, %c32_85] : memref<16x64xf32, #tpu.memory_space<vmem>>, vector<2x32xf32>
    tpu.vector_store %arg16[%c4_84, %c32_85], %210 {strides = array<i32>} : memref<16x64xf32, #tpu.memory_space<vmem>>, vector<2x32xf32>,
    %c24_86 = arith.constant 24 : index
    %c0_87 = arith.constant 0 : index
    %212 = vector.load %arg15[%c24_86, %c0_87] : memref<32x128xf32, #tpu.memory_space<vmem>>, vector<4x128xf32>
    %c0_88 = arith.constant 0 : index
    %c0_89 = arith.constant 0 : index
    %213 = vector.load %arg3[%c0_88, %c0_89] : memref<32x256xf32, #tpu.memory_space<vmem>>, vector<32x256xf32>
    %cst_90 = arith.constant dense<0.000000e+00> : vector<4x256xf32>
    %214 = tpu.matmul %207, %213, %cst_90 {dimension_numbers = #tpu.dot_dimension_numbers<[1], [0], [0], [1], [0, 0, 1, 1], [], []>} : vector<4x32xf32>, vector<32x256xf32>, vector<4x256xf32> -> vector<4x256xf32>
    %215 = vector.extract_strided_slice %214 {offsets = [0, 0], sizes = [4, 128], strides = [1, 1]} : vector<4x256xf32> to vector<4x128xf32>
    %216 = vector.extract_strided_slice %214 {offsets = [0, 128], sizes = [4, 128], strides = [1, 1]} : vector<4x256xf32> to vector<4x128xf32>
    %217 = arith.select %10, %215, %216 : vector<4x128xi1>, vector<4x128xf32>
    %218 = arith.addf %212, %217 : vector<4x128xf32>
    %219 = vector.extract_strided_slice %218 {offsets = [0, 0], sizes = [4, 96], strides = [1, 1]} : vector<4x128xf32> to vector<4x96xf32>
    %220 = arith.negf %219 : vector<4x96xf32>
    %221 = math.exp %220 : vector<4x96xf32>
    %cst_91 = arith.constant 1.000000e+00 : f32
    %222 = vector.broadcast %cst_91 : f32 to vector<4x96xf32>
    %223 = arith.addf %222, %221 : vector<4x96xf32>
    %224 = arith.divf %222, %223 : vector<4x96xf32>
    %225 = vector.extract_strided_slice %218 {offsets = [0, 96], sizes = [4, 32], strides = [1, 1]} : vector<4x128xf32> to vector<4x32xf32>
    %226 = math.tanh %225 : vector<4x32xf32>
    %227 = vector.extract_strided_slice %224 {offsets = [0, 32], sizes = [4, 32], strides = [1, 1]} : vector<4x96xf32> to vector<4x32xf32>
    %228 = arith.mulf %227, %204 : vector<4x32xf32>
    %229 = vector.extract_strided_slice %224 {offsets = [0, 0], sizes = [4, 32], strides = [1, 1]} : vector<4x96xf32> to vector<4x32xf32>
    %230 = arith.mulf %229, %226 : vector<4x32xf32>
    %231 = arith.addf %228, %230 : vector<4x32xf32>
    %232 = vector.extract_strided_slice %224 {offsets = [0, 64], sizes = [4, 32], strides = [1, 1]} : vector<4x96xf32> to vector<4x32xf32>
    %233 = math.tanh %231 : vector<4x32xf32>
    %234 = arith.mulf %232, %233 : vector<4x32xf32>
    %235 = vector.extract_strided_slice %234 {offsets = [0, 0], sizes = [2, 32], strides = [1, 1]} : vector<4x32xf32> to vector<2x32xf32>
    %c12_92 = arith.constant 12 : index
    %c0_93 = arith.constant 0 : index
    %236 = vector.load %arg16[%c12_92, %c0_93] : memref<16x64xf32, #tpu.memory_space<vmem>>, vector<2x32xf32>
    tpu.vector_store %arg16[%c12_92, %c0_93], %235 {strides = array<i32>} : memref<16x64xf32, #tpu.memory_space<vmem>>, vector<2x32xf32>,
    %237 = vector.extract_strided_slice %234 {offsets = [2, 0], sizes = [2, 32], strides = [1, 1]} : vector<4x32xf32> to vector<2x32xf32>
    %c2_94 = arith.constant 2 : index
    %c32_95 = arith.constant 32 : index
    %238 = vector.load %arg16[%c2_94, %c32_95] : memref<16x64xf32, #tpu.memory_space<vmem>>, vector<2x32xf32>
    tpu.vector_store %arg16[%c2_94, %c32_95], %237 {strides = array<i32>} : memref<16x64xf32, #tpu.memory_space<vmem>>, vector<2x32xf32>,
    %c28_96 = arith.constant 28 : index
    %c0_97 = arith.constant 0 : index
    %239 = vector.load %arg15[%c28_96, %c0_97] : memref<32x128xf32, #tpu.memory_space<vmem>>, vector<4x128xf32>
    %c0_98 = arith.constant 0 : index
    %c0_99 = arith.constant 0 : index
    %240 = vector.load %arg3[%c0_98, %c0_99] : memref<32x256xf32, #tpu.memory_space<vmem>>, vector<32x256xf32>
    %cst_100 = arith.constant dense<0.000000e+00> : vector<4x256xf32>
    %241 = tpu.matmul %234, %240, %cst_100 {dimension_numbers = #tpu.dot_dimension_numbers<[1], [0], [0], [1], [0, 0, 1, 1], [], []>} : vector<4x32xf32>, vector<32x256xf32>, vector<4x256xf32> -> vector<4x256xf32>
    %242 = vector.extract_strided_slice %241 {offsets = [0, 0], sizes = [4, 128], strides = [1, 1]} : vector<4x256xf32> to vector<4x128xf32>
    %243 = vector.extract_strided_slice %241 {offsets = [0, 128], sizes = [4, 128], strides = [1, 1]} : vector<4x256xf32> to vector<4x128xf32>
    %244 = arith.select %10, %242, %243 : vector<4x128xi1>, vector<4x128xf32>
    %245 = arith.addf %239, %244 : vector<4x128xf32>
    %246 = vector.extract_strided_slice %245 {offsets = [0, 0], sizes = [4, 96], strides = [1, 1]} : vector<4x128xf32> to vector<4x96xf32>
    %247 = arith.negf %246 : vector<4x96xf32>
    %248 = math.exp %247 : vector<4x96xf32>
    %cst_101 = arith.constant 1.000000e+00 : f32
    %249 = vector.broadcast %cst_101 : f32 to vector<4x96xf32>
    %250 = arith.addf %249, %248 : vector<4x96xf32>
    %251 = arith.divf %249, %250 : vector<4x96xf32>
    %252 = vector.extract_strided_slice %245 {offsets = [0, 96], sizes = [4, 32], strides = [1, 1]} : vector<4x128xf32> to vector<4x32xf32>
    %253 = math.tanh %252 : vector<4x32xf32>
    %254 = vector.extract_strided_slice %251 {offsets = [0, 32], sizes = [4, 32], strides = [1, 1]} : vector<4x96xf32> to vector<4x32xf32>
    %255 = arith.mulf %254, %231 : vector<4x32xf32>
    %256 = vector.extract_strided_slice %251 {offsets = [0, 0], sizes = [4, 32], strides = [1, 1]} : vector<4x96xf32> to vector<4x32xf32>
    %257 = arith.mulf %256, %253 : vector<4x32xf32>
    %258 = arith.addf %255, %257 : vector<4x32xf32>
    %259 = vector.extract_strided_slice %251 {offsets = [0, 64], sizes = [4, 32], strides = [1, 1]} : vector<4x96xf32> to vector<4x32xf32>
    %260 = math.tanh %258 : vector<4x32xf32>
    %261 = arith.mulf %259, %260 : vector<4x32xf32>
    %262 = vector.extract_strided_slice %261 {offsets = [0, 0], sizes = [2, 32], strides = [1, 1]} : vector<4x32xf32> to vector<2x32xf32>
    %c14_102 = arith.constant 14 : index
    %c0_103 = arith.constant 0 : index
    %263 = vector.load %arg16[%c14_102, %c0_103] : memref<16x64xf32, #tpu.memory_space<vmem>>, vector<2x32xf32>
    tpu.vector_store %arg16[%c14_102, %c0_103], %262 {strides = array<i32>} : memref<16x64xf32, #tpu.memory_space<vmem>>, vector<2x32xf32>,
    %264 = vector.extract_strided_slice %261 {offsets = [2, 0], sizes = [2, 32], strides = [1, 1]} : vector<4x32xf32> to vector<2x32xf32>
    %c0_104 = arith.constant 0 : index
    %c32_105 = arith.constant 32 : index
    %265 = vector.load %arg16[%c0_104, %c32_105] : memref<16x64xf32, #tpu.memory_space<vmem>>, vector<2x32xf32>
    tpu.vector_store %arg16[%c0_104, %c32_105], %264 {strides = array<i32>} : memref<16x64xf32, #tpu.memory_space<vmem>>, vector<2x32xf32>,
    %c0_106 = arith.constant 0 : index
    %c0_107 = arith.constant 0 : index
    %266 = vector.load %arg16[%c0_106, %c0_107] : memref<16x64xf32, #tpu.memory_space<vmem>>, vector<16x64xf32>
    %c0_108 = arith.constant 0 : index
    %c0_109 = arith.constant 0 : index
    %267 = vector.load %arg5[%c0_108, %c0_109] : memref<64x256xf32, #tpu.memory_space<vmem>>, vector<64x256xf32>
    %cst_110 = arith.constant dense<0.000000e+00> : vector<16x256xf32>
    %268 = tpu.matmul %266, %267, %cst_110 {dimension_numbers = #tpu.dot_dimension_numbers<[1], [0], [0], [1], [0, 0, 1, 1], [], []>} : vector<16x64xf32>, vector<64x256xf32>, vector<16x256xf32> -> vector<16x256xf32>
    %c0_111 = arith.constant 0 : index
    %c0_112 = arith.constant 0 : index
    %269 = vector.load %arg7[%c0_111, %c0_112] : memref<1x256xf32, #tpu.memory_space<vmem>>, vector<1x256xf32>
    %270 = vector.broadcast %269 : vector<1x256xf32> to vector<16x256xf32>
    %271 = arith.addf %268, %270 : vector<16x256xf32>
    %272 = vector.extract_strided_slice %271 {offsets = [0, 0], sizes = [2, 128], strides = [1, 1]} : vector<16x256xf32> to vector<2x128xf32>
    %c0_113 = arith.constant 0 : index
    %c0_114 = arith.constant 0 : index
    %273 = vector.load %arg15[%c0_113, %c0_114] : memref<32x128xf32, #tpu.memory_space<vmem>>, vector<2x128xf32>
    tpu.vector_store %arg15[%c0_113, %c0_114], %272 {strides = array<i32>} : memref<32x128xf32, #tpu.memory_space<vmem>>, vector<2x128xf32>,
    %274 = vector.extract_strided_slice %271 {offsets = [14, 128], sizes = [2, 128], strides = [1, 1]} : vector<16x256xf32> to vector<2x128xf32>
    %c2_115 = arith.constant 2 : index
    %c0_116 = arith.constant 0 : index
    %275 = vector.load %arg15[%c2_115, %c0_116] : memref<32x128xf32, #tpu.memory_space<vmem>>, vector<2x128xf32>
    tpu.vector_store %arg15[%c2_115, %c0_116], %274 {strides = array<i32>} : memref<32x128xf32, #tpu.memory_space<vmem>>, vector<2x128xf32>,
    %276 = vector.extract_strided_slice %271 {offsets = [2, 0], sizes = [2, 128], strides = [1, 1]} : vector<16x256xf32> to vector<2x128xf32>
    %c4_117 = arith.constant 4 : index
    %c0_118 = arith.constant 0 : index
    %277 = vector.load %arg15[%c4_117, %c0_118] : memref<32x128xf32, #tpu.memory_space<vmem>>, vector<2x128xf32>
    tpu.vector_store %arg15[%c4_117, %c0_118], %276 {strides = array<i32>} : memref<32x128xf32, #tpu.memory_space<vmem>>, vector<2x128xf32>,
    %278 = vector.extract_strided_slice %271 {offsets = [12, 128], sizes = [2, 128], strides = [1, 1]} : vector<16x256xf32> to vector<2x128xf32>
    %c6_119 = arith.constant 6 : index
    %c0_120 = arith.constant 0 : index
    %279 = vector.load %arg15[%c6_119, %c0_120] : memref<32x128xf32, #tpu.memory_space<vmem>>, vector<2x128xf32>
    tpu.vector_store %arg15[%c6_119, %c0_120], %278 {strides = array<i32>} : memref<32x128xf32, #tpu.memory_space<vmem>>, vector<2x128xf32>,
    %280 = vector.extract_strided_slice %271 {offsets = [4, 0], sizes = [2, 128], strides = [1, 1]} : vector<16x256xf32> to vector<2x128xf32>
    %c8_121 = arith.constant 8 : index
    %c0_122 = arith.constant 0 : index
    %281 = vector.load %arg15[%c8_121, %c0_122] : memref<32x128xf32, #tpu.memory_space<vmem>>, vector<2x128xf32>
    tpu.vector_store %arg15[%c8_121, %c0_122], %280 {strides = array<i32>} : memref<32x128xf32, #tpu.memory_space<vmem>>, vector<2x128xf32>,
    %282 = vector.extract_strided_slice %271 {offsets = [10, 128], sizes = [2, 128], strides = [1, 1]} : vector<16x256xf32> to vector<2x128xf32>
    %c10_123 = arith.constant 10 : index
    %c0_124 = arith.constant 0 : index
    %283 = vector.load %arg15[%c10_123, %c0_124] : memref<32x128xf32, #tpu.memory_space<vmem>>, vector<2x128xf32>
    tpu.vector_store %arg15[%c10_123, %c0_124], %282 {strides = array<i32>} : memref<32x128xf32, #tpu.memory_space<vmem>>, vector<2x128xf32>,
    %284 = vector.extract_strided_slice %271 {offsets = [6, 0], sizes = [2, 128], strides = [1, 1]} : vector<16x256xf32> to vector<2x128xf32>
    %c12_125 = arith.constant 12 : index
    %c0_126 = arith.constant 0 : index
    %285 = vector.load %arg15[%c12_125, %c0_126] : memref<32x128xf32, #tpu.memory_space<vmem>>, vector<2x128xf32>
    tpu.vector_store %arg15[%c12_125, %c0_126], %284 {strides = array<i32>} : memref<32x128xf32, #tpu.memory_space<vmem>>, vector<2x128xf32>,
    %286 = vector.extract_strided_slice %271 {offsets = [8, 128], sizes = [2, 128], strides = [1, 1]} : vector<16x256xf32> to vector<2x128xf32>
    %c14_127 = arith.constant 14 : index
    %c0_128 = arith.constant 0 : index
    %287 = vector.load %arg15[%c14_127, %c0_128] : memref<32x128xf32, #tpu.memory_space<vmem>>, vector<2x128xf32>
    tpu.vector_store %arg15[%c14_127, %c0_128], %286 {strides = array<i32>} : memref<32x128xf32, #tpu.memory_space<vmem>>, vector<2x128xf32>,
    %288 = vector.extract_strided_slice %271 {offsets = [8, 0], sizes = [2, 128], strides = [1, 1]} : vector<16x256xf32> to vector<2x128xf32>
    %c16_129 = arith.constant 16 : index
    %c0_130 = arith.constant 0 : index
    %289 = vector.load %arg15[%c16_129, %c0_130] : memref<32x128xf32, #tpu.memory_space<vmem>>, vector<2x128xf32>
    tpu.vector_store %arg15[%c16_129, %c0_130], %288 {strides = array<i32>} : memref<32x128xf32, #tpu.memory_space<vmem>>, vector<2x128xf32>,
    %290 = vector.extract_strided_slice %271 {offsets = [6, 128], sizes = [2, 128], strides = [1, 1]} : vector<16x256xf32> to vector<2x128xf32>
    %c18_131 = arith.constant 18 : index
    %c0_132 = arith.constant 0 : index
    %291 = vector.load %arg15[%c18_131, %c0_132] : memref<32x128xf32, #tpu.memory_space<vmem>>, vector<2x128xf32>
    tpu.vector_store %arg15[%c18_131, %c0_132], %290 {strides = array<i32>} : memref<32x128xf32, #tpu.memory_space<vmem>>, vector<2x128xf32>,
    %292 = vector.extract_strided_slice %271 {offsets = [10, 0], sizes = [2, 128], strides = [1, 1]} : vector<16x256xf32> to vector<2x128xf32>
    %c20_133 = arith.constant 20 : index
    %c0_134 = arith.constant 0 : index
    %293 = vector.load %arg15[%c20_133, %c0_134] : memref<32x128xf32, #tpu.memory_space<vmem>>, vector<2x128xf32>
    tpu.vector_store %arg15[%c20_133, %c0_134], %292 {strides = array<i32>} : memref<32x128xf32, #tpu.memory_space<vmem>>, vector<2x128xf32>,
    %294 = vector.extract_strided_slice %271 {offsets = [4, 128], sizes = [2, 128], strides = [1, 1]} : vector<16x256xf32> to vector<2x128xf32>
    %c22_135 = arith.constant 22 : index
    %c0_136 = arith.constant 0 : index
    %295 = vector.load %arg15[%c22_135, %c0_136] : memref<32x128xf32, #tpu.memory_space<vmem>>, vector<2x128xf32>
    tpu.vector_store %arg15[%c22_135, %c0_136], %294 {strides = array<i32>} : memref<32x128xf32, #tpu.memory_space<vmem>>, vector<2x128xf32>,
    %296 = vector.extract_strided_slice %271 {offsets = [12, 0], sizes = [2, 128], strides = [1, 1]} : vector<16x256xf32> to vector<2x128xf32>
    %c24_137 = arith.constant 24 : index
    %c0_138 = arith.constant 0 : index
    %297 = vector.load %arg15[%c24_137, %c0_138] : memref<32x128xf32, #tpu.memory_space<vmem>>, vector<2x128xf32>
    tpu.vector_store %arg15[%c24_137, %c0_138], %296 {strides = array<i32>} : memref<32x128xf32, #tpu.memory_space<vmem>>, vector<2x128xf32>,
    %298 = vector.extract_strided_slice %271 {offsets = [2, 128], sizes = [2, 128], strides = [1, 1]} : vector<16x256xf32> to vector<2x128xf32>
    %c26_139 = arith.constant 26 : index
    %c0_140 = arith.constant 0 : index
    %299 = vector.load %arg15[%c26_139, %c0_140] : memref<32x128xf32, #tpu.memory_space<vmem>>, vector<2x128xf32>
    tpu.vector_store %arg15[%c26_139, %c0_140], %298 {strides = array<i32>} : memref<32x128xf32, #tpu.memory_space<vmem>>, vector<2x128xf32>,
    %300 = vector.extract_strided_slice %271 {offsets = [14, 0], sizes = [2, 128], strides = [1, 1]} : vector<16x256xf32> to vector<2x128xf32>
    %c28_141 = arith.constant 28 : index
    %c0_142 = arith.constant 0 : index
    %301 = vector.load %arg15[%c28_141, %c0_142] : memref<32x128xf32, #tpu.memory_space<vmem>>, vector<2x128xf32>
    tpu.vector_store %arg15[%c28_141, %c0_142], %300 {strides = array<i32>} : memref<32x128xf32, #tpu.memory_space<vmem>>, vector<2x128xf32>,
    %302 = vector.extract_strided_slice %271 {offsets = [0, 128], sizes = [2, 128], strides = [1, 1]} : vector<16x256xf32> to vector<2x128xf32>
    %c30_143 = arith.constant 30 : index
    %c0_144 = arith.constant 0 : index
    %303 = vector.load %arg15[%c30_143, %c0_144] : memref<32x128xf32, #tpu.memory_space<vmem>>, vector<2x128xf32>
    tpu.vector_store %arg15[%c30_143, %c0_144], %302 {strides = array<i32>} : memref<32x128xf32, #tpu.memory_space<vmem>>, vector<2x128xf32>,
    %cst_145 = arith.constant 0.000000e+00 : f32
    %304 = vector.broadcast %cst_145 : f32 to vector<4x32xf32>
    %cst_146 = arith.constant 0.000000e+00 : f32
    %305 = vector.broadcast %cst_146 : f32 to vector<4x32xf32>
    %c0_147 = arith.constant 0 : index
    %c0_148 = arith.constant 0 : index
    %306 = vector.load %arg15[%c0_147, %c0_148] : memref<32x128xf32, #tpu.memory_space<vmem>>, vector<4x128xf32>
    %c0_149 = arith.constant 0 : index
    %c0_150 = arith.constant 0 : index
    %307 = vector.load %arg6[%c0_149, %c0_150] : memref<32x256xf32, #tpu.memory_space<vmem>>, vector<32x256xf32>
    %cst_151 = arith.constant dense<0.000000e+00> : vector<4x256xf32>
    %308 = tpu.matmul %304, %307, %cst_151 {dimension_numbers = #tpu.dot_dimension_numbers<[1], [0], [0], [1], [0, 0, 1, 1], [], []>} : vector<4x32xf32>, vector<32x256xf32>, vector<4x256xf32> -> vector<4x256xf32>
    %309 = vector.extract_strided_slice %308 {offsets = [0, 0], sizes = [4, 128], strides = [1, 1]} : vector<4x256xf32> to vector<4x128xf32>
    %310 = vector.extract_strided_slice %308 {offsets = [0, 128], sizes = [4, 128], strides = [1, 1]} : vector<4x256xf32> to vector<4x128xf32>
    %311 = arith.select %10, %309, %310 : vector<4x128xi1>, vector<4x128xf32>
    %312 = arith.addf %306, %311 : vector<4x128xf32>
    %313 = vector.extract_strided_slice %312 {offsets = [0, 0], sizes = [4, 96], strides = [1, 1]} : vector<4x128xf32> to vector<4x96xf32>
    %314 = arith.negf %313 : vector<4x96xf32>
    %315 = math.exp %314 : vector<4x96xf32>
    %cst_152 = arith.constant 1.000000e+00 : f32
    %316 = vector.broadcast %cst_152 : f32 to vector<4x96xf32>
    %317 = arith.addf %316, %315 : vector<4x96xf32>
    %318 = arith.divf %316, %317 : vector<4x96xf32>
    %319 = vector.extract_strided_slice %312 {offsets = [0, 96], sizes = [4, 32], strides = [1, 1]} : vector<4x128xf32> to vector<4x32xf32>
    %320 = math.tanh %319 : vector<4x32xf32>
    %321 = vector.extract_strided_slice %318 {offsets = [0, 32], sizes = [4, 32], strides = [1, 1]} : vector<4x96xf32> to vector<4x32xf32>
    %322 = arith.mulf %321, %305 : vector<4x32xf32>
    %323 = vector.extract_strided_slice %318 {offsets = [0, 0], sizes = [4, 32], strides = [1, 1]} : vector<4x96xf32> to vector<4x32xf32>
    %324 = arith.mulf %323, %320 : vector<4x32xf32>
    %325 = arith.addf %322, %324 : vector<4x32xf32>
    %326 = vector.extract_strided_slice %318 {offsets = [0, 64], sizes = [4, 32], strides = [1, 1]} : vector<4x96xf32> to vector<4x32xf32>
    %327 = math.tanh %325 : vector<4x32xf32>
    %328 = arith.mulf %326, %327 : vector<4x32xf32>
    %329 = vector.extract_strided_slice %328 {offsets = [0, 0], sizes = [1, 32], strides = [1, 1]} : vector<4x32xf32> to vector<1x32xf32>
    %c0_153 = arith.constant 0 : index
    %c0_154 = arith.constant 0 : index
    %330 = vector.load %arg17[%c0_153, %c0_154] : memref<16x64xf32, #tpu.memory_space<vmem>>, vector<1x32xf32>
    tpu.vector_store %arg17[%c0_153, %c0_154], %329 {strides = array<i32>} : memref<16x64xf32, #tpu.memory_space<vmem>>, vector<1x32xf32>,
    %331 = vector.extract_strided_slice %328 {offsets = [2, 0], sizes = [1, 32], strides = [1, 1]} : vector<4x32xf32> to vector<1x32xf32>
    %c7 = arith.constant 7 : index
    %c32_155 = arith.constant 32 : index
    %332 = vector.load %arg17[%c7, %c32_155] : memref<16x64xf32, #tpu.memory_space<vmem>>, vector<1x32xf32>
    tpu.vector_store %arg17[%c7, %c32_155], %331 {strides = array<i32>} : memref<16x64xf32, #tpu.memory_space<vmem>>, vector<1x32xf32>,
    %333 = vector.extract_strided_slice %328 {offsets = [1, 0], sizes = [1, 32], strides = [1, 1]} : vector<4x32xf32> to vector<1x32xf32>
    %c8_156 = arith.constant 8 : index
    %c0_157 = arith.constant 0 : index
    %334 = vector.load %arg17[%c8_156, %c0_157] : memref<16x64xf32, #tpu.memory_space<vmem>>, vector<1x32xf32>
    tpu.vector_store %arg17[%c8_156, %c0_157], %333 {strides = array<i32>} : memref<16x64xf32, #tpu.memory_space<vmem>>, vector<1x32xf32>,
    %335 = vector.extract_strided_slice %328 {offsets = [3, 0], sizes = [1, 32], strides = [1, 1]} : vector<4x32xf32> to vector<1x32xf32>
    %c15 = arith.constant 15 : index
    %c32_158 = arith.constant 32 : index
    %336 = vector.load %arg17[%c15, %c32_158] : memref<16x64xf32, #tpu.memory_space<vmem>>, vector<1x32xf32>
    tpu.vector_store %arg17[%c15, %c32_158], %335 {strides = array<i32>} : memref<16x64xf32, #tpu.memory_space<vmem>>, vector<1x32xf32>,
    %c4_159 = arith.constant 4 : index
    %c0_160 = arith.constant 0 : index
    %337 = vector.load %arg15[%c4_159, %c0_160] : memref<32x128xf32, #tpu.memory_space<vmem>>, vector<4x128xf32>
    %c0_161 = arith.constant 0 : index
    %c0_162 = arith.constant 0 : index
    %338 = vector.load %arg6[%c0_161, %c0_162] : memref<32x256xf32, #tpu.memory_space<vmem>>, vector<32x256xf32>
    %cst_163 = arith.constant dense<0.000000e+00> : vector<4x256xf32>
    %339 = tpu.matmul %328, %338, %cst_163 {dimension_numbers = #tpu.dot_dimension_numbers<[1], [0], [0], [1], [0, 0, 1, 1], [], []>} : vector<4x32xf32>, vector<32x256xf32>, vector<4x256xf32> -> vector<4x256xf32>
    %340 = vector.extract_strided_slice %339 {offsets = [0, 0], sizes = [4, 128], strides = [1, 1]} : vector<4x256xf32> to vector<4x128xf32>
    %341 = vector.extract_strided_slice %339 {offsets = [0, 128], sizes = [4, 128], strides = [1, 1]} : vector<4x256xf32> to vector<4x128xf32>
    %342 = arith.select %10, %340, %341 : vector<4x128xi1>, vector<4x128xf32>
    %343 = arith.addf %337, %342 : vector<4x128xf32>
    %344 = vector.extract_strided_slice %343 {offsets = [0, 0], sizes = [4, 96], strides = [1, 1]} : vector<4x128xf32> to vector<4x96xf32>
    %345 = arith.negf %344 : vector<4x96xf32>
    %346 = math.exp %345 : vector<4x96xf32>
    %cst_164 = arith.constant 1.000000e+00 : f32
    %347 = vector.broadcast %cst_164 : f32 to vector<4x96xf32>
    %348 = arith.addf %347, %346 : vector<4x96xf32>
    %349 = arith.divf %347, %348 : vector<4x96xf32>
    %350 = vector.extract_strided_slice %343 {offsets = [0, 96], sizes = [4, 32], strides = [1, 1]} : vector<4x128xf32> to vector<4x32xf32>
    %351 = math.tanh %350 : vector<4x32xf32>
    %352 = vector.extract_strided_slice %349 {offsets = [0, 32], sizes = [4, 32], strides = [1, 1]} : vector<4x96xf32> to vector<4x32xf32>
    %353 = arith.mulf %352, %325 : vector<4x32xf32>
    %354 = vector.extract_strided_slice %349 {offsets = [0, 0], sizes = [4, 32], strides = [1, 1]} : vector<4x96xf32> to vector<4x32xf32>
    %355 = arith.mulf %354, %351 : vector<4x32xf32>
    %356 = arith.addf %353, %355 : vector<4x32xf32>
    %357 = vector.extract_strided_slice %349 {offsets = [0, 64], sizes = [4, 32], strides = [1, 1]} : vector<4x96xf32> to vector<4x32xf32>
    %358 = math.tanh %356 : vector<4x32xf32>
    %359 = arith.mulf %357, %358 : vector<4x32xf32>
    %360 = vector.extract_strided_slice %359 {offsets = [0, 0], sizes = [1, 32], strides = [1, 1]} : vector<4x32xf32> to vector<1x32xf32>
    %c1 = arith.constant 1 : index
    %c0_165 = arith.constant 0 : index
    %361 = vector.load %arg17[%c1, %c0_165] : memref<16x64xf32, #tpu.memory_space<vmem>>, vector<1x32xf32>
    tpu.vector_store %arg17[%c1, %c0_165], %360 {strides = array<i32>} : memref<16x64xf32, #tpu.memory_space<vmem>>, vector<1x32xf32>,
    %362 = vector.extract_strided_slice %359 {offsets = [2, 0], sizes = [1, 32], strides = [1, 1]} : vector<4x32xf32> to vector<1x32xf32>
    %c6_166 = arith.constant 6 : index
    %c32_167 = arith.constant 32 : index
    %363 = vector.load %arg17[%c6_166, %c32_167] : memref<16x64xf32, #tpu.memory_space<vmem>>, vector<1x32xf32>
    tpu.vector_store %arg17[%c6_166, %c32_167], %362 {strides = array<i32>} : memref<16x64xf32, #tpu.memory_space<vmem>>, vector<1x32xf32>,
    %364 = vector.extract_strided_slice %359 {offsets = [1, 0], sizes = [1, 32], strides = [1, 1]} : vector<4x32xf32> to vector<1x32xf32>
    %c9 = arith.constant 9 : index
    %c0_168 = arith.constant 0 : index
    %365 = vector.load %arg17[%c9, %c0_168] : memref<16x64xf32, #tpu.memory_space<vmem>>, vector<1x32xf32>
    tpu.vector_store %arg17[%c9, %c0_168], %364 {strides = array<i32>} : memref<16x64xf32, #tpu.memory_space<vmem>>, vector<1x32xf32>,
    %366 = vector.extract_strided_slice %359 {offsets = [3, 0], sizes = [1, 32], strides = [1, 1]} : vector<4x32xf32> to vector<1x32xf32>
    %c14_169 = arith.constant 14 : index
    %c32_170 = arith.constant 32 : index
    %367 = vector.load %arg17[%c14_169, %c32_170] : memref<16x64xf32, #tpu.memory_space<vmem>>, vector<1x32xf32>
    tpu.vector_store %arg17[%c14_169, %c32_170], %366 {strides = array<i32>} : memref<16x64xf32, #tpu.memory_space<vmem>>, vector<1x32xf32>,
    %c8_171 = arith.constant 8 : index
    %c0_172 = arith.constant 0 : index
    %368 = vector.load %arg15[%c8_171, %c0_172] : memref<32x128xf32, #tpu.memory_space<vmem>>, vector<4x128xf32>
    %c0_173 = arith.constant 0 : index
    %c0_174 = arith.constant 0 : index
    %369 = vector.load %arg6[%c0_173, %c0_174] : memref<32x256xf32, #tpu.memory_space<vmem>>, vector<32x256xf32>
    %cst_175 = arith.constant dense<0.000000e+00> : vector<4x256xf32>
    %370 = tpu.matmul %359, %369, %cst_175 {dimension_numbers = #tpu.dot_dimension_numbers<[1], [0], [0], [1], [0, 0, 1, 1], [], []>} : vector<4x32xf32>, vector<32x256xf32>, vector<4x256xf32> -> vector<4x256xf32>
    %371 = vector.extract_strided_slice %370 {offsets = [0, 0], sizes = [4, 128], strides = [1, 1]} : vector<4x256xf32> to vector<4x128xf32>
    %372 = vector.extract_strided_slice %370 {offsets = [0, 128], sizes = [4, 128], strides = [1, 1]} : vector<4x256xf32> to vector<4x128xf32>
    %373 = arith.select %10, %371, %372 : vector<4x128xi1>, vector<4x128xf32>
    %374 = arith.addf %368, %373 : vector<4x128xf32>
    %375 = vector.extract_strided_slice %374 {offsets = [0, 0], sizes = [4, 96], strides = [1, 1]} : vector<4x128xf32> to vector<4x96xf32>
    %376 = arith.negf %375 : vector<4x96xf32>
    %377 = math.exp %376 : vector<4x96xf32>
    %cst_176 = arith.constant 1.000000e+00 : f32
    %378 = vector.broadcast %cst_176 : f32 to vector<4x96xf32>
    %379 = arith.addf %378, %377 : vector<4x96xf32>
    %380 = arith.divf %378, %379 : vector<4x96xf32>
    %381 = vector.extract_strided_slice %374 {offsets = [0, 96], sizes = [4, 32], strides = [1, 1]} : vector<4x128xf32> to vector<4x32xf32>
    %382 = math.tanh %381 : vector<4x32xf32>
    %383 = vector.extract_strided_slice %380 {offsets = [0, 32], sizes = [4, 32], strides = [1, 1]} : vector<4x96xf32> to vector<4x32xf32>
    %384 = arith.mulf %383, %356 : vector<4x32xf32>
    %385 = vector.extract_strided_slice %380 {offsets = [0, 0], sizes = [4, 32], strides = [1, 1]} : vector<4x96xf32> to vector<4x32xf32>
    %386 = arith.mulf %385, %382 : vector<4x32xf32>
    %387 = arith.addf %384, %386 : vector<4x32xf32>
    %388 = vector.extract_strided_slice %380 {offsets = [0, 64], sizes = [4, 32], strides = [1, 1]} : vector<4x96xf32> to vector<4x32xf32>
    %389 = math.tanh %387 : vector<4x32xf32>
    %390 = arith.mulf %388, %389 : vector<4x32xf32>
    %391 = vector.extract_strided_slice %390 {offsets = [0, 0], sizes = [1, 32], strides = [1, 1]} : vector<4x32xf32> to vector<1x32xf32>
    %c2_177 = arith.constant 2 : index
    %c0_178 = arith.constant 0 : index
    %392 = vector.load %arg17[%c2_177, %c0_178] : memref<16x64xf32, #tpu.memory_space<vmem>>, vector<1x32xf32>
    tpu.vector_store %arg17[%c2_177, %c0_178], %391 {strides = array<i32>} : memref<16x64xf32, #tpu.memory_space<vmem>>, vector<1x32xf32>,
    %393 = vector.extract_strided_slice %390 {offsets = [2, 0], sizes = [1, 32], strides = [1, 1]} : vector<4x32xf32> to vector<1x32xf32>
    %c5 = arith.constant 5 : index
    %c32_179 = arith.constant 32 : index
    %394 = vector.load %arg17[%c5, %c32_179] : memref<16x64xf32, #tpu.memory_space<vmem>>, vector<1x32xf32>
    tpu.vector_store %arg17[%c5, %c32_179], %393 {strides = array<i32>} : memref<16x64xf32, #tpu.memory_space<vmem>>, vector<1x32xf32>,
    %395 = vector.extract_strided_slice %390 {offsets = [1, 0], sizes = [1, 32], strides = [1, 1]} : vector<4x32xf32> to vector<1x32xf32>
    %c10_180 = arith.constant 10 : index
    %c0_181 = arith.constant 0 : index
    %396 = vector.load %arg17[%c10_180, %c0_181] : memref<16x64xf32, #tpu.memory_space<vmem>>, vector<1x32xf32>
    tpu.vector_store %arg17[%c10_180, %c0_181], %395 {strides = array<i32>} : memref<16x64xf32, #tpu.memory_space<vmem>>, vector<1x32xf32>,
    %397 = vector.extract_strided_slice %390 {offsets = [3, 0], sizes = [1, 32], strides = [1, 1]} : vector<4x32xf32> to vector<1x32xf32>
    %c13 = arith.constant 13 : index
    %c32_182 = arith.constant 32 : index
    %398 = vector.load %arg17[%c13, %c32_182] : memref<16x64xf32, #tpu.memory_space<vmem>>, vector<1x32xf32>
    tpu.vector_store %arg17[%c13, %c32_182], %397 {strides = array<i32>} : memref<16x64xf32, #tpu.memory_space<vmem>>, vector<1x32xf32>,
    %c12_183 = arith.constant 12 : index
    %c0_184 = arith.constant 0 : index
    %399 = vector.load %arg15[%c12_183, %c0_184] : memref<32x128xf32, #tpu.memory_space<vmem>>, vector<4x128xf32>
    %c0_185 = arith.constant 0 : index
    %c0_186 = arith.constant 0 : index
    %400 = vector.load %arg6[%c0_185, %c0_186] : memref<32x256xf32, #tpu.memory_space<vmem>>, vector<32x256xf32>
    %cst_187 = arith.constant dense<0.000000e+00> : vector<4x256xf32>
    %401 = tpu.matmul %390, %400, %cst_187 {dimension_numbers = #tpu.dot_dimension_numbers<[1], [0], [0], [1], [0, 0, 1, 1], [], []>} : vector<4x32xf32>, vector<32x256xf32>, vector<4x256xf32> -> vector<4x256xf32>
    %402 = vector.extract_strided_slice %401 {offsets = [0, 0], sizes = [4, 128], strides = [1, 1]} : vector<4x256xf32> to vector<4x128xf32>
    %403 = vector.extract_strided_slice %401 {offsets = [0, 128], sizes = [4, 128], strides = [1, 1]} : vector<4x256xf32> to vector<4x128xf32>
    %404 = arith.select %10, %402, %403 : vector<4x128xi1>, vector<4x128xf32>
    %405 = arith.addf %399, %404 : vector<4x128xf32>
    %406 = vector.extract_strided_slice %405 {offsets = [0, 0], sizes = [4, 96], strides = [1, 1]} : vector<4x128xf32> to vector<4x96xf32>
    %407 = arith.negf %406 : vector<4x96xf32>
    %408 = math.exp %407 : vector<4x96xf32>
    %cst_188 = arith.constant 1.000000e+00 : f32
    %409 = vector.broadcast %cst_188 : f32 to vector<4x96xf32>
    %410 = arith.addf %409, %408 : vector<4x96xf32>
    %411 = arith.divf %409, %410 : vector<4x96xf32>
    %412 = vector.extract_strided_slice %405 {offsets = [0, 96], sizes = [4, 32], strides = [1, 1]} : vector<4x128xf32> to vector<4x32xf32>
    %413 = math.tanh %412 : vector<4x32xf32>
    %414 = vector.extract_strided_slice %411 {offsets = [0, 32], sizes = [4, 32], strides = [1, 1]} : vector<4x96xf32> to vector<4x32xf32>
    %415 = arith.mulf %414, %387 : vector<4x32xf32>
    %416 = vector.extract_strided_slice %411 {offsets = [0, 0], sizes = [4, 32], strides = [1, 1]} : vector<4x96xf32> to vector<4x32xf32>
    %417 = arith.mulf %416, %413 : vector<4x32xf32>
    %418 = arith.addf %415, %417 : vector<4x32xf32>
    %419 = vector.extract_strided_slice %411 {offsets = [0, 64], sizes = [4, 32], strides = [1, 1]} : vector<4x96xf32> to vector<4x32xf32>
    %420 = math.tanh %418 : vector<4x32xf32>
    %421 = arith.mulf %419, %420 : vector<4x32xf32>
    %422 = vector.extract_strided_slice %421 {offsets = [0, 0], sizes = [1, 32], strides = [1, 1]} : vector<4x32xf32> to vector<1x32xf32>
    %c3 = arith.constant 3 : index
    %c0_189 = arith.constant 0 : index
    %423 = vector.load %arg17[%c3, %c0_189] : memref<16x64xf32, #tpu.memory_space<vmem>>, vector<1x32xf32>
    tpu.vector_store %arg17[%c3, %c0_189], %422 {strides = array<i32>} : memref<16x64xf32, #tpu.memory_space<vmem>>, vector<1x32xf32>,
    %424 = vector.extract_strided_slice %421 {offsets = [2, 0], sizes = [1, 32], strides = [1, 1]} : vector<4x32xf32> to vector<1x32xf32>
    %c4_190 = arith.constant 4 : index
    %c32_191 = arith.constant 32 : index
    %425 = vector.load %arg17[%c4_190, %c32_191] : memref<16x64xf32, #tpu.memory_space<vmem>>, vector<1x32xf32>
    tpu.vector_store %arg17[%c4_190, %c32_191], %424 {strides = array<i32>} : memref<16x64xf32, #tpu.memory_space<vmem>>, vector<1x32xf32>,
    %426 = vector.extract_strided_slice %421 {offsets = [1, 0], sizes = [1, 32], strides = [1, 1]} : vector<4x32xf32> to vector<1x32xf32>
    %c11 = arith.constant 11 : index
    %c0_192 = arith.constant 0 : index
    %427 = vector.load %arg17[%c11, %c0_192] : memref<16x64xf32, #tpu.memory_space<vmem>>, vector<1x32xf32>
    tpu.vector_store %arg17[%c11, %c0_192], %426 {strides = array<i32>} : memref<16x64xf32, #tpu.memory_space<vmem>>, vector<1x32xf32>,
    %428 = vector.extract_strided_slice %421 {offsets = [3, 0], sizes = [1, 32], strides = [1, 1]} : vector<4x32xf32> to vector<1x32xf32>
    %c12_193 = arith.constant 12 : index
    %c32_194 = arith.constant 32 : index
    %429 = vector.load %arg17[%c12_193, %c32_194] : memref<16x64xf32, #tpu.memory_space<vmem>>, vector<1x32xf32>
    tpu.vector_store %arg17[%c12_193, %c32_194], %428 {strides = array<i32>} : memref<16x64xf32, #tpu.memory_space<vmem>>, vector<1x32xf32>,
    %c16_195 = arith.constant 16 : index
    %c0_196 = arith.constant 0 : index
    %430 = vector.load %arg15[%c16_195, %c0_196] : memref<32x128xf32, #tpu.memory_space<vmem>>, vector<4x128xf32>
    %c0_197 = arith.constant 0 : index
    %c0_198 = arith.constant 0 : index
    %431 = vector.load %arg6[%c0_197, %c0_198] : memref<32x256xf32, #tpu.memory_space<vmem>>, vector<32x256xf32>
    %cst_199 = arith.constant dense<0.000000e+00> : vector<4x256xf32>
    %432 = tpu.matmul %421, %431, %cst_199 {dimension_numbers = #tpu.dot_dimension_numbers<[1], [0], [0], [1], [0, 0, 1, 1], [], []>} : vector<4x32xf32>, vector<32x256xf32>, vector<4x256xf32> -> vector<4x256xf32>
    %433 = vector.extract_strided_slice %432 {offsets = [0, 0], sizes = [4, 128], strides = [1, 1]} : vector<4x256xf32> to vector<4x128xf32>
    %434 = vector.extract_strided_slice %432 {offsets = [0, 128], sizes = [4, 128], strides = [1, 1]} : vector<4x256xf32> to vector<4x128xf32>
    %435 = arith.select %10, %433, %434 : vector<4x128xi1>, vector<4x128xf32>
    %436 = arith.addf %430, %435 : vector<4x128xf32>
    %437 = vector.extract_strided_slice %436 {offsets = [0, 0], sizes = [4, 96], strides = [1, 1]} : vector<4x128xf32> to vector<4x96xf32>
    %438 = arith.negf %437 : vector<4x96xf32>
    %439 = math.exp %438 : vector<4x96xf32>
    %cst_200 = arith.constant 1.000000e+00 : f32
    %440 = vector.broadcast %cst_200 : f32 to vector<4x96xf32>
    %441 = arith.addf %440, %439 : vector<4x96xf32>
    %442 = arith.divf %440, %441 : vector<4x96xf32>
    %443 = vector.extract_strided_slice %436 {offsets = [0, 96], sizes = [4, 32], strides = [1, 1]} : vector<4x128xf32> to vector<4x32xf32>
    %444 = math.tanh %443 : vector<4x32xf32>
    %445 = vector.extract_strided_slice %442 {offsets = [0, 32], sizes = [4, 32], strides = [1, 1]} : vector<4x96xf32> to vector<4x32xf32>
    %446 = arith.mulf %445, %418 : vector<4x32xf32>
    %447 = vector.extract_strided_slice %442 {offsets = [0, 0], sizes = [4, 32], strides = [1, 1]} : vector<4x96xf32> to vector<4x32xf32>
    %448 = arith.mulf %447, %444 : vector<4x32xf32>
    %449 = arith.addf %446, %448 : vector<4x32xf32>
    %450 = vector.extract_strided_slice %442 {offsets = [0, 64], sizes = [4, 32], strides = [1, 1]} : vector<4x96xf32> to vector<4x32xf32>
    %451 = math.tanh %449 : vector<4x32xf32>
    %452 = arith.mulf %450, %451 : vector<4x32xf32>
    %453 = vector.extract_strided_slice %452 {offsets = [0, 0], sizes = [1, 32], strides = [1, 1]} : vector<4x32xf32> to vector<1x32xf32>
    %c4_201 = arith.constant 4 : index
    %c0_202 = arith.constant 0 : index
    %454 = vector.load %arg17[%c4_201, %c0_202] : memref<16x64xf32, #tpu.memory_space<vmem>>, vector<1x32xf32>
    tpu.vector_store %arg17[%c4_201, %c0_202], %453 {strides = array<i32>} : memref<16x64xf32, #tpu.memory_space<vmem>>, vector<1x32xf32>,
    %455 = vector.extract_strided_slice %452 {offsets = [2, 0], sizes = [1, 32], strides = [1, 1]} : vector<4x32xf32> to vector<1x32xf32>
    %c3_203 = arith.constant 3 : index
    %c32_204 = arith.constant 32 : index
    %456 = vector.load %arg17[%c3_203, %c32_204] : memref<16x64xf32, #tpu.memory_space<vmem>>, vector<1x32xf32>
    tpu.vector_store %arg17[%c3_203, %c32_204], %455 {strides = array<i32>} : memref<16x64xf32, #tpu.memory_space<vmem>>, vector<1x32xf32>,
    %457 = vector.extract_strided_slice %452 {offsets = [1, 0], sizes = [1, 32], strides = [1, 1]} : vector<4x32xf32> to vector<1x32xf32>
    %c12_205 = arith.constant 12 : index
    %c0_206 = arith.constant 0 : index
    %458 = vector.load %arg17[%c12_205, %c0_206] : memref<16x64xf32, #tpu.memory_space<vmem>>, vector<1x32xf32>
    tpu.vector_store %arg17[%c12_205, %c0_206], %457 {strides = array<i32>} : memref<16x64xf32, #tpu.memory_space<vmem>>, vector<1x32xf32>,
    %459 = vector.extract_strided_slice %452 {offsets = [3, 0], sizes = [1, 32], strides = [1, 1]} : vector<4x32xf32> to vector<1x32xf32>
    %c11_207 = arith.constant 11 : index
    %c32_208 = arith.constant 32 : index
    %460 = vector.load %arg17[%c11_207, %c32_208] : memref<16x64xf32, #tpu.memory_space<vmem>>, vector<1x32xf32>
    tpu.vector_store %arg17[%c11_207, %c32_208], %459 {strides = array<i32>} : memref<16x64xf32, #tpu.memory_space<vmem>>, vector<1x32xf32>,
    %c20_209 = arith.constant 20 : index
    %c0_210 = arith.constant 0 : index
    %461 = vector.load %arg15[%c20_209, %c0_210] : memref<32x128xf32, #tpu.memory_space<vmem>>, vector<4x128xf32>
    %c0_211 = arith.constant 0 : index
    %c0_212 = arith.constant 0 : index
    %462 = vector.load %arg6[%c0_211, %c0_212] : memref<32x256xf32, #tpu.memory_space<vmem>>, vector<32x256xf32>
    %cst_213 = arith.constant dense<0.000000e+00> : vector<4x256xf32>
    %463 = tpu.matmul %452, %462, %cst_213 {dimension_numbers = #tpu.dot_dimension_numbers<[1], [0], [0], [1], [0, 0, 1, 1], [], []>} : vector<4x32xf32>, vector<32x256xf32>, vector<4x256xf32> -> vector<4x256xf32>
    %464 = vector.extract_strided_slice %463 {offsets = [0, 0], sizes = [4, 128], strides = [1, 1]} : vector<4x256xf32> to vector<4x128xf32>
    %465 = vector.extract_strided_slice %463 {offsets = [0, 128], sizes = [4, 128], strides = [1, 1]} : vector<4x256xf32> to vector<4x128xf32>
    %466 = arith.select %10, %464, %465 : vector<4x128xi1>, vector<4x128xf32>
    %467 = arith.addf %461, %466 : vector<4x128xf32>
    %468 = vector.extract_strided_slice %467 {offsets = [0, 0], sizes = [4, 96], strides = [1, 1]} : vector<4x128xf32> to vector<4x96xf32>
    %469 = arith.negf %468 : vector<4x96xf32>
    %470 = math.exp %469 : vector<4x96xf32>
    %cst_214 = arith.constant 1.000000e+00 : f32
    %471 = vector.broadcast %cst_214 : f32 to vector<4x96xf32>
    %472 = arith.addf %471, %470 : vector<4x96xf32>
    %473 = arith.divf %471, %472 : vector<4x96xf32>
    %474 = vector.extract_strided_slice %467 {offsets = [0, 96], sizes = [4, 32], strides = [1, 1]} : vector<4x128xf32> to vector<4x32xf32>
    %475 = math.tanh %474 : vector<4x32xf32>
    %476 = vector.extract_strided_slice %473 {offsets = [0, 32], sizes = [4, 32], strides = [1, 1]} : vector<4x96xf32> to vector<4x32xf32>
    %477 = arith.mulf %476, %449 : vector<4x32xf32>
    %478 = vector.extract_strided_slice %473 {offsets = [0, 0], sizes = [4, 32], strides = [1, 1]} : vector<4x96xf32> to vector<4x32xf32>
    %479 = arith.mulf %478, %475 : vector<4x32xf32>
    %480 = arith.addf %477, %479 : vector<4x32xf32>
    %481 = vector.extract_strided_slice %473 {offsets = [0, 64], sizes = [4, 32], strides = [1, 1]} : vector<4x96xf32> to vector<4x32xf32>
    %482 = math.tanh %480 : vector<4x32xf32>
    %483 = arith.mulf %481, %482 : vector<4x32xf32>
    %484 = vector.extract_strided_slice %483 {offsets = [0, 0], sizes = [1, 32], strides = [1, 1]} : vector<4x32xf32> to vector<1x32xf32>
    %c5_215 = arith.constant 5 : index
    %c0_216 = arith.constant 0 : index
    %485 = vector.load %arg17[%c5_215, %c0_216] : memref<16x64xf32, #tpu.memory_space<vmem>>, vector<1x32xf32>
    tpu.vector_store %arg17[%c5_215, %c0_216], %484 {strides = array<i32>} : memref<16x64xf32, #tpu.memory_space<vmem>>, vector<1x32xf32>,
    %486 = vector.extract_strided_slice %483 {offsets = [2, 0], sizes = [1, 32], strides = [1, 1]} : vector<4x32xf32> to vector<1x32xf32>
    %c2_217 = arith.constant 2 : index
    %c32_218 = arith.constant 32 : index
    %487 = vector.load %arg17[%c2_217, %c32_218] : memref<16x64xf32, #tpu.memory_space<vmem>>, vector<1x32xf32>
    tpu.vector_store %arg17[%c2_217, %c32_218], %486 {strides = array<i32>} : memref<16x64xf32, #tpu.memory_space<vmem>>, vector<1x32xf32>,
    %488 = vector.extract_strided_slice %483 {offsets = [1, 0], sizes = [1, 32], strides = [1, 1]} : vector<4x32xf32> to vector<1x32xf32>
    %c13_219 = arith.constant 13 : index
    %c0_220 = arith.constant 0 : index
    %489 = vector.load %arg17[%c13_219, %c0_220] : memref<16x64xf32, #tpu.memory_space<vmem>>, vector<1x32xf32>
    tpu.vector_store %arg17[%c13_219, %c0_220], %488 {strides = array<i32>} : memref<16x64xf32, #tpu.memory_space<vmem>>, vector<1x32xf32>,
    %490 = vector.extract_strided_slice %483 {offsets = [3, 0], sizes = [1, 32], strides = [1, 1]} : vector<4x32xf32> to vector<1x32xf32>
    %c10_221 = arith.constant 10 : index
    %c32_222 = arith.constant 32 : index
    %491 = vector.load %arg17[%c10_221, %c32_222] : memref<16x64xf32, #tpu.memory_space<vmem>>, vector<1x32xf32>
    tpu.vector_store %arg17[%c10_221, %c32_222], %490 {strides = array<i32>} : memref<16x64xf32, #tpu.memory_space<vmem>>, vector<1x32xf32>,
    %c24_223 = arith.constant 24 : index
    %c0_224 = arith.constant 0 : index
    %492 = vector.load %arg15[%c24_223, %c0_224] : memref<32x128xf32, #tpu.memory_space<vmem>>, vector<4x128xf32>
    %c0_225 = arith.constant 0 : index
    %c0_226 = arith.constant 0 : index
    %493 = vector.load %arg6[%c0_225, %c0_226] : memref<32x256xf32, #tpu.memory_space<vmem>>, vector<32x256xf32>
    %cst_227 = arith.constant dense<0.000000e+00> : vector<4x256xf32>
    %494 = tpu.matmul %483, %493, %cst_227 {dimension_numbers = #tpu.dot_dimension_numbers<[1], [0], [0], [1], [0, 0, 1, 1], [], []>} : vector<4x32xf32>, vector<32x256xf32>, vector<4x256xf32> -> vector<4x256xf32>
    %495 = vector.extract_strided_slice %494 {offsets = [0, 0], sizes = [4, 128], strides = [1, 1]} : vector<4x256xf32> to vector<4x128xf32>
    %496 = vector.extract_strided_slice %494 {offsets = [0, 128], sizes = [4, 128], strides = [1, 1]} : vector<4x256xf32> to vector<4x128xf32>
    %497 = arith.select %10, %495, %496 : vector<4x128xi1>, vector<4x128xf32>
    %498 = arith.addf %492, %497 : vector<4x128xf32>
    %499 = vector.extract_strided_slice %498 {offsets = [0, 0], sizes = [4, 96], strides = [1, 1]} : vector<4x128xf32> to vector<4x96xf32>
    %500 = arith.negf %499 : vector<4x96xf32>
    %501 = math.exp %500 : vector<4x96xf32>
    %cst_228 = arith.constant 1.000000e+00 : f32
    %502 = vector.broadcast %cst_228 : f32 to vector<4x96xf32>
    %503 = arith.addf %502, %501 : vector<4x96xf32>
    %504 = arith.divf %502, %503 : vector<4x96xf32>
    %505 = vector.extract_strided_slice %498 {offsets = [0, 96], sizes = [4, 32], strides = [1, 1]} : vector<4x128xf32> to vector<4x32xf32>
    %506 = math.tanh %505 : vector<4x32xf32>
    %507 = vector.extract_strided_slice %504 {offsets = [0, 32], sizes = [4, 32], strides = [1, 1]} : vector<4x96xf32> to vector<4x32xf32>
    %508 = arith.mulf %507, %480 : vector<4x32xf32>
    %509 = vector.extract_strided_slice %504 {offsets = [0, 0], sizes = [4, 32], strides = [1, 1]} : vector<4x96xf32> to vector<4x32xf32>
    %510 = arith.mulf %509, %506 : vector<4x32xf32>
    %511 = arith.addf %508, %510 : vector<4x32xf32>
    %512 = vector.extract_strided_slice %504 {offsets = [0, 64], sizes = [4, 32], strides = [1, 1]} : vector<4x96xf32> to vector<4x32xf32>
    %513 = math.tanh %511 : vector<4x32xf32>
    %514 = arith.mulf %512, %513 : vector<4x32xf32>
    %515 = vector.extract_strided_slice %514 {offsets = [0, 0], sizes = [1, 32], strides = [1, 1]} : vector<4x32xf32> to vector<1x32xf32>
    %c6_229 = arith.constant 6 : index
    %c0_230 = arith.constant 0 : index
    %516 = vector.load %arg17[%c6_229, %c0_230] : memref<16x64xf32, #tpu.memory_space<vmem>>, vector<1x32xf32>
    tpu.vector_store %arg17[%c6_229, %c0_230], %515 {strides = array<i32>} : memref<16x64xf32, #tpu.memory_space<vmem>>, vector<1x32xf32>,
    %517 = vector.extract_strided_slice %514 {offsets = [2, 0], sizes = [1, 32], strides = [1, 1]} : vector<4x32xf32> to vector<1x32xf32>
    %c1_231 = arith.constant 1 : index
    %c32_232 = arith.constant 32 : index
    %518 = vector.load %arg17[%c1_231, %c32_232] : memref<16x64xf32, #tpu.memory_space<vmem>>, vector<1x32xf32>
    tpu.vector_store %arg17[%c1_231, %c32_232], %517 {strides = array<i32>} : memref<16x64xf32, #tpu.memory_space<vmem>>, vector<1x32xf32>,
    %519 = vector.extract_strided_slice %514 {offsets = [1, 0], sizes = [1, 32], strides = [1, 1]} : vector<4x32xf32> to vector<1x32xf32>
    %c14_233 = arith.constant 14 : index
    %c0_234 = arith.constant 0 : index
    %520 = vector.load %arg17[%c14_233, %c0_234] : memref<16x64xf32, #tpu.memory_space<vmem>>, vector<1x32xf32>
    tpu.vector_store %arg17[%c14_233, %c0_234], %519 {strides = array<i32>} : memref<16x64xf32, #tpu.memory_space<vmem>>, vector<1x32xf32>,
    %521 = vector.extract_strided_slice %514 {offsets = [3, 0], sizes = [1, 32], strides = [1, 1]} : vector<4x32xf32> to vector<1x32xf32>
    %c9_235 = arith.constant 9 : index
    %c32_236 = arith.constant 32 : index
    %522 = vector.load %arg17[%c9_235, %c32_236] : memref<16x64xf32, #tpu.memory_space<vmem>>, vector<1x32xf32>
    tpu.vector_store %arg17[%c9_235, %c32_236], %521 {strides = array<i32>} : memref<16x64xf32, #tpu.memory_space<vmem>>, vector<1x32xf32>,
    %c28_237 = arith.constant 28 : index
    %c0_238 = arith.constant 0 : index
    %523 = vector.load %arg15[%c28_237, %c0_238] : memref<32x128xf32, #tpu.memory_space<vmem>>, vector<4x128xf32>
    %c0_239 = arith.constant 0 : index
    %c0_240 = arith.constant 0 : index
    %524 = vector.load %arg6[%c0_239, %c0_240] : memref<32x256xf32, #tpu.memory_space<vmem>>, vector<32x256xf32>
    %cst_241 = arith.constant dense<0.000000e+00> : vector<4x256xf32>
    %525 = tpu.matmul %514, %524, %cst_241 {dimension_numbers = #tpu.dot_dimension_numbers<[1], [0], [0], [1], [0, 0, 1, 1], [], []>} : vector<4x32xf32>, vector<32x256xf32>, vector<4x256xf32> -> vector<4x256xf32>
    %526 = vector.extract_strided_slice %525 {offsets = [0, 0], sizes = [4, 128], strides = [1, 1]} : vector<4x256xf32> to vector<4x128xf32>
    %527 = vector.extract_strided_slice %525 {offsets = [0, 128], sizes = [4, 128], strides = [1, 1]} : vector<4x256xf32> to vector<4x128xf32>
    %528 = arith.select %10, %526, %527 : vector<4x128xi1>, vector<4x128xf32>
    %529 = arith.addf %523, %528 : vector<4x128xf32>
    %530 = vector.extract_strided_slice %529 {offsets = [0, 0], sizes = [4, 96], strides = [1, 1]} : vector<4x128xf32> to vector<4x96xf32>
    %531 = arith.negf %530 : vector<4x96xf32>
    %532 = math.exp %531 : vector<4x96xf32>
    %cst_242 = arith.constant 1.000000e+00 : f32
    %533 = vector.broadcast %cst_242 : f32 to vector<4x96xf32>
    %534 = arith.addf %533, %532 : vector<4x96xf32>
    %535 = arith.divf %533, %534 : vector<4x96xf32>
    %536 = vector.extract_strided_slice %529 {offsets = [0, 96], sizes = [4, 32], strides = [1, 1]} : vector<4x128xf32> to vector<4x32xf32>
    %537 = math.tanh %536 : vector<4x32xf32>
    %538 = vector.extract_strided_slice %535 {offsets = [0, 32], sizes = [4, 32], strides = [1, 1]} : vector<4x96xf32> to vector<4x32xf32>
    %539 = arith.mulf %538, %511 : vector<4x32xf32>
    %540 = vector.extract_strided_slice %535 {offsets = [0, 0], sizes = [4, 32], strides = [1, 1]} : vector<4x96xf32> to vector<4x32xf32>
    %541 = arith.mulf %540, %537 : vector<4x32xf32>
    %542 = arith.addf %539, %541 : vector<4x32xf32>
    %543 = vector.extract_strided_slice %535 {offsets = [0, 64], sizes = [4, 32], strides = [1, 1]} : vector<4x96xf32> to vector<4x32xf32>
    %544 = math.tanh %542 : vector<4x32xf32>
    %545 = arith.mulf %543, %544 : vector<4x32xf32>
    %546 = vector.extract_strided_slice %545 {offsets = [0, 0], sizes = [1, 32], strides = [1, 1]} : vector<4x32xf32> to vector<1x32xf32>
    %c7_243 = arith.constant 7 : index
    %c0_244 = arith.constant 0 : index
    %547 = vector.load %arg17[%c7_243, %c0_244] : memref<16x64xf32, #tpu.memory_space<vmem>>, vector<1x32xf32>
    tpu.vector_store %arg17[%c7_243, %c0_244], %546 {strides = array<i32>} : memref<16x64xf32, #tpu.memory_space<vmem>>, vector<1x32xf32>,
    %548 = vector.extract_strided_slice %545 {offsets = [2, 0], sizes = [1, 32], strides = [1, 1]} : vector<4x32xf32> to vector<1x32xf32>
    %c0_245 = arith.constant 0 : index
    %c32_246 = arith.constant 32 : index
    %549 = vector.load %arg17[%c0_245, %c32_246] : memref<16x64xf32, #tpu.memory_space<vmem>>, vector<1x32xf32>
    tpu.vector_store %arg17[%c0_245, %c32_246], %548 {strides = array<i32>} : memref<16x64xf32, #tpu.memory_space<vmem>>, vector<1x32xf32>,
    %550 = vector.extract_strided_slice %545 {offsets = [1, 0], sizes = [1, 32], strides = [1, 1]} : vector<4x32xf32> to vector<1x32xf32>
    %c15_247 = arith.constant 15 : index
    %c0_248 = arith.constant 0 : index
    %551 = vector.load %arg17[%c15_247, %c0_248] : memref<16x64xf32, #tpu.memory_space<vmem>>, vector<1x32xf32>
    tpu.vector_store %arg17[%c15_247, %c0_248], %550 {strides = array<i32>} : memref<16x64xf32, #tpu.memory_space<vmem>>, vector<1x32xf32>,
    %552 = vector.extract_strided_slice %545 {offsets = [3, 0], sizes = [1, 32], strides = [1, 1]} : vector<4x32xf32> to vector<1x32xf32>
    %c8_249 = arith.constant 8 : index
    %c32_250 = arith.constant 32 : index
    %553 = vector.load %arg17[%c8_249, %c32_250] : memref<16x64xf32, #tpu.memory_space<vmem>>, vector<1x32xf32>
    tpu.vector_store %arg17[%c8_249, %c32_250], %552 {strides = array<i32>} : memref<16x64xf32, #tpu.memory_space<vmem>>, vector<1x32xf32>,
    %c0_251 = arith.constant 0 : index
    %c0_252 = arith.constant 0 : index
    %554 = vector.load %arg17[%c0_251, %c0_252] : memref<16x64xf32, #tpu.memory_space<vmem>>, vector<16x64xf32>
    %cst_253 = arith.constant dense<0.000000e+00> : vector<16xf32>
    %555 = vector.multi_reduction <add>, %554, %cst_253 [1] : vector<16x64xf32> to vector<16xf32>
    %556 = vector.shape_cast %555 : vector<16xf32> to vector<16x1xf32>
    %cst_254 = arith.constant 6.400000e+01 : f32
    %557 = vector.broadcast %cst_254 : f32 to vector<16x1xf32>
    %558 = arith.divf %556, %557 : vector<16x1xf32>
    %559 = vector.broadcast %558 : vector<16x1xf32> to vector<16x64xf32>
    %560 = arith.subf %554, %559 : vector<16x64xf32>
    %561 = arith.mulf %560, %560 : vector<16x64xf32>
    %cst_255 = arith.constant dense<0.000000e+00> : vector<16xf32>
    %562 = vector.multi_reduction <add>, %561, %cst_255 [1] : vector<16x64xf32> to vector<16xf32>
    %563 = vector.shape_cast %562 : vector<16xf32> to vector<16x1xf32>
    %cst_256 = arith.constant 6.400000e+01 : f32
    %564 = vector.broadcast %cst_256 : f32 to vector<16x1xf32>
    %565 = arith.divf %563, %564 : vector<16x1xf32>
    %566 = vector.broadcast %558 : vector<16x1xf32> to vector<16x64xf32>
    %567 = arith.subf %554, %566 : vector<16x64xf32>
    %cst_257 = arith.constant 9.99999974E-6 : f32
    %568 = vector.broadcast %cst_257 : f32 to vector<16x1xf32>
    %569 = arith.addf %565, %568 : vector<16x1xf32>
    %570 = math.rsqrt %569 : vector<16x1xf32>
    %571 = vector.broadcast %570 : vector<16x1xf32> to vector<16x64xf32>
    %572 = arith.mulf %567, %571 : vector<16x64xf32>
    %c0_258 = arith.constant 0 : index
    %c0_259 = arith.constant 0 : index
    %573 = vector.load %arg8[%c0_258, %c0_259] : memref<1x64xf32, #tpu.memory_space<vmem>>, vector<1x64xf32>
    %574 = vector.broadcast %573 : vector<1x64xf32> to vector<16x64xf32>
    %575 = arith.mulf %572, %574 : vector<16x64xf32>
    %c0_260 = arith.constant 0 : index
    %c0_261 = arith.constant 0 : index
    %576 = vector.load %arg9[%c0_260, %c0_261] : memref<1x64xf32, #tpu.memory_space<vmem>>, vector<1x64xf32>
    %577 = vector.broadcast %576 : vector<1x64xf32> to vector<16x64xf32>
    %578 = arith.addf %575, %577 : vector<16x64xf32>
    %c0_262 = arith.constant 0 : index
    %c0_263 = arith.constant 0 : index
    %579 = vector.load %arg10[%c0_262, %c0_263] : memref<64x32xf32, #tpu.memory_space<vmem>>, vector<64x32xf32>
    %cst_264 = arith.constant dense<0.000000e+00> : vector<16x32xf32>
    %580 = tpu.matmul %578, %579, %cst_264 {dimension_numbers = #tpu.dot_dimension_numbers<[1], [0], [0], [1], [0, 0, 1, 1], [], []>} : vector<16x64xf32>, vector<64x32xf32>, vector<16x32xf32> -> vector<16x32xf32>
    %c0_265 = arith.constant 0 : index
    %c0_266 = arith.constant 0 : index
    %581 = vector.load %arg11[%c0_265, %c0_266] : memref<1x32xf32, #tpu.memory_space<vmem>>, vector<1x32xf32>
    %582 = vector.broadcast %581 : vector<1x32xf32> to vector<16x32xf32>
    %583 = arith.addf %580, %582 : vector<16x32xf32>
    %cst_267 = arith.constant 5.000000e-01 : f32
    %584 = vector.broadcast %cst_267 : f32 to vector<16x32xf32>
    %585 = arith.mulf %584, %583 : vector<16x32xf32>
    %cst_268 = arith.constant 0.707106769 : f32
    %586 = vector.broadcast %cst_268 : f32 to vector<16x32xf32>
    %587 = arith.mulf %583, %586 : vector<16x32xf32>
    %588 = math.erf %587 : vector<16x32xf32>
    %cst_269 = arith.constant 1.000000e+00 : f32
    %589 = vector.broadcast %cst_269 : f32 to vector<16x32xf32>
    %590 = arith.addf %589, %588 : vector<16x32xf32>
    %591 = arith.mulf %585, %590 : vector<16x32xf32>
    %c0_270 = arith.constant 0 : index
    %c0_271 = arith.constant 0 : index
    %592 = vector.load %arg12[%c0_270, %c0_271] : memref<32x32xf32, #tpu.memory_space<vmem>>, vector<32x32xf32>
    %cst_272 = arith.constant dense<0.000000e+00> : vector<16x32xf32>
    %593 = tpu.matmul %591, %592, %cst_272 {dimension_numbers = #tpu.dot_dimension_numbers<[1], [0], [0], [1], [0, 0, 1, 1], [], []>} : vector<16x32xf32>, vector<32x32xf32>, vector<16x32xf32> -> vector<16x32xf32>
    %c0_273 = arith.constant 0 : index
    %c0_274 = arith.constant 0 : index
    %594 = vector.load %arg13[%c0_273, %c0_274] : memref<1x32xf32, #tpu.memory_space<vmem>>, vector<1x32xf32>
    %595 = vector.broadcast %594 : vector<1x32xf32> to vector<16x32xf32>
    %596 = arith.addf %593, %595 : vector<16x32xf32>
    %c0_275 = arith.constant 0 : index
    %c0_276 = arith.constant 0 : index
    %597 = vector.load %arg14[%c0_275, %c0_276] : memref<16x32xf32, #tpu.memory_space<vmem>>, vector<16x32xf32>
    tpu.vector_store %arg14[%c0_275, %c0_276], %596 {strides = array<i32>} : memref<16x32xf32, #tpu.memory_space<vmem>>, vector<16x32xf32>,
    return
  }
}

</mosaic_0001>

<llo_original>
// kernel: titano_forward.1
$region0: #{titano_forward.1}
  #allocation0 [shape = 'u32[]', space=smem, size = 0x4, offset = 0x4, fixed_abs, tag = 'smem constant byte address 0x4 - core index']
  #allocation1 [shape = 'u32[144,128]{1,0:T(1,128)}', space=vmem, size = 0x12000, scoped, tag = 'internal scratch']
  #allocation2 [shape = 'f32[32,128]{1,0:T(8,128)}', space=vmem, size = 0x4000, scoped, tag = 'scratch operand']
  #allocation3 [shape = 'f32[16,64]{1,0:T(8,128)}', space=vmem, size = 0x2000, scoped, tag = 'scratch operand']
  #allocation4 [shape = 'f32[16,64]{1,0:T(8,128)}', space=vmem, size = 0x2000, scoped, tag = 'scratch operand']
  %s0 = inlined_call_operand.vmem [shape: s32[16,1], index: 0, kind: input, shape index: {}]
  %s1 = inlined_call_operand.vmem [shape: f32[32,16], index: 1, kind: input, shape index: {}]
  %s2 = inlined_call_operand.vmem [shape: f32[16,256], index: 2, kind: input, shape index: {}]
  %s3 = inlined_call_operand.vmem [shape: f32[32,256], index: 3, kind: input, shape index: {}]
  %s4 = inlined_call_operand.vmem [shape: f32[1,256], index: 4, kind: input, shape index: {}]
  %s5 = inlined_call_operand.vmem [shape: f32[64,256], index: 5, kind: input, shape index: {}]
  %s6 = inlined_call_operand.vmem [shape: f32[32,256], index: 6, kind: input, shape index: {}]
  %s7 = inlined_call_operand.vmem [shape: f32[1,256], index: 7, kind: input, shape index: {}]
  %s8 = inlined_call_operand.vmem [shape: f32[1,64], index: 8, kind: input, shape index: {}]
  %s9 = inlined_call_operand.vmem [shape: f32[1,64], index: 9, kind: input, shape index: {}]
  %s10 = inlined_call_operand.vmem [shape: f32[64,32], index: 10, kind: input, shape index: {}]
  %s11 = inlined_call_operand.vmem [shape: f32[1,32], index: 11, kind: input, shape index: {}]
  %s12 = inlined_call_operand.vmem [shape: f32[32,32], index: 12, kind: input, shape index: {}]
  %s13 = inlined_call_operand.vmem [shape: f32[1,32], index: 13, kind: input, shape index: {}]
  %s14 = inlined_call_operand.hbm [shape: f32[16,32], index: 14, kind: output, shape index: {}]
  %s15 = sld [smem:[#allocation0]]
  $region66: #{titano_forward.1} parent=0
    _
  %s17 = ssub.s32 1, %s15
  %s18 = scalar_select 0, %s17, %s15
  $region1: #{titano_forward.1} parent=0
    #allocation5 [shape = 'u8[8192]{0}', space=vmem, size = 0x2000, scoped, tag = 'output window, operand 0, single buffered']
    #allocation6 [shape = 's32[1]{0}', space=sflag, size = 0x4, scoped, tag = 'scoped memory for titano_forward.1']
    %19 = vsyncpa [#allocation6], 0
    // Predicated region
    $region2: #{titano_forward.1} parent=1 // pred_check
      _
    $region3: #{titano_forward.1} parent=1 // pred_check_branch
      %21 = sbr.rel (0) target = $region5
    $region4: #{titano_forward.1} parent=1 // pred_region
      _
    $region5: #{titano_forward.1} parent=1 // pred_fallthru
      _
    // Predicated region
    $region6: #{titano_forward.1} parent=1 // pred_check
      _
    $region7: #{titano_forward.1} parent=1 // pred_check_branch
      %23 = sbr.rel (0) target = $region9
    $region8: #{titano_forward.1} parent=1 // pred_region
      _
    $region9: #{titano_forward.1} parent=1 // pred_fallthru
      _
    // Predicated region
    $region10: #{titano_forward.1} parent=1 // pred_check
      _
    $region11: #{titano_forward.1} parent=1 // pred_check_branch
      %25 = sbr.rel (0) target = $region13
    $region12: #{titano_forward.1} parent=1 // pred_region
      _
    $region13: #{titano_forward.1} parent=1 // pred_fallthru
      _
    // Predicated region
    $region14: #{titano_forward.1} parent=1 // pred_check
      _
    $region15: #{titano_forward.1} parent=1 // pred_check_branch
      %27 = sbr.rel (0) target = $region17
    $region16: #{titano_forward.1} parent=1 // pred_region
      _
    $region17: #{titano_forward.1} parent=1 // pred_fallthru
      _
    // Predicated region
    $region18: #{titano_forward.1} parent=1 // pred_check
      _
    $region19: #{titano_forward.1} parent=1 // pred_check_branch
      %29 = sbr.rel (0) target = $region21
    $region20: #{titano_forward.1} parent=1 // pred_region
      _
    $region21: #{titano_forward.1} parent=1 // pred_fallthru
      _
    // Predicated region
    $region22: #{titano_forward.1} parent=1 // pred_check
      _
    $region23: #{titano_forward.1} parent=1 // pred_check_branch
      %31 = sbr.rel (0) target = $region25
    $region24: #{titano_forward.1} parent=1 // pred_region
      _
    $region25: #{titano_forward.1} parent=1 // pred_fallthru
      _
    // Predicated region
    $region26: #{titano_forward.1} parent=1 // pred_check
      _
    $region27: #{titano_forward.1} parent=1 // pred_check_branch
      %33 = sbr.rel (0) target = $region29
    $region28: #{titano_forward.1} parent=1 // pred_region
      _
    $region29: #{titano_forward.1} parent=1 // pred_fallthru
      _
    // Predicated region
    $region30: #{titano_forward.1} parent=1 // pred_check
      _
    $region31: #{titano_forward.1} parent=1 // pred_check_branch
      %35 = sbr.rel (0) target = $region33
    $region32: #{titano_forward.1} parent=1 // pred_region
      _
    $region33: #{titano_forward.1} parent=1 // pred_fallthru
      _
    // Predicated region
    $region34: #{titano_forward.1} parent=1 // pred_check
      _
    $region35: #{titano_forward.1} parent=1 // pred_check_branch
      %37 = sbr.rel (0) target = $region37
    $region36: #{titano_forward.1} parent=1 // pred_region
      _
    $region37: #{titano_forward.1} parent=1 // pred_fallthru
      _
    // Predicated region
    $region38: #{titano_forward.1} parent=1 // pred_check
      _
    $region39: #{titano_forward.1} parent=1 // pred_check_branch
      %39 = sbr.rel (0) target = $region41
    $region40: #{titano_forward.1} parent=1 // pred_region
      _
    $region41: #{titano_forward.1} parent=1 // pred_fallthru
      _
    // Predicated region
    $region42: #{titano_forward.1} parent=1 // pred_check
      _
    $region43: #{titano_forward.1} parent=1 // pred_check_branch
      %41 = sbr.rel (0) target = $region45
    $region44: #{titano_forward.1} parent=1 // pred_region
      _
    $region45: #{titano_forward.1} parent=1 // pred_fallthru
      _
    // Predicated region
    $region46: #{titano_forward.1} parent=1 // pred_check
      _
    $region47: #{titano_forward.1} parent=1 // pred_check_branch
      %43 = sbr.rel (0) target = $region49
    $region48: #{titano_forward.1} parent=1 // pred_region
      _
    $region49: #{titano_forward.1} parent=1 // pred_fallthru
      _
    // Predicated region
    $region50: #{titano_forward.1} parent=1 // pred_check
      _
    $region51: #{titano_forward.1} parent=1 // pred_check_branch
      %45 = sbr.rel (0) target = $region53
    $region52: #{titano_forward.1} parent=1 // pred_region
      _
    $region53: #{titano_forward.1} parent=1 // pred_fallthru
      _
    // Predicated region
    $region54: #{titano_forward.1} parent=1 // pred_check
      _
    $region55: #{titano_forward.1} parent=1 // pred_check_branch
      %47 = sbr.rel (0) target = $region57
    $region56: #{titano_forward.1} parent=1 // pred_region
      _
    $region57: #{titano_forward.1} parent=1 // pred_fallthru
      _
    %v48 = vld [vmem:[%s0] sm:$0xff]
    %v49 = vld [vmem:[%s0 + $0x8] sm:$0xff]
    %v50 = vlaneseq
    %v51 = vand.u32 %v50, 127
    %52 = vset.pattern.permute.xlu0 0
    %53 = vperm.xlu0 %52, %v48
    %v54 = vpop.permute.xlu0 %53
    %55 = vset.pattern.permute.xlu0 0
    %56 = vperm.xlu0 %55, %v49
    %v57 = vpop.permute.xlu0 %56
    %vm58 = vcmp.eq.s32.totalorder %v54, %v51
    %vm59 = vcmp.eq.s32.totalorder %v57, %v51
    %v60 = vsel %vm58, 1, 0
    %v61 = vsel %vm59, 1, 0
    %v62 = vcvt.s32.f32 %v60
    %v63 = vcvt.s32.f32 %v61
    %v64 = vld [vmem:[%s1] sm:$0xff]
    %v65 = vld [vmem:[%s1 + $0x8] sm:$0xff]
    %v66 = vld [vmem:[%s1 + $0x10] sm:$0xff]
    %v67 = vld [vmem:[%s1 + $0x18] sm:$0xff]
    %vm68 = vcmask 261120
    %v70 = vsel %vm68, %v62, 0
    %v73 = vsel %vm68, %v63, 0
    %75 = vmatprep.subr.mxu0 0.0
    %76 = vmatpush1.msra.mxu0 %v64
    %77 = vmatprep.subr.mxu0 0.0
    %78 = vmatpush1.msra.mxu0 %v65
    %79 = vmatprep.subr.mxu0 0.0
    %80 = vmatpush1.msra.mxu0 %v66
    %81 = vmatprep.subr.mxu0 0.0
    %82 = vmatpush1.msra.mxu0 %v67
    %83 = vmatprep.subr.mxu0 0.0
    %84 = vmatpush1.msra.mxu0 0.0
    %85 = vmatprep.subr.mxu0 0.0
    %86 = vmatpush1.msra.mxu0 0.0
    %87 = vmatprep.subr.mxu0 0.0
    %88 = vmatpush1.msra.mxu0 0.0
    %89 = vmatprep.subr.mxu0 0.0
    %90 = vmatpush1.msra.mxu0 0.0
    %91 = vmatprep.subr.mxu0 0.0
    %92 = vmatpush1.msra.mxu0 0.0
    %93 = vmatprep.subr.mxu0 0.0
    %94 = vmatpush1.msra.mxu0 0.0
    %95 = vmatprep.subr.mxu0 0.0
    %96 = vmatpush1.msra.mxu0 0.0
    %97 = vmatprep.subr.mxu0 0.0
    %98 = vmatpush1.msra.mxu0 0.0
    %99 = vmatprep.subr.mxu0 0.0
    %100 = vmatpush1.msra.mxu0 0.0
    %101 = vmatprep.subr.mxu0 0.0
    %102 = vmatpush1.msra.mxu0 0.0
    %103 = vmatprep.subr.mxu0 0.0
    %104 = vmatpush1.msra.mxu0 0.0
    %105 = vmatprep.subr.mxu0 0.0
    %106 = vmatpush1.msra.mxu0 0.0
    %107 = vmatprep.subr.mxu0 0.0
    %108 = vmatpush1.msra.mxu0 0.0
    %109 = vmatprep.subr.mxu0 0.0
    %110 = vmatpush1.msra.mxu0 0.0
    %111 = vmatprep.subr.mxu0 0.0
    %112 = vmatpush1.msra.mxu0 0.0
    %113 = vmatprep.subr.mxu0 0.0
    %114 = vmatpush1.msra.mxu0 0.0
    %115 = vmatprep.subr.mxu0 0.0
    %116 = vmatpush1.msra.mxu0 0.0
    %117 = vmatprep.subr.mxu0 0.0
    %118 = vmatpush1.msra.mxu0 0.0
    %119 = vmatprep.subr.mxu0 0.0
    %120 = vmatpush1.msra.mxu0 0.0
    %121 = vmatprep.subr.mxu0 0.0
    %122 = vmatpush1.msra.mxu0 0.0
    %123 = vmatprep.subr.mxu0 0.0
    %124 = vmatpush1.msra.mxu0 0.0
    %125 = vmatprep.subr.mxu0 0.0
    %126 = vmatpush1.msra.mxu0 0.0
    %127 = vmatprep.subr.mxu0 0.0
    %128 = vmatpush1.msra.mxu0 0.0
    %129 = vmatprep.subr.mxu0 0.0
    %130 = vmatpush1.msra.mxu0 0.0
    %131 = vmatprep.subr.mxu0 0.0
    %132 = vmatpush1.msra.mxu0 0.0
    %133 = vmatprep.subr.mxu0 0.0
    %134 = vmatpush1.msra.mxu0 0.0
    %135 = vmatprep.subr.mxu0 0.0
    %136 = vmatpush1.msra.mxu0 0.0
    %137 = vmatprep.subr.mxu0 0.0
    %138 = vmatpush1.msra.mxu0 0.0
    %139 = vmatprep.mubr.f32.mxu0 0.0
    %140 = vmatmul.mubr.f32.gmra.mrb[0].mxu0 %v70
    %v141 = vpop.f32.mrb[0].mxu0
    %v142 = vadd.f32 0.0, %v141
    %v143 = vpop.f32.mrb[0].mxu0
    %144 = vmatprep.mubr.f32.mxu0 0.0
    %145 = vmatmul.mubr.f32.gmra.mrb[0].mxu0 %v73
    %v146 = vpop.f32.mrb[0].mxu0
    %v147 = vadd.f32 0.0, %v146
    %v148 = vpop.f32.mrb[0].mxu0
    %149 = vdwg.mxu0
    %v150 = vlaneseq
    %v151 = vshrl.u32 %v150, 7
    %vm152 = vcmp.lt.s32.totalorder %v151, 2
    %v153 = vld [vmem:[%s2] sm:$0xff]
    %v154 = vld [vmem:[%s2 + $0x8] sm:$0xff]
    %v155 = vld [vmem:[%s2 + $0x10] sm:$0xff]
    %v156 = vld [vmem:[%s2 + $0x18] sm:$0xff]
    %v157 = vld [vmem:[%s4] sm:$0x3]
    %v159 = vlaneseq
    %v160 = vshrl.u32 %v159, 7
    %v161 = vsub.s32 0, %v160
    %v162 = vrot.slane %v157, %v161
    %v163 = vlaneseq
    %v164 = vshrl.u32 %v163, 7
    %v165 = vsub.s32 1, %v164
    %v166 = vrot.slane %v157, %v165
    %vm169 = vcmask 130048
    %v171 = vsel %vm169, %v142, 0
    %v174 = vsel %vm169, %v147, 0
    %176 = vmatprep.subr.mxu0 %v154
    %177 = vmatpush1.msra.mxu0 %v153
    %178 = vmatprep.subr.mxu0 %v156
    %179 = vmatpush1.msra.mxu0 %v155
    %180 = vmatprep.subr.mxu0 0.0
    %181 = vmatpush1.msra.mxu0 0.0
    %182 = vmatprep.subr.mxu0 0.0
    %183 = vmatpush1.msra.mxu0 0.0
    %184 = vmatprep.subr.mxu0 0.0
    %185 = vmatpush1.msra.mxu0 0.0
    %186 = vmatprep.subr.mxu0 0.0
    %187 = vmatpush1.msra.mxu0 0.0
    %188 = vmatprep.subr.mxu0 0.0
    %189 = vmatpush1.msra.mxu0 0.0
    %190 = vmatprep.subr.mxu0 0.0
    %191 = vmatpush1.msra.mxu0 0.0
    %192 = vmatprep.subr.mxu0 0.0
    %193 = vmatpush1.msra.mxu0 0.0
    %194 = vmatprep.subr.mxu0 0.0
    %195 = vmatpush1.msra.mxu0 0.0
    %196 = vmatprep.subr.mxu0 0.0
    %197 = vmatpush1.msra.mxu0 0.0
    %198 = vmatprep.subr.mxu0 0.0
    %199 = vmatpush1.msra.mxu0 0.0
    %200 = vmatprep.subr.mxu0 0.0
    %201 = vmatpush1.msra.mxu0 0.0
    %202 = vmatprep.subr.mxu0 0.0
    %203 = vmatpush1.msra.mxu0 0.0
    %204 = vmatprep.subr.mxu0 0.0
    %205 = vmatpush1.msra.mxu0 0.0
    %206 = vmatprep.subr.mxu0 0.0
    %207 = vmatpush1.msra.mxu0 0.0
    %208 = vmatprep.subr.mxu0 0.0
    %209 = vmatpush1.msra.mxu0 0.0
    %210 = vmatprep.subr.mxu0 0.0
    %211 = vmatpush1.msra.mxu0 0.0
    %212 = vmatprep.subr.mxu0 0.0
    %213 = vmatpush1.msra.mxu0 0.0
    %214 = vmatprep.subr.mxu0 0.0
    %215 = vmatpush1.msra.mxu0 0.0
    %216 = vmatprep.subr.mxu0 0.0
    %217 = vmatpush1.msra.mxu0 0.0
    %218 = vmatprep.subr.mxu0 0.0
    %219 = vmatpush1.msra.mxu0 0.0
    %220 = vmatprep.subr.mxu0 0.0
    %221 = vmatpush1.msra.mxu0 0.0
    %222 = vmatprep.subr.mxu0 0.0
    %223 = vmatpush1.msra.mxu0 0.0
    %224 = vmatprep.subr.mxu0 0.0
    %225 = vmatpush1.msra.mxu0 0.0
    %226 = vmatprep.subr.mxu0 0.0
    %227 = vmatpush1.msra.mxu0 0.0
    %228 = vmatprep.subr.mxu0 0.0
    %229 = vmatpush1.msra.mxu0 0.0
    %230 = vmatprep.subr.mxu0 0.0
    %231 = vmatpush1.msra.mxu0 0.0
    %232 = vmatprep.subr.mxu0 0.0
    %233 = vmatpush1.msra.mxu0 0.0
    %234 = vmatprep.subr.mxu0 0.0
    %235 = vmatpush1.msra.mxu0 0.0
    %236 = vmatprep.subr.mxu0 0.0
    %237 = vmatpush1.msra.mxu0 0.0
    %238 = vmatprep.subr.mxu0 0.0
    %239 = vmatpush1.msra.mxu0 0.0
    %240 = vmatprep.mubr.f32.mxu0 0.0
    %241 = vmatmul.mubr.f32.gmra.mrb[0].mxu0 %v171
    %v242 = vpop.f32.mrb[0].mxu0
    %v243 = vadd.f32 %v162, %v242
    %v244 = vpop.f32.mrb[0].mxu0
    %v245 = vadd.f32 %v166, %v244
    %246 = vmatprep.mubr.f32.mxu0 0.0
    %247 = vmatmul.mubr.f32.gmra.mrb[0].mxu0 %v174
    %v248 = vpop.f32.mrb[0].mxu0
    %v249 = vadd.f32 %v162, %v248
    %v250 = vpop.f32.mrb[0].mxu0
    %v251 = vadd.f32 %v166, %v250
    %252 = vdwg.mxu0
    %253 = vst [vmem:[#allocation2] sm:$0x3] %v243
    %254 = vst [vmem:[#allocation2 - $0x4] sm:$0xc0] %v251
    %255 = vst [vmem:[#allocation2 + $0x2] sm:$0xc] %v243
    %256 = vst [vmem:[#allocation2 + $0x2] sm:$0x30] %v251
    %257 = vst [vmem:[#allocation2 + $0x4] sm:$0x30] %v243
    %258 = vst [vmem:[#allocation2 + $0x8] sm:$0xc] %v251
    %259 = vst [vmem:[#allocation2 + $0x6] sm:$0xc0] %v243
    %260 = vst [vmem:[#allocation2 + $0xe] sm:$0x3] %v251
    %261 = vst [vmem:[#allocation2 + $0x10] sm:$0x3] %v249
    %262 = vst [vmem:[#allocation2 + $0xc] sm:$0xc0] %v245
    %263 = vst [vmem:[#allocation2 + $0x12] sm:$0xc] %v249
    %264 = vst [vmem:[#allocation2 + $0x12] sm:$0x30] %v245
    %265 = vst [vmem:[#allocation2 + $0x14] sm:$0x30] %v249
    %266 = vst [vmem:[#allocation2 + $0x18] sm:$0xc] %v245
    %267 = vst [vmem:[#allocation2 + $0x16] sm:$0xc0] %v249
    %268 = vst [vmem:[#allocation2 + $0x1e] sm:$0x3] %v245
    %v269 = vld [vmem:[#allocation2] sm:$0xf]
    %v270 = vld [vmem:[%s3] sm:$0xff]
    %v271 = vld [vmem:[%s3 + $0x8] sm:$0xff]
    %v272 = vld [vmem:[%s3 + $0x10] sm:$0xff]
    %v273 = vld [vmem:[%s3 + $0x18] sm:$0xff]
    %v274 = vld [vmem:[%s3 + $0x20] sm:$0xff]
    %v275 = vld [vmem:[%s3 + $0x28] sm:$0xff]
    %v276 = vld [vmem:[%s3 + $0x30] sm:$0xff]
    %v277 = vld [vmem:[%s3 + $0x38] sm:$0xff]
    %v279 = vsel %vm68, 0.0, 0
    %281 = vmatprep.subr.mxu0 %v271
    %282 = vmatpush1.msra.mxu0 %v270
    %283 = vmatprep.subr.mxu0 %v273
    %284 = vmatpush1.msra.mxu0 %v272
    %285 = vmatprep.subr.mxu0 %v275
    %286 = vmatpush1.msra.mxu0 %v274
    %287 = vmatprep.subr.mxu0 %v277
    %288 = vmatpush1.msra.mxu0 %v276
    %289 = vmatprep.subr.mxu0 0.0
    %290 = vmatpush1.msra.mxu0 0.0
    %291 = vmatprep.subr.mxu0 0.0
    %292 = vmatpush1.msra.mxu0 0.0
    %293 = vmatprep.subr.mxu0 0.0
    %294 = vmatpush1.msra.mxu0 0.0
    %295 = vmatprep.subr.mxu0 0.0
    %296 = vmatpush1.msra.mxu0 0.0
    %297 = vmatprep.subr.mxu0 0.0
    %298 = vmatpush1.msra.mxu0 0.0
    %299 = vmatprep.subr.mxu0 0.0
    %300 = vmatpush1.msra.mxu0 0.0
    %301 = vmatprep.subr.mxu0 0.0
    %302 = vmatpush1.msra.mxu0 0.0
    %303 = vmatprep.subr.mxu0 0.0
    %304 = vmatpush1.msra.mxu0 0.0
    %305 = vmatprep.subr.mxu0 0.0
    %306 = vmatpush1.msra.mxu0 0.0
    %307 = vmatprep.subr.mxu0 0.0
    %308 = vmatpush1.msra.mxu0 0.0
    %309 = vmatprep.subr.mxu0 0.0
    %310 = vmatpush1.msra.mxu0 0.0
    %311 = vmatprep.subr.mxu0 0.0
    %312 = vmatpush1.msra.mxu0 0.0
    %313 = vmatprep.subr.mxu0 0.0
    %314 = vmatpush1.msra.mxu0 0.0
    %315 = vmatprep.subr.mxu0 0.0
    %316 = vmatpush1.msra.mxu0 0.0
    %317 = vmatprep.subr.mxu0 0.0
    %318 = vmatpush1.msra.mxu0 0.0
    %319 = vmatprep.subr.mxu0 0.0
    %320 = vmatpush1.msra.mxu0 0.0
    %321 = vmatprep.subr.mxu0 0.0
    %322 = vmatpush1.msra.mxu0 0.0
    %323 = vmatprep.subr.mxu0 0.0
    %324 = vmatpush1.msra.mxu0 0.0
    %325 = vmatprep.subr.mxu0 0.0
    %326 = vmatpush1.msra.mxu0 0.0
    %327 = vmatprep.subr.mxu0 0.0
    %328 = vmatpush1.msra.mxu0 0.0
    %329 = vmatprep.subr.mxu0 0.0
    %330 = vmatpush1.msra.mxu0 0.0
    %331 = vmatprep.subr.mxu0 0.0
    %332 = vmatpush1.msra.mxu0 0.0
    %333 = vmatprep.subr.mxu0 0.0
    %334 = vmatpush1.msra.mxu0 0.0
    %335 = vmatprep.subr.mxu0 0.0
    %336 = vmatpush1.msra.mxu0 0.0
    %337 = vmatprep.subr.mxu0 0.0
    %338 = vmatpush1.msra.mxu0 0.0
    %339 = vmatprep.subr.mxu0 0.0
    %340 = vmatpush1.msra.mxu0 0.0
    %341 = vmatprep.subr.mxu0 0.0
    %342 = vmatpush1.msra.mxu0 0.0
    %343 = vmatprep.subr.mxu0 0.0
    %344 = vmatpush1.msra.mxu0 0.0
    %345 = vmatprep.mubr.f32.mxu0 0.0
    %346 = vmatmul.mubr.f32.gmra.mrb[0].mxu0 %v279
    %v347 = vpop.f32.mrb[0].mxu0
    %v348 = vadd.f32 0.0, %v347
    %v349 = vpop.f32.mrb[0].mxu0
    %v350 = vadd.f32 0.0, %v349
    %351 = vdwg.mxu0
    %v352 = vsel %vm152, %v348, %v350
    %v353 = vadd.f32 %v269, %v352
    %v354 = vxor.u32 %v353, 2147483648
    %v355 = vmul.f32 %v354, 1.442695
    %v356 = vpow.pop %v355
    %v357 = vadd.f32 %v356, 1.0
    %v358 = vrcp.pop %v357
    %v359 = vmul.f32 1.0, %v358
    %v360 = vtanh.pop %v353
    %v361 = vmul.f32 %v359, 0.0
    %363 = vrot.lane.b32.xlu0 %v360, 32
    %v364 = vpop.permute.xlu0 %363
    %v366 = vmul.f32 %v359, %v364
    %368 = vrot.lane.b32.xlu0 %v366, 32
    %v369 = vpop.permute.xlu0 %368
    %v371 = vadd.f32 %v361, %v369
    %v372 = vtanh.pop %v371
    %374 = vrot.lane.b32.xlu0 %v372, 32
    %v375 = vpop.permute.xlu0 %374
    %v377 = vmul.f32 %v359, %v375
    %379 = vrot.lane.b32.xlu0 %v377, 64
    %v380 = vpop.permute.xlu0 %379
    %vm382 = vcmask 254976
    %383 = vst.msk [vmem:[#allocation3] sm:$0x3] %vm382, %v380
    %384 = vrot.lane.b32.xlu0 %v377, 96
    %v385 = vpop.permute.xlu0 %384
    %vm387 = vcmask 519426
    %388 = vst.msk [vmem:[#allocation3 + $0xc] sm:$0xc] %vm387, %v385
    %v389 = vld [vmem:[#allocation2 + $0x4] sm:$0xf]
    %v390 = vld [vmem:[%s3] sm:$0xff]
    %v391 = vld [vmem:[%s3 + $0x8] sm:$0xff]
    %v392 = vld [vmem:[%s3 + $0x10] sm:$0xff]
    %v393 = vld [vmem:[%s3 + $0x18] sm:$0xff]
    %v394 = vld [vmem:[%s3 + $0x20] sm:$0xff]
    %v395 = vld [vmem:[%s3 + $0x28] sm:$0xff]
    %v396 = vld [vmem:[%s3 + $0x30] sm:$0xff]
    %v397 = vld [vmem:[%s3 + $0x38] sm:$0xff]
    %v398 = vsel %vm68, %v380, 0
    %400 = vmatprep.subr.mxu0 %v391
    %401 = vmatpush1.msra.mxu0 %v390
    %402 = vmatprep.subr.mxu0 %v393
    %403 = vmatpush1.msra.mxu0 %v392
    %404 = vmatprep.subr.mxu0 %v395
    %405 = vmatpush1.msra.mxu0 %v394
    %406 = vmatprep.subr.mxu0 %v397
    %407 = vmatpush1.msra.mxu0 %v396
    %408 = vmatprep.subr.mxu0 0.0
    %409 = vmatpush1.msra.mxu0 0.0
    %410 = vmatprep.subr.mxu0 0.0
    %411 = vmatpush1.msra.mxu0 0.0
    %412 = vmatprep.subr.mxu0 0.0
    %413 = vmatpush1.msra.mxu0 0.0
    %414 = vmatprep.subr.mxu0 0.0
    %415 = vmatpush1.msra.mxu0 0.0
    %416 = vmatprep.subr.mxu0 0.0
    %417 = vmatpush1.msra.mxu0 0.0
    %418 = vmatprep.subr.mxu0 0.0
    %419 = vmatpush1.msra.mxu0 0.0
    %420 = vmatprep.subr.mxu0 0.0
    %421 = vmatpush1.msra.mxu0 0.0
    %422 = vmatprep.subr.mxu0 0.0
    %423 = vmatpush1.msra.mxu0 0.0
    %424 = vmatprep.subr.mxu0 0.0
    %425 = vmatpush1.msra.mxu0 0.0
    %426 = vmatprep.subr.mxu0 0.0
    %427 = vmatpush1.msra.mxu0 0.0
    %428 = vmatprep.subr.mxu0 0.0
    %429 = vmatpush1.msra.mxu0 0.0
    %430 = vmatprep.subr.mxu0 0.0
    %431 = vmatpush1.msra.mxu0 0.0
    %432 = vmatprep.subr.mxu0 0.0
    %433 = vmatpush1.msra.mxu0 0.0
    %434 = vmatprep.subr.mxu0 0.0
    %435 = vmatpush1.msra.mxu0 0.0
    %436 = vmatprep.subr.mxu0 0.0
    %437 = vmatpush1.msra.mxu0 0.0
    %438 = vmatprep.subr.mxu0 0.0
    %439 = vmatpush1.msra.mxu0 0.0
    %440 = vmatprep.subr.mxu0 0.0
    %441 = vmatpush1.msra.mxu0 0.0
    %442 = vmatprep.subr.mxu0 0.0
    %443 = vmatpush1.msra.mxu0 0.0
    %444 = vmatprep.subr.mxu0 0.0
    %445 = vmatpush1.msra.mxu0 0.0
    %446 = vmatprep.subr.mxu0 0.0
    %447 = vmatpush1.msra.mxu0 0.0
    %448 = vmatprep.subr.mxu0 0.0
    %449 = vmatpush1.msra.mxu0 0.0
    %450 = vmatprep.subr.mxu0 0.0
    %451 = vmatpush1.msra.mxu0 0.0
    %452 = vmatprep.subr.mxu0 0.0
    %453 = vmatpush1.msra.mxu0 0.0
    %454 = vmatprep.subr.mxu0 0.0
    %455 = vmatpush1.msra.mxu0 0.0
    %456 = vmatprep.subr.mxu0 0.0
    %457 = vmatpush1.msra.mxu0 0.0
    %458 = vmatprep.subr.mxu0 0.0
    %459 = vmatpush1.msra.mxu0 0.0
    %460 = vmatprep.subr.mxu0 0.0
    %461 = vmatpush1.msra.mxu0 0.0
    %462 = vmatprep.subr.mxu0 0.0
    %463 = vmatpush1.msra.mxu0 0.0
    %464 = vmatprep.mubr.f32.mxu0 0.0
    %465 = vmatmul.mubr.f32.gmra.mrb[0].mxu0 %v398
    %v466 = vpop.f32.mrb[0].mxu0
    %v467 = vadd.f32 0.0, %v466
    %v468 = vpop.f32.mrb[0].mxu0
    %v469 = vadd.f32 0.0, %v468
    %470 = vdwg.mxu0
    %v471 = vsel %vm152, %v467, %v469
    %v472 = vadd.f32 %v389, %v471
    %v473 = vxor.u32 %v472, 2147483648
    %v474 = vmul.f32 %v473, 1.442695
    %v475 = vpow.pop %v474
    %v476 = vadd.f32 %v475, 1.0
    %v477 = vrcp.pop %v476
    %v478 = vmul.f32 1.0, %v477
    %v479 = vtanh.pop %v472
    %v480 = vmul.f32 %v478, %v371
    %482 = vrot.lane.b32.xlu0 %v479, 32
    %v483 = vpop.permute.xlu0 %482
    %v485 = vmul.f32 %v478, %v483
    %487 = vrot.lane.b32.xlu0 %v485, 32
    %v488 = vpop.permute.xlu0 %487
    %v490 = vadd.f32 %v480, %v488
    %v491 = vtanh.pop %v490
    %493 = vrot.lane.b32.xlu0 %v491, 32
    %v494 = vpop.permute.xlu0 %493
    %v496 = vmul.f32 %v478, %v494
    %498 = vrot.lane.b32.xlu0 %v496, 64
    %v499 = vpop.permute.xlu0 %498
    %501 = vst.msk [vmem:[#allocation3 + $0x2] sm:$0x3] %vm382, %v499
    %502 = vrot.lane.b32.xlu0 %v496, 96
    %v503 = vpop.permute.xlu0 %502
    %505 = vst.msk [vmem:[#allocation3 + $0xa] sm:$0xc] %vm387, %v503
    %v506 = vld [vmem:[#allocation2 + $0x8] sm:$0xf]
    %v507 = vld [vmem:[%s3] sm:$0xff]
    %v508 = vld [vmem:[%s3 + $0x8] sm:$0xff]
    %v509 = vld [vmem:[%s3 + $0x10] sm:$0xff]
    %v510 = vld [vmem:[%s3 + $0x18] sm:$0xff]
    %v511 = vld [vmem:[%s3 + $0x20] sm:$0xff]
    %v512 = vld [vmem:[%s3 + $0x28] sm:$0xff]
    %v513 = vld [vmem:[%s3 + $0x30] sm:$0xff]
    %v514 = vld [vmem:[%s3 + $0x38] sm:$0xff]
    %v515 = vsel %vm68, %v499, 0
    %517 = vmatprep.subr.mxu0 %v508
    %518 = vmatpush1.msra.mxu0 %v507
    %519 = vmatprep.subr.mxu0 %v510
    %520 = vmatpush1.msra.mxu0 %v509
    %521 = vmatprep.subr.mxu0 %v512
    %522 = vmatpush1.msra.mxu0 %v511
    %523 = vmatprep.subr.mxu0 %v514
    %524 = vmatpush1.msra.mxu0 %v513
    %525 = vmatprep.subr.mxu0 0.0
    %526 = vmatpush1.msra.mxu0 0.0
    %527 = vmatprep.subr.mxu0 0.0
    %528 = vmatpush1.msra.mxu0 0.0
    %529 = vmatprep.subr.mxu0 0.0
    %530 = vmatpush1.msra.mxu0 0.0
    %531 = vmatprep.subr.mxu0 0.0
    %532 = vmatpush1.msra.mxu0 0.0
    %533 = vmatprep.subr.mxu0 0.0
    %534 = vmatpush1.msra.mxu0 0.0
    %535 = vmatprep.subr.mxu0 0.0
    %536 = vmatpush1.msra.mxu0 0.0
    %537 = vmatprep.subr.mxu0 0.0
    %538 = vmatpush1.msra.mxu0 0.0
    %539 = vmatprep.subr.mxu0 0.0
    %540 = vmatpush1.msra.mxu0 0.0
    %541 = vmatprep.subr.mxu0 0.0
    %542 = vmatpush1.msra.mxu0 0.0
    %543 = vmatprep.subr.mxu0 0.0
    %544 = vmatpush1.msra.mxu0 0.0
    %545 = vmatprep.subr.mxu0 0.0
    %546 = vmatpush1.msra.mxu0 0.0
    %547 = vmatprep.subr.mxu0 0.0
    %548 = vmatpush1.msra.mxu0 0.0
    %549 = vmatprep.subr.mxu0 0.0
    %550 = vmatpush1.msra.mxu0 0.0
    %551 = vmatprep.subr.mxu0 0.0
    %552 = vmatpush1.msra.mxu0 0.0
    %553 = vmatprep.subr.mxu0 0.0
    %554 = vmatpush1.msra.mxu0 0.0
    %555 = vmatprep.subr.mxu0 0.0
    %556 = vmatpush1.msra.mxu0 0.0
    %557 = vmatprep.subr.mxu0 0.0
    %558 = vmatpush1.msra.mxu0 0.0
    %559 = vmatprep.subr.mxu0 0.0
    %560 = vmatpush1.msra.mxu0 0.0
    %561 = vmatprep.subr.mxu0 0.0
    %562 = vmatpush1.msra.mxu0 0.0
    %563 = vmatprep.subr.mxu0 0.0
    %564 = vmatpush1.msra.mxu0 0.0
    %565 = vmatprep.subr.mxu0 0.0
    %566 = vmatpush1.msra.mxu0 0.0
    %567 = vmatprep.subr.mxu0 0.0
    %568 = vmatpush1.msra.mxu0 0.0
    %569 = vmatprep.subr.mxu0 0.0
    %570 = vmatpush1.msra.mxu0 0.0
    %571 = vmatprep.subr.mxu0 0.0
    %572 = vmatpush1.msra.mxu0 0.0
    %573 = vmatprep.subr.mxu0 0.0
    %574 = vmatpush1.msra.mxu0 0.0
    %575 = vmatprep.subr.mxu0 0.0
    %576 = vmatpush1.msra.mxu0 0.0
    %577 = vmatprep.subr.mxu0 0.0
    %578 = vmatpush1.msra.mxu0 0.0
    %579 = vmatprep.subr.mxu0 0.0
    %580 = vmatpush1.msra.mxu0 0.0
    %581 = vmatprep.mubr.f32.mxu0 0.0
    %582 = vmatmul.mubr.f32.gmra.mrb[0].mxu0 %v515
    %v583 = vpop.f32.mrb[0].mxu0
    %v584 = vadd.f32 0.0, %v583
    %v585 = vpop.f32.mrb[0].mxu0
    %v586 = vadd.f32 0.0, %v585
    %587 = vdwg.mxu0
    %v588 = vsel %vm152, %v584, %v586
    %v589 = vadd.f32 %v506, %v588
    %v590 = vxor.u32 %v589, 2147483648
    %v591 = vmul.f32 %v590, 1.442695
    %v592 = vpow.pop %v591
    %v593 = vadd.f32 %v592, 1.0
    %v594 = vrcp.pop %v593
    %v595 = vmul.f32 1.0, %v594
    %v596 = vtanh.pop %v589
    %v597 = vmul.f32 %v595, %v490
    %599 = vrot.lane.b32.xlu0 %v596, 32
    %v600 = vpop.permute.xlu0 %599
    %v602 = vmul.f32 %v595, %v600
    %604 = vrot.lane.b32.xlu0 %v602, 32
    %v605 = vpop.permute.xlu0 %604
    %v607 = vadd.f32 %v597, %v605
    %v608 = vtanh.pop %v607
    %610 = vrot.lane.b32.xlu0 %v608, 32
    %v611 = vpop.permute.xlu0 %610
    %v613 = vmul.f32 %v595, %v611
    %615 = vrot.lane.b32.xlu0 %v613, 64
    %v616 = vpop.permute.xlu0 %615
    %618 = vst.msk [vmem:[#allocation3 + $0x4] sm:$0x3] %vm382, %v616
    %619 = vrot.lane.b32.xlu0 %v613, 96
    %v620 = vpop.permute.xlu0 %619
    %622 = vst.msk [vmem:[#allocation3 + $0x8] sm:$0xc] %vm387, %v620
    %v623 = vld [vmem:[#allocation2 + $0xc] sm:$0xf]
    %v624 = vld [vmem:[%s3] sm:$0xff]
    %v625 = vld [vmem:[%s3 + $0x8] sm:$0xff]
    %v626 = vld [vmem:[%s3 + $0x10] sm:$0xff]
    %v627 = vld [vmem:[%s3 + $0x18] sm:$0xff]
    %v628 = vld [vmem:[%s3 + $0x20] sm:$0xff]
    %v629 = vld [vmem:[%s3 + $0x28] sm:$0xff]
    %v630 = vld [vmem:[%s3 + $0x30] sm:$0xff]
    %v631 = vld [vmem:[%s3 + $0x38] sm:$0xff]
    %v632 = vsel %vm68, %v616, 0
    %634 = vmatprep.subr.mxu0 %v625
    %635 = vmatpush1.msra.mxu0 %v624
    %636 = vmatprep.subr.mxu0 %v627
    %637 = vmatpush1.msra.mxu0 %v626
    %638 = vmatprep.subr.mxu0 %v629
    %639 = vmatpush1.msra.mxu0 %v628
    %640 = vmatprep.subr.mxu0 %v631
    %641 = vmatpush1.msra.mxu0 %v630
    %642 = vmatprep.subr.mxu0 0.0
    %643 = vmatpush1.msra.mxu0 0.0
    %644 = vmatprep.subr.mxu0 0.0
    %645 = vmatpush1.msra.mxu0 0.0
    %646 = vmatprep.subr.mxu0 0.0
    %647 = vmatpush1.msra.mxu0 0.0
    %648 = vmatprep.subr.mxu0 0.0
    %649 = vmatpush1.msra.mxu0 0.0
    %650 = vmatprep.subr.mxu0 0.0
    %651 = vmatpush1.msra.mxu0 0.0
    %652 = vmatprep.subr.mxu0 0.0
    %653 = vmatpush1.msra.mxu0 0.0
    %654 = vmatprep.subr.mxu0 0.0
    %655 = vmatpush1.msra.mxu0 0.0
    %656 = vmatprep.subr.mxu0 0.0
    %657 = vmatpush1.msra.mxu0 0.0
    %658 = vmatprep.subr.mxu0 0.0
    %659 = vmatpush1.msra.mxu0 0.0
    %660 = vmatprep.subr.mxu0 0.0
    %661 = vmatpush1.msra.mxu0 0.0
    %662 = vmatprep.subr.mxu0 0.0
    %663 = vmatpush1.msra.mxu0 0.0
    %664 = vmatprep.subr.mxu0 0.0
    %665 = vmatpush1.msra.mxu0 0.0
    %666 = vmatprep.subr.mxu0 0.0
    %667 = vmatpush1.msra.mxu0 0.0
    %668 = vmatprep.subr.mxu0 0.0
    %669 = vmatpush1.msra.mxu0 0.0
    %670 = vmatprep.subr.mxu0 0.0
    %671 = vmatpush1.msra.mxu0 0.0
    %672 = vmatprep.subr.mxu0 0.0
    %673 = vmatpush1.msra.mxu0 0.0
    %674 = vmatprep.subr.mxu0 0.0
    %675 = vmatpush1.msra.mxu0 0.0
    %676 = vmatprep.subr.mxu0 0.0
    %677 = vmatpush1.msra.mxu0 0.0
    %678 = vmatprep.subr.mxu0 0.0
    %679 = vmatpush1.msra.mxu0 0.0
    %680 = vmatprep.subr.mxu0 0.0
    %681 = vmatpush1.msra.mxu0 0.0
    %682 = vmatprep.subr.mxu0 0.0
    %683 = vmatpush1.msra.mxu0 0.0
    %684 = vmatprep.subr.mxu0 0.0
    %685 = vmatpush1.msra.mxu0 0.0
    %686 = vmatprep.subr.mxu0 0.0
    %687 = vmatpush1.msra.mxu0 0.0
    %688 = vmatprep.subr.mxu0 0.0
    %689 = vmatpush1.msra.mxu0 0.0
    %690 = vmatprep.subr.mxu0 0.0
    %691 = vmatpush1.msra.mxu0 0.0
    %692 = vmatprep.subr.mxu0 0.0
    %693 = vmatpush1.msra.mxu0 0.0
    %694 = vmatprep.subr.mxu0 0.0
    %695 = vmatpush1.msra.mxu0 0.0
    %696 = vmatprep.subr.mxu0 0.0
    %697 = vmatpush1.msra.mxu0 0.0
    %698 = vmatprep.mubr.f32.mxu0 0.0
    %699 = vmatmul.mubr.f32.gmra.mrb[0].mxu0 %v632
    %v700 = vpop.f32.mrb[0].mxu0
    %v701 = vadd.f32 0.0, %v700
    %v702 = vpop.f32.mrb[0].mxu0
    %v703 = vadd.f32 0.0, %v702
    %704 = vdwg.mxu0
    %v705 = vsel %vm152, %v701, %v703
    %v706 = vadd.f32 %v623, %v705
    %v707 = vxor.u32 %v706, 2147483648
    %v708 = vmul.f32 %v707, 1.442695
    %v709 = vpow.pop %v708
    %v710 = vadd.f32 %v709, 1.0
    %v711 = vrcp.pop %v710
    %v712 = vmul.f32 1.0, %v711
    %v713 = vtanh.pop %v706
    %v714 = vmul.f32 %v712, %v607
    %716 = vrot.lane.b32.xlu0 %v713, 32
    %v717 = vpop.permute.xlu0 %716
    %v719 = vmul.f32 %v712, %v717
    %721 = vrot.lane.b32.xlu0 %v719, 32
    %v722 = vpop.permute.xlu0 %721
    %v724 = vadd.f32 %v714, %v722
    %v725 = vtanh.pop %v724
    %727 = vrot.lane.b32.xlu0 %v725, 32
    %v728 = vpop.permute.xlu0 %727
    %v730 = vmul.f32 %v712, %v728
    %732 = vrot.lane.b32.xlu0 %v730, 64
    %v733 = vpop.permute.xlu0 %732
    %735 = vst.msk [vmem:[#allocation3 + $0x6] sm:$0x3] %vm382, %v733
    %736 = vrot.lane.b32.xlu0 %v730, 96
    %v737 = vpop.permute.xlu0 %736
    %739 = vst.msk [vmem:[#allocation3 + $0x6] sm:$0xc] %vm387, %v737
    %v740 = vld [vmem:[#allocation2 + $0x10] sm:$0xf]
    %v741 = vld [vmem:[%s3] sm:$0xff]
    %v742 = vld [vmem:[%s3 + $0x8] sm:$0xff]
    %v743 = vld [vmem:[%s3 + $0x10] sm:$0xff]
    %v744 = vld [vmem:[%s3 + $0x18] sm:$0xff]
    %v745 = vld [vmem:[%s3 + $0x20] sm:$0xff]
    %v746 = vld [vmem:[%s3 + $0x28] sm:$0xff]
    %v747 = vld [vmem:[%s3 + $0x30] sm:$0xff]
    %v748 = vld [vmem:[%s3 + $0x38] sm:$0xff]
    %v749 = vsel %vm68, %v733, 0
    %751 = vmatprep.subr.mxu0 %v742
    %752 = vmatpush1.msra.mxu0 %v741
    %753 = vmatprep.subr.mxu0 %v744
    %754 = vmatpush1.msra.mxu0 %v743
    %755 = vmatprep.subr.mxu0 %v746
    %756 = vmatpush1.msra.mxu0 %v745
    %757 = vmatprep.subr.mxu0 %v748
    %758 = vmatpush1.msra.mxu0 %v747
    %759 = vmatprep.subr.mxu0 0.0
    %760 = vmatpush1.msra.mxu0 0.0
    %761 = vmatprep.subr.mxu0 0.0
    %762 = vmatpush1.msra.mxu0 0.0
    %763 = vmatprep.subr.mxu0 0.0
    %764 = vmatpush1.msra.mxu0 0.0
    %765 = vmatprep.subr.mxu0 0.0
    %766 = vmatpush1.msra.mxu0 0.0
    %767 = vmatprep.subr.mxu0 0.0
    %768 = vmatpush1.msra.mxu0 0.0
    %769 = vmatprep.subr.mxu0 0.0
    %770 = vmatpush1.msra.mxu0 0.0
    %771 = vmatprep.subr.mxu0 0.0
    %772 = vmatpush1.msra.mxu0 0.0
    %773 = vmatprep.subr.mxu0 0.0
    %774 = vmatpush1.msra.mxu0 0.0
    %775 = vmatprep.subr.mxu0 0.0
    %776 = vmatpush1.msra.mxu0 0.0
    %777 = vmatprep.subr.mxu0 0.0
    %778 = vmatpush1.msra.mxu0 0.0
    %779 = vmatprep.subr.mxu0 0.0
    %780 = vmatpush1.msra.mxu0 0.0
    %781 = vmatprep.subr.mxu0 0.0
    %782 = vmatpush1.msra.mxu0 0.0
    %783 = vmatprep.subr.mxu0 0.0
    %784 = vmatpush1.msra.mxu0 0.0
    %785 = vmatprep.subr.mxu0 0.0
    %786 = vmatpush1.msra.mxu0 0.0
    %787 = vmatprep.subr.mxu0 0.0
    %788 = vmatpush1.msra.mxu0 0.0
    %789 = vmatprep.subr.mxu0 0.0
    %790 = vmatpush1.msra.mxu0 0.0
    %791 = vmatprep.subr.mxu0 0.0
    %792 = vmatpush1.msra.mxu0 0.0
    %793 = vmatprep.subr.mxu0 0.0
    %794 = vmatpush1.msra.mxu0 0.0
    %795 = vmatprep.subr.mxu0 0.0
    %796 = vmatpush1.msra.mxu0 0.0
    %797 = vmatprep.subr.mxu0 0.0
    %798 = vmatpush1.msra.mxu0 0.0
    %799 = vmatprep.subr.mxu0 0.0
    %800 = vmatpush1.msra.mxu0 0.0
    %801 = vmatprep.subr.mxu0 0.0
    %802 = vmatpush1.msra.mxu0 0.0
    %803 = vmatprep.subr.mxu0 0.0
    %804 = vmatpush1.msra.mxu0 0.0
    %805 = vmatprep.subr.mxu0 0.0
    %806 = vmatpush1.msra.mxu0 0.0
    %807 = vmatprep.subr.mxu0 0.0
    %808 = vmatpush1.msra.mxu0 0.0
    %809 = vmatprep.subr.mxu0 0.0
    %810 = vmatpush1.msra.mxu0 0.0
    %811 = vmatprep.subr.mxu0 0.0
    %812 = vmatpush1.msra.mxu0 0.0
    %813 = vmatprep.subr.mxu0 0.0
    %814 = vmatpush1.msra.mxu0 0.0
    %815 = vmatprep.mubr.f32.mxu0 0.0
    %816 = vmatmul.mubr.f32.gmra.mrb[0].mxu0 %v749
    %v817 = vpop.f32.mrb[0].mxu0
    %v818 = vadd.f32 0.0, %v817
    %v819 = vpop.f32.mrb[0].mxu0
    %v820 = vadd.f32 0.0, %v819
    %821 = vdwg.mxu0
    %v822 = vsel %vm152, %v818, %v820
    %v823 = vadd.f32 %v740, %v822
    %v824 = vxor.u32 %v823, 2147483648
    %v825 = vmul.f32 %v824, 1.442695
    %v826 = vpow.pop %v825
    %v827 = vadd.f32 %v826, 1.0
    %v828 = vrcp.pop %v827
    %v829 = vmul.f32 1.0, %v828
    %v830 = vtanh.pop %v823
    %v831 = vmul.f32 %v829, %v724
    %833 = vrot.lane.b32.xlu0 %v830, 32
    %v834 = vpop.permute.xlu0 %833
    %v836 = vmul.f32 %v829, %v834
    %838 = vrot.lane.b32.xlu0 %v836, 32
    %v839 = vpop.permute.xlu0 %838
    %v841 = vadd.f32 %v831, %v839
    %v842 = vtanh.pop %v841
    %844 = vrot.lane.b32.xlu0 %v842, 32
    %v845 = vpop.permute.xlu0 %844
    %v847 = vmul.f32 %v829, %v845
    %849 = vrot.lane.b32.xlu0 %v847, 64
    %v850 = vpop.permute.xlu0 %849
    %852 = vst.msk [vmem:[#allocation3 + $0x8] sm:$0x3] %vm382, %v850
    %853 = vrot.lane.b32.xlu0 %v847, 96
    %v854 = vpop.permute.xlu0 %853
    %856 = vst.msk [vmem:[#allocation3 + $0x4] sm:$0xc] %vm387, %v854
    %v857 = vld [vmem:[#allocation2 + $0x14] sm:$0xf]
    %v858 = vld [vmem:[%s3] sm:$0xff]
    %v859 = vld [vmem:[%s3 + $0x8] sm:$0xff]
    %v860 = vld [vmem:[%s3 + $0x10] sm:$0xff]
    %v861 = vld [vmem:[%s3 + $0x18] sm:$0xff]
    %v862 = vld [vmem:[%s3 + $0x20] sm:$0xff]
    %v863 = vld [vmem:[%s3 + $0x28] sm:$0xff]
    %v864 = vld [vmem:[%s3 + $0x30] sm:$0xff]
    %v865 = vld [vmem:[%s3 + $0x38] sm:$0xff]
    %v866 = vsel %vm68, %v850, 0
    %868 = vmatprep.subr.mxu0 %v859
    %869 = vmatpush1.msra.mxu0 %v858
    %870 = vmatprep.subr.mxu0 %v861
    %871 = vmatpush1.msra.mxu0 %v860
    %872 = vmatprep.subr.mxu0 %v863
    %873 = vmatpush1.msra.mxu0 %v862
    %874 = vmatprep.subr.mxu0 %v865
    %875 = vmatpush1.msra.mxu0 %v864
    %876 = vmatprep.subr.mxu0 0.0
    %877 = vmatpush1.msra.mxu0 0.0
    %878 = vmatprep.subr.mxu0 0.0
    %879 = vmatpush1.msra.mxu0 0.0
    %880 = vmatprep.subr.mxu0 0.0
    %881 = vmatpush1.msra.mxu0 0.0
    %882 = vmatprep.subr.mxu0 0.0
    %883 = vmatpush1.msra.mxu0 0.0
    %884 = vmatprep.subr.mxu0 0.0
    %885 = vmatpush1.msra.mxu0 0.0
    %886 = vmatprep.subr.mxu0 0.0
    %887 = vmatpush1.msra.mxu0 0.0
    %888 = vmatprep.subr.mxu0 0.0
    %889 = vmatpush1.msra.mxu0 0.0
    %890 = vmatprep.subr.mxu0 0.0
    %891 = vmatpush1.msra.mxu0 0.0
    %892 = vmatprep.subr.mxu0 0.0
    %893 = vmatpush1.msra.mxu0 0.0
    %894 = vmatprep.subr.mxu0 0.0
    %895 = vmatpush1.msra.mxu0 0.0
    %896 = vmatprep.subr.mxu0 0.0
    %897 = vmatpush1.msra.mxu0 0.0
    %898 = vmatprep.subr.mxu0 0.0
    %899 = vmatpush1.msra.mxu0 0.0
    %900 = vmatprep.subr.mxu0 0.0
    %901 = vmatpush1.msra.mxu0 0.0
    %902 = vmatprep.subr.mxu0 0.0
    %903 = vmatpush1.msra.mxu0 0.0
    %904 = vmatprep.subr.mxu0 0.0
    %905 = vmatpush1.msra.mxu0 0.0
    %906 = vmatprep.subr.mxu0 0.0
    %907 = vmatpush1.msra.mxu0 0.0
    %908 = vmatprep.subr.mxu0 0.0
    %909 = vmatpush1.msra.mxu0 0.0
    %910 = vmatprep.subr.mxu0 0.0
    %911 = vmatpush1.msra.mxu0 0.0
    %912 = vmatprep.subr.mxu0 0.0
    %913 = vmatpush1.msra.mxu0 0.0
    %914 = vmatprep.subr.mxu0 0.0
    %915 = vmatpush1.msra.mxu0 0.0
    %916 = vmatprep.subr.mxu0 0.0
    %917 = vmatpush1.msra.mxu0 0.0
    %918 = vmatprep.subr.mxu0 0.0
    %919 = vmatpush1.msra.mxu0 0.0
    %920 = vmatprep.subr.mxu0 0.0
    %921 = vmatpush1.msra.mxu0 0.0
    %922 = vmatprep.subr.mxu0 0.0
    %923 = vmatpush1.msra.mxu0 0.0
    %924 = vmatprep.subr.mxu0 0.0
    %925 = vmatpush1.msra.mxu0 0.0
    %926 = vmatprep.subr.mxu0 0.0
    %927 = vmatpush1.msra.mxu0 0.0
    %928 = vmatprep.subr.mxu0 0.0
    %929 = vmatpush1.msra.mxu0 0.0
    %930 = vmatprep.subr.mxu0 0.0
    %931 = vmatpush1.msra.mxu0 0.0
    %932 = vmatprep.mubr.f32.mxu0 0.0
    %933 = vmatmul.mubr.f32.gmra.mrb[0].mxu0 %v866
    %v934 = vpop.f32.mrb[0].mxu0
    %v935 = vadd.f32 0.0, %v934
    %v936 = vpop.f32.mrb[0].mxu0
    %v937 = vadd.f32 0.0, %v936
    %938 = vdwg.mxu0
    %v939 = vsel %vm152, %v935, %v937
    %v940 = vadd.f32 %v857, %v939
    %v941 = vxor.u32 %v940, 2147483648
    %v942 = vmul.f32 %v941, 1.442695
    %v943 = vpow.pop %v942
    %v944 = vadd.f32 %v943, 1.0
    %v945 = vrcp.pop %v944
    %v946 = vmul.f32 1.0, %v945
    %v947 = vtanh.pop %v940
    %v948 = vmul.f32 %v946, %v841
    %950 = vrot.lane.b32.xlu0 %v947, 32
    %v951 = vpop.permute.xlu0 %950
    %v953 = vmul.f32 %v946, %v951
    %955 = vrot.lane.b32.xlu0 %v953, 32
    %v956 = vpop.permute.xlu0 %955
    %v958 = vadd.f32 %v948, %v956
    %v959 = vtanh.pop %v958
    %961 = vrot.lane.b32.xlu0 %v959, 32
    %v962 = vpop.permute.xlu0 %961
    %v964 = vmul.f32 %v946, %v962
    %966 = vrot.lane.b32.xlu0 %v964, 64
    %v967 = vpop.permute.xlu0 %966
    %969 = vst.msk [vmem:[#allocation3 + $0xa] sm:$0x3] %vm382, %v967
    %970 = vrot.lane.b32.xlu0 %v964, 96
    %v971 = vpop.permute.xlu0 %970
    %973 = vst.msk [vmem:[#allocation3 + $0x2] sm:$0xc] %vm387, %v971
    %v974 = vld [vmem:[#allocation2 + $0x18] sm:$0xf]
    %v975 = vld [vmem:[%s3] sm:$0xff]
    %v976 = vld [vmem:[%s3 + $0x8] sm:$0xff]
    %v977 = vld [vmem:[%s3 + $0x10] sm:$0xff]
    %v978 = vld [vmem:[%s3 + $0x18] sm:$0xff]
    %v979 = vld [vmem:[%s3 + $0x20] sm:$0xff]
    %v980 = vld [vmem:[%s3 + $0x28] sm:$0xff]
    %v981 = vld [vmem:[%s3 + $0x30] sm:$0xff]
    %v982 = vld [vmem:[%s3 + $0x38] sm:$0xff]
    %v983 = vsel %vm68, %v967, 0
    %985 = vmatprep.subr.mxu0 %v976
    %986 = vmatpush1.msra.mxu0 %v975
    %987 = vmatprep.subr.mxu0 %v978
    %988 = vmatpush1.msra.mxu0 %v977
    %989 = vmatprep.subr.mxu0 %v980
    %990 = vmatpush1.msra.mxu0 %v979
    %991 = vmatprep.subr.mxu0 %v982
    %992 = vmatpush1.msra.mxu0 %v981
    %993 = vmatprep.subr.mxu0 0.0
    %994 = vmatpush1.msra.mxu0 0.0
    %995 = vmatprep.subr.mxu0 0.0
    %996 = vmatpush1.msra.mxu0 0.0
    %997 = vmatprep.subr.mxu0 0.0
    %998 = vmatpush1.msra.mxu0 0.0
    %999 = vmatprep.subr.mxu0 0.0
    %1000 = vmatpush1.msra.mxu0 0.0
    %1001 = vmatprep.subr.mxu0 0.0
    %1002 = vmatpush1.msra.mxu0 0.0
    %1003 = vmatprep.subr.mxu0 0.0
    %1004 = vmatpush1.msra.mxu0 0.0
    %1005 = vmatprep.subr.mxu0 0.0
    %1006 = vmatpush1.msra.mxu0 0.0
    %1007 = vmatprep.subr.mxu0 0.0
    %1008 = vmatpush1.msra.mxu0 0.0
    %1009 = vmatprep.subr.mxu0 0.0
    %1010 = vmatpush1.msra.mxu0 0.0
    %1011 = vmatprep.subr.mxu0 0.0
    %1012 = vmatpush1.msra.mxu0 0.0
    %1013 = vmatprep.subr.mxu0 0.0
    %1014 = vmatpush1.msra.mxu0 0.0
    %1015 = vmatprep.subr.mxu0 0.0
    %1016 = vmatpush1.msra.mxu0 0.0
    %1017 = vmatprep.subr.mxu0 0.0
    %1018 = vmatpush1.msra.mxu0 0.0
    %1019 = vmatprep.subr.mxu0 0.0
    %1020 = vmatpush1.msra.mxu0 0.0
    %1021 = vmatprep.subr.mxu0 0.0
    %1022 = vmatpush1.msra.mxu0 0.0
    %1023 = vmatprep.subr.mxu0 0.0
    %1024 = vmatpush1.msra.mxu0 0.0
    %1025 = vmatprep.subr.mxu0 0.0
    %1026 = vmatpush1.msra.mxu0 0.0
    %1027 = vmatprep.subr.mxu0 0.0
    %1028 = vmatpush1.msra.mxu0 0.0
    %1029 = vmatprep.subr.mxu0 0.0
    %1030 = vmatpush1.msra.mxu0 0.0
    %1031 = vmatprep.subr.mxu0 0.0
    %1032 = vmatpush1.msra.mxu0 0.0
    %1033 = vmatprep.subr.mxu0 0.0
    %1034 = vmatpush1.msra.mxu0 0.0
    %1035 = vmatprep.subr.mxu0 0.0
    %1036 = vmatpush1.msra.mxu0 0.0
    %1037 = vmatprep.subr.mxu0 0.0
    %1038 = vmatpush1.msra.mxu0 0.0
    %1039 = vmatprep.subr.mxu0 0.0
    %1040 = vmatpush1.msra.mxu0 0.0
    %1041 = vmatprep.subr.mxu0 0.0
    %1042 = vmatpush1.msra.mxu0 0.0
    %1043 = vmatprep.subr.mxu0 0.0
    %1044 = vmatpush1.msra.mxu0 0.0
    %1045 = vmatprep.subr.mxu0 0.0
    %1046 = vmatpush1.msra.mxu0 0.0
    %1047 = vmatprep.subr.mxu0 0.0
    %1048 = vmatpush1.msra.mxu0 0.0
    %1049 = vmatprep.mubr.f32.mxu0 0.0
    %1050 = vmatmul.mubr.f32.gmra.mrb[0].mxu0 %v983
    %v1051 = vpop.f32.mrb[0].mxu0
    %v1052 = vadd.f32 0.0, %v1051
    %v1053 = vpop.f32.mrb[0].mxu0
    %v1054 = vadd.f32 0.0, %v1053
    %1055 = vdwg.mxu0
    %v1056 = vsel %vm152, %v1052, %v1054
    %v1057 = vadd.f32 %v974, %v1056
    %v1058 = vxor.u32 %v1057, 2147483648
    %v1059 = vmul.f32 %v1058, 1.442695
    %v1060 = vpow.pop %v1059
    %v1061 = vadd.f32 %v1060, 1.0
    %v1062 = vrcp.pop %v1061
    %v1063 = vmul.f32 1.0, %v1062
    %v1064 = vtanh.pop %v1057
    %v1065 = vmul.f32 %v1063, %v958
    %1067 = vrot.lane.b32.xlu0 %v1064, 32
    %v1068 = vpop.permute.xlu0 %1067
    %v1070 = vmul.f32 %v1063, %v1068
    %1072 = vrot.lane.b32.xlu0 %v1070, 32
    %v1073 = vpop.permute.xlu0 %1072
    %v1075 = vadd.f32 %v1065, %v1073
    %v1076 = vtanh.pop %v1075
    %1078 = vrot.lane.b32.xlu0 %v1076, 32
    %v1079 = vpop.permute.xlu0 %1078
    %v1081 = vmul.f32 %v1063, %v1079
    %1083 = vrot.lane.b32.xlu0 %v1081, 64
    %v1084 = vpop.permute.xlu0 %1083
    %1086 = vst.msk [vmem:[#allocation3 + $0xc] sm:$0x3] %vm382, %v1084
    %1087 = vrot.lane.b32.xlu0 %v1081, 96
    %v1088 = vpop.permute.xlu0 %1087
    %1090 = vst.msk [vmem:[#allocation3] sm:$0xc] %vm387, %v1088
    %v1091 = vld [vmem:[#allocation2 + $0x1c] sm:$0xf]
    %v1092 = vld [vmem:[%s3] sm:$0xff]
    %v1093 = vld [vmem:[%s3 + $0x8] sm:$0xff]
    %v1094 = vld [vmem:[%s3 + $0x10] sm:$0xff]
    %v1095 = vld [vmem:[%s3 + $0x18] sm:$0xff]
    %v1096 = vld [vmem:[%s3 + $0x20] sm:$0xff]
    %v1097 = vld [vmem:[%s3 + $0x28] sm:$0xff]
    %v1098 = vld [vmem:[%s3 + $0x30] sm:$0xff]
    %v1099 = vld [vmem:[%s3 + $0x38] sm:$0xff]
    %v1100 = vsel %vm68, %v1084, 0
    %1102 = vmatprep.subr.mxu0 %v1093
    %1103 = vmatpush1.msra.mxu0 %v1092
    %1104 = vmatprep.subr.mxu0 %v1095
    %1105 = vmatpush1.msra.mxu0 %v1094
    %1106 = vmatprep.subr.mxu0 %v1097
    %1107 = vmatpush1.msra.mxu0 %v1096
    %1108 = vmatprep.subr.mxu0 %v1099
    %1109 = vmatpush1.msra.mxu0 %v1098
    %1110 = vmatprep.subr.mxu0 0.0
    %1111 = vmatpush1.msra.mxu0 0.0
    %1112 = vmatprep.subr.mxu0 0.0
    %1113 = vmatpush1.msra.mxu0 0.0
    %1114 = vmatprep.subr.mxu0 0.0
    %1115 = vmatpush1.msra.mxu0 0.0
    %1116 = vmatprep.subr.mxu0 0.0
    %1117 = vmatpush1.msra.mxu0 0.0
    %1118 = vmatprep.subr.mxu0 0.0
    %1119 = vmatpush1.msra.mxu0 0.0
    %1120 = vmatprep.subr.mxu0 0.0
    %1121 = vmatpush1.msra.mxu0 0.0
    %1122 = vmatprep.subr.mxu0 0.0
    %1123 = vmatpush1.msra.mxu0 0.0
    %1124 = vmatprep.subr.mxu0 0.0
    %1125 = vmatpush1.msra.mxu0 0.0
    %1126 = vmatprep.subr.mxu0 0.0
    %1127 = vmatpush1.msra.mxu0 0.0
    %1128 = vmatprep.subr.mxu0 0.0
    %1129 = vmatpush1.msra.mxu0 0.0
    %1130 = vmatprep.subr.mxu0 0.0
    %1131 = vmatpush1.msra.mxu0 0.0
    %1132 = vmatprep.subr.mxu0 0.0
    %1133 = vmatpush1.msra.mxu0 0.0
    %1134 = vmatprep.subr.mxu0 0.0
    %1135 = vmatpush1.msra.mxu0 0.0
    %1136 = vmatprep.subr.mxu0 0.0
    %1137 = vmatpush1.msra.mxu0 0.0
    %1138 = vmatprep.subr.mxu0 0.0
    %1139 = vmatpush1.msra.mxu0 0.0
    %1140 = vmatprep.subr.mxu0 0.0
    %1141 = vmatpush1.msra.mxu0 0.0
    %1142 = vmatprep.subr.mxu0 0.0
    %1143 = vmatpush1.msra.mxu0 0.0
    %1144 = vmatprep.subr.mxu0 0.0
    %1145 = vmatpush1.msra.mxu0 0.0
    %1146 = vmatprep.subr.mxu0 0.0
    %1147 = vmatpush1.msra.mxu0 0.0
    %1148 = vmatprep.subr.mxu0 0.0
    %1149 = vmatpush1.msra.mxu0 0.0
    %1150 = vmatprep.subr.mxu0 0.0
    %1151 = vmatpush1.msra.mxu0 0.0
    %1152 = vmatprep.subr.mxu0 0.0
    %1153 = vmatpush1.msra.mxu0 0.0
    %1154 = vmatprep.subr.mxu0 0.0
    %1155 = vmatpush1.msra.mxu0 0.0
    %1156 = vmatprep.subr.mxu0 0.0
    %1157 = vmatpush1.msra.mxu0 0.0
    %1158 = vmatprep.subr.mxu0 0.0
    %1159 = vmatpush1.msra.mxu0 0.0
    %1160 = vmatprep.subr.mxu0 0.0
    %1161 = vmatpush1.msra.mxu0 0.0
    %1162 = vmatprep.subr.mxu0 0.0
    %1163 = vmatpush1.msra.mxu0 0.0
    %1164 = vmatprep.subr.mxu0 0.0
    %1165 = vmatpush1.msra.mxu0 0.0
    %1166 = vmatprep.mubr.f32.mxu0 0.0
    %1167 = vmatmul.mubr.f32.gmra.mrb[0].mxu0 %v1100
    %v1168 = vpop.f32.mrb[0].mxu0
    %v1169 = vadd.f32 0.0, %v1168
    %v1170 = vpop.f32.mrb[0].mxu0
    %v1171 = vadd.f32 0.0, %v1170
    %1172 = vdwg.mxu0
    %v1173 = vsel %vm152, %v1169, %v1171
    %v1174 = vadd.f32 %v1091, %v1173
    %v1175 = vxor.u32 %v1174, 2147483648
    %v1176 = vmul.f32 %v1175, 1.442695
    %v1177 = vpow.pop %v1176
    %v1178 = vadd.f32 %v1177, 1.0
    %v1179 = vrcp.pop %v1178
    %v1180 = vmul.f32 1.0, %v1179
    %v1181 = vtanh.pop %v1174
    %v1182 = vmul.f32 %v1180, %v1075
    %1184 = vrot.lane.b32.xlu0 %v1181, 32
    %v1185 = vpop.permute.xlu0 %1184
    %v1187 = vmul.f32 %v1180, %v1185
    %1189 = vrot.lane.b32.xlu0 %v1187, 32
    %v1190 = vpop.permute.xlu0 %1189
    %v1192 = vadd.f32 %v1182, %v1190
    %v1193 = vtanh.pop %v1192
    %1195 = vrot.lane.b32.xlu0 %v1193, 32
    %v1196 = vpop.permute.xlu0 %1195
    %v1198 = vmul.f32 %v1180, %v1196
    %1200 = vrot.lane.b32.xlu0 %v1198, 64
    %v1201 = vpop.permute.xlu0 %1200
    %1203 = vst.msk [vmem:[#allocation3 + $0xe] sm:$0x3] %vm382, %v1201
    %1204 = vrot.lane.b32.xlu0 %v1198, 96
    %v1205 = vpop.permute.xlu0 %1204
    %1207 = vst.msk [vmem:[#allocation3 - $0x2] sm:$0xc] %vm387, %v1205
    %v1208 = vld [vmem:[#allocation3] sm:$0xff]
    %v1209 = vld [vmem:[#allocation3 + $0x8] sm:$0xff]
    %v1210 = vld [vmem:[%s5] sm:$0xff]
    %v1211 = vld [vmem:[%s5 + $0x8] sm:$0xff]
    %v1212 = vld [vmem:[%s5 + $0x10] sm:$0xff]
    %v1213 = vld [vmem:[%s5 + $0x18] sm:$0xff]
    %v1214 = vld [vmem:[%s5 + $0x20] sm:$0xff]
    %v1215 = vld [vmem:[%s5 + $0x28] sm:$0xff]
    %v1216 = vld [vmem:[%s5 + $0x30] sm:$0xff]
    %v1217 = vld [vmem:[%s5 + $0x38] sm:$0xff]
    %v1218 = vld [vmem:[%s5 + $0x40] sm:$0xff]
    %v1219 = vld [vmem:[%s5 + $0x48] sm:$0xff]
    %v1220 = vld [vmem:[%s5 + $0x50] sm:$0xff]
    %v1221 = vld [vmem:[%s5 + $0x58] sm:$0xff]
    %v1222 = vld [vmem:[%s5 + $0x60] sm:$0xff]
    %v1223 = vld [vmem:[%s5 + $0x68] sm:$0xff]
    %v1224 = vld [vmem:[%s5 + $0x70] sm:$0xff]
    %v1225 = vld [vmem:[%s5 + $0x78] sm:$0xff]
    %v1226 = vld [vmem:[%s7] sm:$0x3]
    %v1228 = vlaneseq
    %v1229 = vshrl.u32 %v1228, 7
    %v1230 = vsub.s32 0, %v1229
    %v1231 = vrot.slane %v1226, %v1230
    %v1232 = vlaneseq
    %v1233 = vshrl.u32 %v1232, 7
    %v1234 = vsub.s32 1, %v1233
    %v1235 = vrot.slane %v1226, %v1234
    %vm1238 = vcmask 523264
    %v1240 = vsel %vm1238, %v1208, 0
    %v1243 = vsel %vm1238, %v1209, 0
    %1245 = vmatprep.subr.mxu0 %v1211
    %1246 = vmatpush1.msra.mxu0 %v1210
    %1247 = vmatprep.subr.mxu0 %v1213
    %1248 = vmatpush1.msra.mxu0 %v1212
    %1249 = vmatprep.subr.mxu0 %v1215
    %1250 = vmatpush1.msra.mxu0 %v1214
    %1251 = vmatprep.subr.mxu0 %v1217
    %1252 = vmatpush1.msra.mxu0 %v1216
    %1253 = vmatprep.subr.mxu0 %v1219
    %1254 = vmatpush1.msra.mxu0 %v1218
    %1255 = vmatprep.subr.mxu0 %v1221
    %1256 = vmatpush1.msra.mxu0 %v1220
    %1257 = vmatprep.subr.mxu0 %v1223
    %1258 = vmatpush1.msra.mxu0 %v1222
    %1259 = vmatprep.subr.mxu0 %v1225
    %1260 = vmatpush1.msra.mxu0 %v1224
    %1261 = vmatprep.subr.mxu0 0.0
    %1262 = vmatpush1.msra.mxu0 0.0
    %1263 = vmatprep.subr.mxu0 0.0
    %1264 = vmatpush1.msra.mxu0 0.0
    %1265 = vmatprep.subr.mxu0 0.0
    %1266 = vmatpush1.msra.mxu0 0.0
    %1267 = vmatprep.subr.mxu0 0.0
    %1268 = vmatpush1.msra.mxu0 0.0
    %1269 = vmatprep.subr.mxu0 0.0
    %1270 = vmatpush1.msra.mxu0 0.0
    %1271 = vmatprep.subr.mxu0 0.0
    %1272 = vmatpush1.msra.mxu0 0.0
    %1273 = vmatprep.subr.mxu0 0.0
    %1274 = vmatpush1.msra.mxu0 0.0
    %1275 = vmatprep.subr.mxu0 0.0
    %1276 = vmatpush1.msra.mxu0 0.0
    %1277 = vmatprep.subr.mxu0 0.0
    %1278 = vmatpush1.msra.mxu0 0.0
    %1279 = vmatprep.subr.mxu0 0.0
    %1280 = vmatpush1.msra.mxu0 0.0
    %1281 = vmatprep.subr.mxu0 0.0
    %1282 = vmatpush1.msra.mxu0 0.0
    %1283 = vmatprep.subr.mxu0 0.0
    %1284 = vmatpush1.msra.mxu0 0.0
    %1285 = vmatprep.subr.mxu0 0.0
    %1286 = vmatpush1.msra.mxu0 0.0
    %1287 = vmatprep.subr.mxu0 0.0
    %1288 = vmatpush1.msra.mxu0 0.0
    %1289 = vmatprep.subr.mxu0 0.0
    %1290 = vmatpush1.msra.mxu0 0.0
    %1291 = vmatprep.subr.mxu0 0.0
    %1292 = vmatpush1.msra.mxu0 0.0
    %1293 = vmatprep.subr.mxu0 0.0
    %1294 = vmatpush1.msra.mxu0 0.0
    %1295 = vmatprep.subr.mxu0 0.0
    %1296 = vmatpush1.msra.mxu0 0.0
    %1297 = vmatprep.subr.mxu0 0.0
    %1298 = vmatpush1.msra.mxu0 0.0
    %1299 = vmatprep.subr.mxu0 0.0
    %1300 = vmatpush1.msra.mxu0 0.0
    %1301 = vmatprep.subr.mxu0 0.0
    %1302 = vmatpush1.msra.mxu0 0.0
    %1303 = vmatprep.subr.mxu0 0.0
    %1304 = vmatpush1.msra.mxu0 0.0
    %1305 = vmatprep.subr.mxu0 0.0
    %1306 = vmatpush1.msra.mxu0 0.0
    %1307 = vmatprep.subr.mxu0 0.0
    %1308 = vmatpush1.msra.mxu0 0.0
    %1309 = vmatprep.mubr.f32.mxu0 0.0
    %1310 = vmatmul.mubr.f32.gmra.mrb[0].mxu0 %v1240
    %v1311 = vpop.f32.mrb[0].mxu0
    %v1312 = vadd.f32 %v1231, %v1311
    %v1313 = vpop.f32.mrb[0].mxu0
    %v1314 = vadd.f32 %v1235, %v1313
    %1315 = vmatprep.mubr.f32.mxu0 0.0
    %1316 = vmatmul.mubr.f32.gmra.mrb[0].mxu0 %v1243
    %v1317 = vpop.f32.mrb[0].mxu0
    %v1318 = vadd.f32 %v1231, %v1317
    %v1319 = vpop.f32.mrb[0].mxu0
    %v1320 = vadd.f32 %v1235, %v1319
    %1321 = vdwg.mxu0
    %1322 = vst [vmem:[#allocation2] sm:$0x3] %v1312
    %1323 = vst [vmem:[#allocation2 - $0x4] sm:$0xc0] %v1320
    %1324 = vst [vmem:[#allocation2 + $0x2] sm:$0xc] %v1312
    %1325 = vst [vmem:[#allocation2 + $0x2] sm:$0x30] %v1320
    %1326 = vst [vmem:[#allocation2 + $0x4] sm:$0x30] %v1312
    %1327 = vst [vmem:[#allocation2 + $0x8] sm:$0xc] %v1320
    %1328 = vst [vmem:[#allocation2 + $0x6] sm:$0xc0] %v1312
    %1329 = vst [vmem:[#allocation2 + $0xe] sm:$0x3] %v1320
    %1330 = vst [vmem:[#allocation2 + $0x10] sm:$0x3] %v1318
    %1331 = vst [vmem:[#allocation2 + $0xc] sm:$0xc0] %v1314
    %1332 = vst [vmem:[#allocation2 + $0x12] sm:$0xc] %v1318
    %1333 = vst [vmem:[#allocation2 + $0x12] sm:$0x30] %v1314
    %1334 = vst [vmem:[#allocation2 + $0x14] sm:$0x30] %v1318
    %1335 = vst [vmem:[#allocation2 + $0x18] sm:$0xc] %v1314
    %1336 = vst [vmem:[#allocation2 + $0x16] sm:$0xc0] %v1318
    %1337 = vst [vmem:[#allocation2 + $0x1e] sm:$0x3] %v1314
    %v1338 = vld [vmem:[#allocation2] sm:$0xf]
    %v1339 = vld [vmem:[%s6] sm:$0xff]
    %v1340 = vld [vmem:[%s6 + $0x8] sm:$0xff]
    %v1341 = vld [vmem:[%s6 + $0x10] sm:$0xff]
    %v1342 = vld [vmem:[%s6 + $0x18] sm:$0xff]
    %v1343 = vld [vmem:[%s6 + $0x20] sm:$0xff]
    %v1344 = vld [vmem:[%s6 + $0x28] sm:$0xff]
    %v1345 = vld [vmem:[%s6 + $0x30] sm:$0xff]
    %v1346 = vld [vmem:[%s6 + $0x38] sm:$0xff]
    %1347 = vmatprep.subr.mxu0 %v1340
    %1348 = vmatpush1.msra.mxu0 %v1339
    %1349 = vmatprep.subr.mxu0 %v1342
    %1350 = vmatpush1.msra.mxu0 %v1341
    %1351 = vmatprep.subr.mxu0 %v1344
    %1352 = vmatpush1.msra.mxu0 %v1343
    %1353 = vmatprep.subr.mxu0 %v1346
    %1354 = vmatpush1.msra.mxu0 %v1345
    %1355 = vmatprep.subr.mxu0 0.0
    %1356 = vmatpush1.msra.mxu0 0.0
    %1357 = vmatprep.subr.mxu0 0.0
    %1358 = vmatpush1.msra.mxu0 0.0
    %1359 = vmatprep.subr.mxu0 0.0
    %1360 = vmatpush1.msra.mxu0 0.0
    %1361 = vmatprep.subr.mxu0 0.0
    %1362 = vmatpush1.msra.mxu0 0.0
    %1363 = vmatprep.subr.mxu0 0.0
    %1364 = vmatpush1.msra.mxu0 0.0
    %1365 = vmatprep.subr.mxu0 0.0
    %1366 = vmatpush1.msra.mxu0 0.0
    %1367 = vmatprep.subr.mxu0 0.0
    %1368 = vmatpush1.msra.mxu0 0.0
    %1369 = vmatprep.subr.mxu0 0.0
    %1370 = vmatpush1.msra.mxu0 0.0
    %1371 = vmatprep.subr.mxu0 0.0
    %1372 = vmatpush1.msra.mxu0 0.0
    %1373 = vmatprep.subr.mxu0 0.0
    %1374 = vmatpush1.msra.mxu0 0.0
    %1375 = vmatprep.subr.mxu0 0.0
    %1376 = vmatpush1.msra.mxu0 0.0
    %1377 = vmatprep.subr.mxu0 0.0
    %1378 = vmatpush1.msra.mxu0 0.0
    %1379 = vmatprep.subr.mxu0 0.0
    %1380 = vmatpush1.msra.mxu0 0.0
    %1381 = vmatprep.subr.mxu0 0.0
    %1382 = vmatpush1.msra.mxu0 0.0
    %1383 = vmatprep.subr.mxu0 0.0
    %1384 = vmatpush1.msra.mxu0 0.0
    %1385 = vmatprep.subr.mxu0 0.0
    %1386 = vmatpush1.msra.mxu0 0.0
    %1387 = vmatprep.subr.mxu0 0.0
    %1388 = vmatpush1.msra.mxu0 0.0
    %1389 = vmatprep.subr.mxu0 0.0
    %1390 = vmatpush1.msra.mxu0 0.0
    %1391 = vmatprep.subr.mxu0 0.0
    %1392 = vmatpush1.msra.mxu0 0.0
    %1393 = vmatprep.subr.mxu0 0.0
    %1394 = vmatpush1.msra.mxu0 0.0
    %1395 = vmatprep.subr.mxu0 0.0
    %1396 = vmatpush1.msra.mxu0 0.0
    %1397 = vmatprep.subr.mxu0 0.0
    %1398 = vmatpush1.msra.mxu0 0.0
    %1399 = vmatprep.subr.mxu0 0.0
    %1400 = vmatpush1.msra.mxu0 0.0
    %1401 = vmatprep.subr.mxu0 0.0
    %1402 = vmatpush1.msra.mxu0 0.0
    %1403 = vmatprep.subr.mxu0 0.0
    %1404 = vmatpush1.msra.mxu0 0.0
    %1405 = vmatprep.subr.mxu0 0.0
    %1406 = vmatpush1.msra.mxu0 0.0
    %1407 = vmatprep.subr.mxu0 0.0
    %1408 = vmatpush1.msra.mxu0 0.0
    %1409 = vmatprep.subr.mxu0 0.0
    %1410 = vmatpush1.msra.mxu0 0.0
    %1411 = vmatprep.mubr.f32.mxu0 0.0
    %1412 = vmatmul.mubr.f32.gmra.mrb[0].mxu0 %v279
    %v1413 = vpop.f32.mrb[0].mxu0
    %v1414 = vadd.f32 0.0, %v1413
    %v1415 = vpop.f32.mrb[0].mxu0
    %v1416 = vadd.f32 0.0, %v1415
    %1417 = vdwg.mxu0
    %v1418 = vsel %vm152, %v1414, %v1416
    %v1419 = vadd.f32 %v1338, %v1418
    %v1420 = vxor.u32 %v1419, 2147483648
    %v1421 = vmul.f32 %v1420, 1.442695
    %v1422 = vpow.pop %v1421
    %v1423 = vadd.f32 %v1422, 1.0
    %v1424 = vrcp.pop %v1423
    %v1425 = vmul.f32 1.0, %v1424
    %v1426 = vtanh.pop %v1419
    %v1427 = vmul.f32 %v1425, 0.0
    %1429 = vrot.lane.b32.xlu0 %v1426, 32
    %v1430 = vpop.permute.xlu0 %1429
    %v1432 = vmul.f32 %v1425, %v1430
    %1434 = vrot.lane.b32.xlu0 %v1432, 32
    %v1435 = vpop.permute.xlu0 %1434
    %v1437 = vadd.f32 %v1427, %v1435
    %v1438 = vtanh.pop %v1437
    %1440 = vrot.lane.b32.xlu0 %v1438, 32
    %v1441 = vpop.permute.xlu0 %1440
    %v1443 = vmul.f32 %v1425, %v1441
    %1445 = vrot.lane.b32.xlu0 %v1443, 64
    %v1446 = vpop.permute.xlu0 %1445
    %vm1448 = vcmask 253952
    %1449 = vst.msk [vmem:[#allocation4] sm:$0x1] %vm1448, %v1446
    %1450 = vrot.lane.b32.xlu0 %v1443, 96
    %v1451 = vpop.permute.xlu0 %1450
    %vm1453 = vcmask 518402
    %1454 = vst.msk [vmem:[#allocation4 + $0x5] sm:$0x4] %vm1453, %v1451
    %vm1455 = vcmask 254977
    %1456 = vst.msk [vmem:[#allocation4 + $0x7] sm:$0x2] %vm1455, %v1446
    %vm1457 = vcmask 519427
    %1458 = vst.msk [vmem:[#allocation4 + $0xc] sm:$0x8] %vm1457, %v1451
    %v1459 = vld [vmem:[#allocation2 + $0x4] sm:$0xf]
    %v1460 = vld [vmem:[%s6] sm:$0xff]
    %v1461 = vld [vmem:[%s6 + $0x8] sm:$0xff]
    %v1462 = vld [vmem:[%s6 + $0x10] sm:$0xff]
    %v1463 = vld [vmem:[%s6 + $0x18] sm:$0xff]
    %v1464 = vld [vmem:[%s6 + $0x20] sm:$0xff]
    %v1465 = vld [vmem:[%s6 + $0x28] sm:$0xff]
    %v1466 = vld [vmem:[%s6 + $0x30] sm:$0xff]
    %v1467 = vld [vmem:[%s6 + $0x38] sm:$0xff]
    %v1468 = vsel %vm68, %v1446, 0
    %1470 = vmatprep.subr.mxu0 %v1461
    %1471 = vmatpush1.msra.mxu0 %v1460
    %1472 = vmatprep.subr.mxu0 %v1463
    %1473 = vmatpush1.msra.mxu0 %v1462
    %1474 = vmatprep.subr.mxu0 %v1465
    %1475 = vmatpush1.msra.mxu0 %v1464
    %1476 = vmatprep.subr.mxu0 %v1467
    %1477 = vmatpush1.msra.mxu0 %v1466
    %1478 = vmatprep.subr.mxu0 0.0
    %1479 = vmatpush1.msra.mxu0 0.0
    %1480 = vmatprep.subr.mxu0 0.0
    %1481 = vmatpush1.msra.mxu0 0.0
    %1482 = vmatprep.subr.mxu0 0.0
    %1483 = vmatpush1.msra.mxu0 0.0
    %1484 = vmatprep.subr.mxu0 0.0
    %1485 = vmatpush1.msra.mxu0 0.0
    %1486 = vmatprep.subr.mxu0 0.0
    %1487 = vmatpush1.msra.mxu0 0.0
    %1488 = vmatprep.subr.mxu0 0.0
    %1489 = vmatpush1.msra.mxu0 0.0
    %1490 = vmatprep.subr.mxu0 0.0
    %1491 = vmatpush1.msra.mxu0 0.0
    %1492 = vmatprep.subr.mxu0 0.0
    %1493 = vmatpush1.msra.mxu0 0.0
    %1494 = vmatprep.subr.mxu0 0.0
    %1495 = vmatpush1.msra.mxu0 0.0
    %1496 = vmatprep.subr.mxu0 0.0
    %1497 = vmatpush1.msra.mxu0 0.0
    %1498 = vmatprep.subr.mxu0 0.0
    %1499 = vmatpush1.msra.mxu0 0.0
    %1500 = vmatprep.subr.mxu0 0.0
    %1501 = vmatpush1.msra.mxu0 0.0
    %1502 = vmatprep.subr.mxu0 0.0
    %1503 = vmatpush1.msra.mxu0 0.0
    %1504 = vmatprep.subr.mxu0 0.0
    %1505 = vmatpush1.msra.mxu0 0.0
    %1506 = vmatprep.subr.mxu0 0.0
    %1507 = vmatpush1.msra.mxu0 0.0
    %1508 = vmatprep.subr.mxu0 0.0
    %1509 = vmatpush1.msra.mxu0 0.0
    %1510 = vmatprep.subr.mxu0 0.0
    %1511 = vmatpush1.msra.mxu0 0.0
    %1512 = vmatprep.subr.mxu0 0.0
    %1513 = vmatpush1.msra.mxu0 0.0
    %1514 = vmatprep.subr.mxu0 0.0
    %1515 = vmatpush1.msra.mxu0 0.0
    %1516 = vmatprep.subr.mxu0 0.0
    %1517 = vmatpush1.msra.mxu0 0.0
    %1518 = vmatprep.subr.mxu0 0.0
    %1519 = vmatpush1.msra.mxu0 0.0
    %1520 = vmatprep.subr.mxu0 0.0
    %1521 = vmatpush1.msra.mxu0 0.0
    %1522 = vmatprep.subr.mxu0 0.0
    %1523 = vmatpush1.msra.mxu0 0.0
    %1524 = vmatprep.subr.mxu0 0.0
    %1525 = vmatpush1.msra.mxu0 0.0
    %1526 = vmatprep.subr.mxu0 0.0
    %1527 = vmatpush1.msra.mxu0 0.0
    %1528 = vmatprep.subr.mxu0 0.0
    %1529 = vmatpush1.msra.mxu0 0.0
    %1530 = vmatprep.subr.mxu0 0.0
    %1531 = vmatpush1.msra.mxu0 0.0
    %1532 = vmatprep.subr.mxu0 0.0
    %1533 = vmatpush1.msra.mxu0 0.0
    %1534 = vmatprep.mubr.f32.mxu0 0.0
    %1535 = vmatmul.mubr.f32.gmra.mrb[0].mxu0 %v1468
    %v1536 = vpop.f32.mrb[0].mxu0
    %v1537 = vadd.f32 0.0, %v1536
    %v1538 = vpop.f32.mrb[0].mxu0
    %v1539 = vadd.f32 0.0, %v1538
    %1540 = vdwg.mxu0
    %v1541 = vsel %vm152, %v1537, %v1539
    %v1542 = vadd.f32 %v1459, %v1541
    %v1543 = vxor.u32 %v1542, 2147483648
    %v1544 = vmul.f32 %v1543, 1.442695
    %v1545 = vpow.pop %v1544
    %v1546 = vadd.f32 %v1545, 1.0
    %v1547 = vrcp.pop %v1546
    %v1548 = vmul.f32 1.0, %v1547
    %v1549 = vtanh.pop %v1542
    %v1550 = vmul.f32 %v1548, %v1437
    %1552 = vrot.lane.b32.xlu0 %v1549, 32
    %v1553 = vpop.permute.xlu0 %1552
    %v1555 = vmul.f32 %v1548, %v1553
    %1557 = vrot.lane.b32.xlu0 %v1555, 32
    %v1558 = vpop.permute.xlu0 %1557
    %v1560 = vadd.f32 %v1550, %v1558
    %v1561 = vtanh.pop %v1560
    %1563 = vrot.lane.b32.xlu0 %v1561, 32
    %v1564 = vpop.permute.xlu0 %1563
    %v1566 = vmul.f32 %v1548, %v1564
    %1568 = vrot.lane.b32.xlu0 %v1566, 64
    %v1569 = vpop.permute.xlu0 %1568
    %1571 = vst.msk [vmem:[#allocation4 + $0x1] sm:$0x1] %vm1448, %v1569
    %1572 = vrot.lane.b32.xlu0 %v1566, 96
    %v1573 = vpop.permute.xlu0 %1572
    %1575 = vst.msk [vmem:[#allocation4 + $0x4] sm:$0x4] %vm1453, %v1573
    %1576 = vst.msk [vmem:[#allocation4 + $0x8] sm:$0x2] %vm1455, %v1569
    %1577 = vst.msk [vmem:[#allocation4 + $0xb] sm:$0x8] %vm1457, %v1573
    %v1578 = vld [vmem:[#allocation2 + $0x8] sm:$0xf]
    %v1579 = vld [vmem:[%s6] sm:$0xff]
    %v1580 = vld [vmem:[%s6 + $0x8] sm:$0xff]
    %v1581 = vld [vmem:[%s6 + $0x10] sm:$0xff]
    %v1582 = vld [vmem:[%s6 + $0x18] sm:$0xff]
    %v1583 = vld [vmem:[%s6 + $0x20] sm:$0xff]
    %v1584 = vld [vmem:[%s6 + $0x28] sm:$0xff]
    %v1585 = vld [vmem:[%s6 + $0x30] sm:$0xff]
    %v1586 = vld [vmem:[%s6 + $0x38] sm:$0xff]
    %v1587 = vsel %vm68, %v1569, 0
    %1589 = vmatprep.subr.mxu0 %v1580
    %1590 = vmatpush1.msra.mxu0 %v1579
    %1591 = vmatprep.subr.mxu0 %v1582
    %1592 = vmatpush1.msra.mxu0 %v1581
    %1593 = vmatprep.subr.mxu0 %v1584
    %1594 = vmatpush1.msra.mxu0 %v1583
    %1595 = vmatprep.subr.mxu0 %v1586
    %1596 = vmatpush1.msra.mxu0 %v1585
    %1597 = vmatprep.subr.mxu0 0.0
    %1598 = vmatpush1.msra.mxu0 0.0
    %1599 = vmatprep.subr.mxu0 0.0
    %1600 = vmatpush1.msra.mxu0 0.0
    %1601 = vmatprep.subr.mxu0 0.0
    %1602 = vmatpush1.msra.mxu0 0.0
    %1603 = vmatprep.subr.mxu0 0.0
    %1604 = vmatpush1.msra.mxu0 0.0
    %1605 = vmatprep.subr.mxu0 0.0
    %1606 = vmatpush1.msra.mxu0 0.0
    %1607 = vmatprep.subr.mxu0 0.0
    %1608 = vmatpush1.msra.mxu0 0.0
    %1609 = vmatprep.subr.mxu0 0.0
    %1610 = vmatpush1.msra.mxu0 0.0
    %1611 = vmatprep.subr.mxu0 0.0
    %1612 = vmatpush1.msra.mxu0 0.0
    %1613 = vmatprep.subr.mxu0 0.0
    %1614 = vmatpush1.msra.mxu0 0.0
    %1615 = vmatprep.subr.mxu0 0.0
    %1616 = vmatpush1.msra.mxu0 0.0
    %1617 = vmatprep.subr.mxu0 0.0
    %1618 = vmatpush1.msra.mxu0 0.0
    %1619 = vmatprep.subr.mxu0 0.0
    %1620 = vmatpush1.msra.mxu0 0.0
    %1621 = vmatprep.subr.mxu0 0.0
    %1622 = vmatpush1.msra.mxu0 0.0
    %1623 = vmatprep.subr.mxu0 0.0
    %1624 = vmatpush1.msra.mxu0 0.0
    %1625 = vmatprep.subr.mxu0 0.0
    %1626 = vmatpush1.msra.mxu0 0.0
    %1627 = vmatprep.subr.mxu0 0.0
    %1628 = vmatpush1.msra.mxu0 0.0
    %1629 = vmatprep.subr.mxu0 0.0
    %1630 = vmatpush1.msra.mxu0 0.0
    %1631 = vmatprep.subr.mxu0 0.0
    %1632 = vmatpush1.msra.mxu0 0.0
    %1633 = vmatprep.subr.mxu0 0.0
    %1634 = vmatpush1.msra.mxu0 0.0
    %1635 = vmatprep.subr.mxu0 0.0
    %1636 = vmatpush1.msra.mxu0 0.0
    %1637 = vmatprep.subr.mxu0 0.0
    %1638 = vmatpush1.msra.mxu0 0.0
    %1639 = vmatprep.subr.mxu0 0.0
    %1640 = vmatpush1.msra.mxu0 0.0
    %1641 = vmatprep.subr.mxu0 0.0
    %1642 = vmatpush1.msra.mxu0 0.0
    %1643 = vmatprep.subr.mxu0 0.0
    %1644 = vmatpush1.msra.mxu0 0.0
    %1645 = vmatprep.subr.mxu0 0.0
    %1646 = vmatpush1.msra.mxu0 0.0
    %1647 = vmatprep.subr.mxu0 0.0
    %1648 = vmatpush1.msra.mxu0 0.0
    %1649 = vmatprep.subr.mxu0 0.0
    %1650 = vmatpush1.msra.mxu0 0.0
    %1651 = vmatprep.subr.mxu0 0.0
    %1652 = vmatpush1.msra.mxu0 0.0
    %1653 = vmatprep.mubr.f32.mxu0 0.0
    %1654 = vmatmul.mubr.f32.gmra.mrb[0].mxu0 %v1587
    %v1655 = vpop.f32.mrb[0].mxu0
    %v1656 = vadd.f32 0.0, %v1655
    %v1657 = vpop.f32.mrb[0].mxu0
    %v1658 = vadd.f32 0.0, %v1657
    %1659 = vdwg.mxu0
    %v1660 = vsel %vm152, %v1656, %v1658
    %v1661 = vadd.f32 %v1578, %v1660
    %v1662 = vxor.u32 %v1661, 2147483648
    %v1663 = vmul.f32 %v1662, 1.442695
    %v1664 = vpow.pop %v1663
    %v1665 = vadd.f32 %v1664, 1.0
    %v1666 = vrcp.pop %v1665
    %v1667 = vmul.f32 1.0, %v1666
    %v1668 = vtanh.pop %v1661
    %v1669 = vmul.f32 %v1667, %v1560
    %1671 = vrot.lane.b32.xlu0 %v1668, 32
    %v1672 = vpop.permute.xlu0 %1671
    %v1674 = vmul.f32 %v1667, %v1672
    %1676 = vrot.lane.b32.xlu0 %v1674, 32
    %v1677 = vpop.permute.xlu0 %1676
    %v1679 = vadd.f32 %v1669, %v1677
    %v1680 = vtanh.pop %v1679
    %1682 = vrot.lane.b32.xlu0 %v1680, 32
    %v1683 = vpop.permute.xlu0 %1682
    %v1685 = vmul.f32 %v1667, %v1683
    %1687 = vrot.lane.b32.xlu0 %v1685, 64
    %v1688 = vpop.permute.xlu0 %1687
    %1690 = vst.msk [vmem:[#allocation4 + $0x2] sm:$0x1] %vm1448, %v1688
    %1691 = vrot.lane.b32.xlu0 %v1685, 96
    %v1692 = vpop.permute.xlu0 %1691
    %1694 = vst.msk [vmem:[#allocation4 + $0x3] sm:$0x4] %vm1453, %v1692
    %1695 = vst.msk [vmem:[#allocation4 + $0x9] sm:$0x2] %vm1455, %v1688
    %1696 = vst.msk [vmem:[#allocation4 + $0xa] sm:$0x8] %vm1457, %v1692
    %v1697 = vld [vmem:[#allocation2 + $0xc] sm:$0xf]
    %v1698 = vld [vmem:[%s6] sm:$0xff]
    %v1699 = vld [vmem:[%s6 + $0x8] sm:$0xff]
    %v1700 = vld [vmem:[%s6 + $0x10] sm:$0xff]
    %v1701 = vld [vmem:[%s6 + $0x18] sm:$0xff]
    %v1702 = vld [vmem:[%s6 + $0x20] sm:$0xff]
    %v1703 = vld [vmem:[%s6 + $0x28] sm:$0xff]
    %v1704 = vld [vmem:[%s6 + $0x30] sm:$0xff]
    %v1705 = vld [vmem:[%s6 + $0x38] sm:$0xff]
    %v1706 = vsel %vm68, %v1688, 0
    %1708 = vmatprep.subr.mxu0 %v1699
    %1709 = vmatpush1.msra.mxu0 %v1698
    %1710 = vmatprep.subr.mxu0 %v1701
    %1711 = vmatpush1.msra.mxu0 %v1700
    %1712 = vmatprep.subr.mxu0 %v1703
    %1713 = vmatpush1.msra.mxu0 %v1702
    %1714 = vmatprep.subr.mxu0 %v1705
    %1715 = vmatpush1.msra.mxu0 %v1704
    %1716 = vmatprep.subr.mxu0 0.0
    %1717 = vmatpush1.msra.mxu0 0.0
    %1718 = vmatprep.subr.mxu0 0.0
    %1719 = vmatpush1.msra.mxu0 0.0
    %1720 = vmatprep.subr.mxu0 0.0
    %1721 = vmatpush1.msra.mxu0 0.0
    %1722 = vmatprep.subr.mxu0 0.0
    %1723 = vmatpush1.msra.mxu0 0.0
    %1724 = vmatprep.subr.mxu0 0.0
    %1725 = vmatpush1.msra.mxu0 0.0
    %1726 = vmatprep.subr.mxu0 0.0
    %1727 = vmatpush1.msra.mxu0 0.0
    %1728 = vmatprep.subr.mxu0 0.0
    %1729 = vmatpush1.msra.mxu0 0.0
    %1730 = vmatprep.subr.mxu0 0.0
    %1731 = vmatpush1.msra.mxu0 0.0
    %1732 = vmatprep.subr.mxu0 0.0
    %1733 = vmatpush1.msra.mxu0 0.0
    %1734 = vmatprep.subr.mxu0 0.0
    %1735 = vmatpush1.msra.mxu0 0.0
    %1736 = vmatprep.subr.mxu0 0.0
    %1737 = vmatpush1.msra.mxu0 0.0
    %1738 = vmatprep.subr.mxu0 0.0
    %1739 = vmatpush1.msra.mxu0 0.0
    %1740 = vmatprep.subr.mxu0 0.0
    %1741 = vmatpush1.msra.mxu0 0.0
    %1742 = vmatprep.subr.mxu0 0.0
    %1743 = vmatpush1.msra.mxu0 0.0
    %1744 = vmatprep.subr.mxu0 0.0
    %1745 = vmatpush1.msra.mxu0 0.0
    %1746 = vmatprep.subr.mxu0 0.0
    %1747 = vmatpush1.msra.mxu0 0.0
    %1748 = vmatprep.subr.mxu0 0.0
    %1749 = vmatpush1.msra.mxu0 0.0
    %1750 = vmatprep.subr.mxu0 0.0
    %1751 = vmatpush1.msra.mxu0 0.0
    %1752 = vmatprep.subr.mxu0 0.0
    %1753 = vmatpush1.msra.mxu0 0.0
    %1754 = vmatprep.subr.mxu0 0.0
    %1755 = vmatpush1.msra.mxu0 0.0
    %1756 = vmatprep.subr.mxu0 0.0
    %1757 = vmatpush1.msra.mxu0 0.0
    %1758 = vmatprep.subr.mxu0 0.0
    %1759 = vmatpush1.msra.mxu0 0.0
    %1760 = vmatprep.subr.mxu0 0.0
    %1761 = vmatpush1.msra.mxu0 0.0
    %1762 = vmatprep.subr.mxu0 0.0
    %1763 = vmatpush1.msra.mxu0 0.0
    %1764 = vmatprep.subr.mxu0 0.0
    %1765 = vmatpush1.msra.mxu0 0.0
    %1766 = vmatprep.subr.mxu0 0.0
    %1767 = vmatpush1.msra.mxu0 0.0
    %1768 = vmatprep.subr.mxu0 0.0
    %1769 = vmatpush1.msra.mxu0 0.0
    %1770 = vmatprep.subr.mxu0 0.0
    %1771 = vmatpush1.msra.mxu0 0.0
    %1772 = vmatprep.mubr.f32.mxu0 0.0
    %1773 = vmatmul.mubr.f32.gmra.mrb[0].mxu0 %v1706
    %v1774 = vpop.f32.mrb[0].mxu0
    %v1775 = vadd.f32 0.0, %v1774
    %v1776 = vpop.f32.mrb[0].mxu0
    %v1777 = vadd.f32 0.0, %v1776
    %1778 = vdwg.mxu0
    %v1779 = vsel %vm152, %v1775, %v1777
    %v1780 = vadd.f32 %v1697, %v1779
    %v1781 = vxor.u32 %v1780, 2147483648
    %v1782 = vmul.f32 %v1781, 1.442695
    %v1783 = vpow.pop %v1782
    %v1784 = vadd.f32 %v1783, 1.0
    %v1785 = vrcp.pop %v1784
    %v1786 = vmul.f32 1.0, %v1785
    %v1787 = vtanh.pop %v1780
    %v1788 = vmul.f32 %v1786, %v1679
    %1790 = vrot.lane.b32.xlu0 %v1787, 32
    %v1791 = vpop.permute.xlu0 %1790
    %v1793 = vmul.f32 %v1786, %v1791
    %1795 = vrot.lane.b32.xlu0 %v1793, 32
    %v1796 = vpop.permute.xlu0 %1795
    %v1798 = vadd.f32 %v1788, %v1796
    %v1799 = vtanh.pop %v1798
    %1801 = vrot.lane.b32.xlu0 %v1799, 32
    %v1802 = vpop.permute.xlu0 %1801
    %v1804 = vmul.f32 %v1786, %v1802
    %1806 = vrot.lane.b32.xlu0 %v1804, 64
    %v1807 = vpop.permute.xlu0 %1806
    %1809 = vst.msk [vmem:[#allocation4 + $0x3] sm:$0x1] %vm1448, %v1807
    %1810 = vrot.lane.b32.xlu0 %v1804, 96
    %v1811 = vpop.permute.xlu0 %1810
    %1813 = vst.msk [vmem:[#allocation4 + $0x2] sm:$0x4] %vm1453, %v1811
    %1814 = vst.msk [vmem:[#allocation4 + $0xa] sm:$0x2] %vm1455, %v1807
    %1815 = vst.msk [vmem:[#allocation4 + $0x9] sm:$0x8] %vm1457, %v1811
    %v1816 = vld [vmem:[#allocation2 + $0x10] sm:$0xf]
    %v1817 = vld [vmem:[%s6] sm:$0xff]
    %v1818 = vld [vmem:[%s6 + $0x8] sm:$0xff]
    %v1819 = vld [vmem:[%s6 + $0x10] sm:$0xff]
    %v1820 = vld [vmem:[%s6 + $0x18] sm:$0xff]
    %v1821 = vld [vmem:[%s6 + $0x20] sm:$0xff]
    %v1822 = vld [vmem:[%s6 + $0x28] sm:$0xff]
    %v1823 = vld [vmem:[%s6 + $0x30] sm:$0xff]
    %v1824 = vld [vmem:[%s6 + $0x38] sm:$0xff]
    %v1825 = vsel %vm68, %v1807, 0
    %1827 = vmatprep.subr.mxu0 %v1818
    %1828 = vmatpush1.msra.mxu0 %v1817
    %1829 = vmatprep.subr.mxu0 %v1820
    %1830 = vmatpush1.msra.mxu0 %v1819
    %1831 = vmatprep.subr.mxu0 %v1822
    %1832 = vmatpush1.msra.mxu0 %v1821
    %1833 = vmatprep.subr.mxu0 %v1824
    %1834 = vmatpush1.msra.mxu0 %v1823
    %1835 = vmatprep.subr.mxu0 0.0
    %1836 = vmatpush1.msra.mxu0 0.0
    %1837 = vmatprep.subr.mxu0 0.0
    %1838 = vmatpush1.msra.mxu0 0.0
    %1839 = vmatprep.subr.mxu0 0.0
    %1840 = vmatpush1.msra.mxu0 0.0
    %1841 = vmatprep.subr.mxu0 0.0
    %1842 = vmatpush1.msra.mxu0 0.0
    %1843 = vmatprep.subr.mxu0 0.0
    %1844 = vmatpush1.msra.mxu0 0.0
    %1845 = vmatprep.subr.mxu0 0.0
    %1846 = vmatpush1.msra.mxu0 0.0
    %1847 = vmatprep.subr.mxu0 0.0
    %1848 = vmatpush1.msra.mxu0 0.0
    %1849 = vmatprep.subr.mxu0 0.0
    %1850 = vmatpush1.msra.mxu0 0.0
    %1851 = vmatprep.subr.mxu0 0.0
    %1852 = vmatpush1.msra.mxu0 0.0
    %1853 = vmatprep.subr.mxu0 0.0
    %1854 = vmatpush1.msra.mxu0 0.0
    %1855 = vmatprep.subr.mxu0 0.0
    %1856 = vmatpush1.msra.mxu0 0.0
    %1857 = vmatprep.subr.mxu0 0.0
    %1858 = vmatpush1.msra.mxu0 0.0
    %1859 = vmatprep.subr.mxu0 0.0
    %1860 = vmatpush1.msra.mxu0 0.0
    %1861 = vmatprep.subr.mxu0 0.0
    %1862 = vmatpush1.msra.mxu0 0.0
    %1863 = vmatprep.subr.mxu0 0.0
    %1864 = vmatpush1.msra.mxu0 0.0
    %1865 = vmatprep.subr.mxu0 0.0
    %1866 = vmatpush1.msra.mxu0 0.0
    %1867 = vmatprep.subr.mxu0 0.0
    %1868 = vmatpush1.msra.mxu0 0.0
    %1869 = vmatprep.subr.mxu0 0.0
    %1870 = vmatpush1.msra.mxu0 0.0
    %1871 = vmatprep.subr.mxu0 0.0
    %1872 = vmatpush1.msra.mxu0 0.0
    %1873 = vmatprep.subr.mxu0 0.0
    %1874 = vmatpush1.msra.mxu0 0.0
    %1875 = vmatprep.subr.mxu0 0.0
    %1876 = vmatpush1.msra.mxu0 0.0
    %1877 = vmatprep.subr.mxu0 0.0
    %1878 = vmatpush1.msra.mxu0 0.0
    %1879 = vmatprep.subr.mxu0 0.0
    %1880 = vmatpush1.msra.mxu0 0.0
    %1881 = vmatprep.subr.mxu0 0.0
    %1882 = vmatpush1.msra.mxu0 0.0
    %1883 = vmatprep.subr.mxu0 0.0
    %1884 = vmatpush1.msra.mxu0 0.0
    %1885 = vmatprep.subr.mxu0 0.0
    %1886 = vmatpush1.msra.mxu0 0.0
    %1887 = vmatprep.subr.mxu0 0.0
    %1888 = vmatpush1.msra.mxu0 0.0
    %1889 = vmatprep.subr.mxu0 0.0
    %1890 = vmatpush1.msra.mxu0 0.0
    %1891 = vmatprep.mubr.f32.mxu0 0.0
    %1892 = vmatmul.mubr.f32.gmra.mrb[0].mxu0 %v1825
    %v1893 = vpop.f32.mrb[0].mxu0
    %v1894 = vadd.f32 0.0, %v1893
    %v1895 = vpop.f32.mrb[0].mxu0
    %v1896 = vadd.f32 0.0, %v1895
    %1897 = vdwg.mxu0
    %v1898 = vsel %vm152, %v1894, %v1896
    %v1899 = vadd.f32 %v1816, %v1898
    %v1900 = vxor.u32 %v1899, 2147483648
    %v1901 = vmul.f32 %v1900, 1.442695
    %v1902 = vpow.pop %v1901
    %v1903 = vadd.f32 %v1902, 1.0
    %v1904 = vrcp.pop %v1903
    %v1905 = vmul.f32 1.0, %v1904
    %v1906 = vtanh.pop %v1899
    %v1907 = vmul.f32 %v1905, %v1798
    %1909 = vrot.lane.b32.xlu0 %v1906, 32
    %v1910 = vpop.permute.xlu0 %1909
    %v1912 = vmul.f32 %v1905, %v1910
    %1914 = vrot.lane.b32.xlu0 %v1912, 32
    %v1915 = vpop.permute.xlu0 %1914
    %v1917 = vadd.f32 %v1907, %v1915
    %v1918 = vtanh.pop %v1917
    %1920 = vrot.lane.b32.xlu0 %v1918, 32
    %v1921 = vpop.permute.xlu0 %1920
    %v1923 = vmul.f32 %v1905, %v1921
    %1925 = vrot.lane.b32.xlu0 %v1923, 64
    %v1926 = vpop.permute.xlu0 %1925
    %1928 = vst.msk [vmem:[#allocation4 + $0x4] sm:$0x1] %vm1448, %v1926
    %1929 = vrot.lane.b32.xlu0 %v1923, 96
    %v1930 = vpop.permute.xlu0 %1929
    %1932 = vst.msk [vmem:[#allocation4 + $0x1] sm:$0x4] %vm1453, %v1930
    %1933 = vst.msk [vmem:[#allocation4 + $0xb] sm:$0x2] %vm1455, %v1926
    %1934 = vst.msk [vmem:[#allocation4 + $0x8] sm:$0x8] %vm1457, %v1930
    %v1935 = vld [vmem:[#allocation2 + $0x14] sm:$0xf]
    %v1936 = vld [vmem:[%s6] sm:$0xff]
    %v1937 = vld [vmem:[%s6 + $0x8] sm:$0xff]
    %v1938 = vld [vmem:[%s6 + $0x10] sm:$0xff]
    %v1939 = vld [vmem:[%s6 + $0x18] sm:$0xff]
    %v1940 = vld [vmem:[%s6 + $0x20] sm:$0xff]
    %v1941 = vld [vmem:[%s6 + $0x28] sm:$0xff]
    %v1942 = vld [vmem:[%s6 + $0x30] sm:$0xff]
    %v1943 = vld [vmem:[%s6 + $0x38] sm:$0xff]
    %v1944 = vsel %vm68, %v1926, 0
    %1946 = vmatprep.subr.mxu0 %v1937
    %1947 = vmatpush1.msra.mxu0 %v1936
    %1948 = vmatprep.subr.mxu0 %v1939
    %1949 = vmatpush1.msra.mxu0 %v1938
    %1950 = vmatprep.subr.mxu0 %v1941
    %1951 = vmatpush1.msra.mxu0 %v1940
    %1952 = vmatprep.subr.mxu0 %v1943
    %1953 = vmatpush1.msra.mxu0 %v1942
    %1954 = vmatprep.subr.mxu0 0.0
    %1955 = vmatpush1.msra.mxu0 0.0
    %1956 = vmatprep.subr.mxu0 0.0
    %1957 = vmatpush1.msra.mxu0 0.0
    %1958 = vmatprep.subr.mxu0 0.0
    %1959 = vmatpush1.msra.mxu0 0.0
    %1960 = vmatprep.subr.mxu0 0.0
    %1961 = vmatpush1.msra.mxu0 0.0
    %1962 = vmatprep.subr.mxu0 0.0
    %1963 = vmatpush1.msra.mxu0 0.0
    %1964 = vmatprep.subr.mxu0 0.0
    %1965 = vmatpush1.msra.mxu0 0.0
    %1966 = vmatprep.subr.mxu0 0.0
    %1967 = vmatpush1.msra.mxu0 0.0
    %1968 = vmatprep.subr.mxu0 0.0
    %1969 = vmatpush1.msra.mxu0 0.0
    %1970 = vmatprep.subr.mxu0 0.0
    %1971 = vmatpush1.msra.mxu0 0.0
    %1972 = vmatprep.subr.mxu0 0.0
    %1973 = vmatpush1.msra.mxu0 0.0
    %1974 = vmatprep.subr.mxu0 0.0
    %1975 = vmatpush1.msra.mxu0 0.0
    %1976 = vmatprep.subr.mxu0 0.0
    %1977 = vmatpush1.msra.mxu0 0.0
    %1978 = vmatprep.subr.mxu0 0.0
    %1979 = vmatpush1.msra.mxu0 0.0
    %1980 = vmatprep.subr.mxu0 0.0
    %1981 = vmatpush1.msra.mxu0 0.0
    %1982 = vmatprep.subr.mxu0 0.0
    %1983 = vmatpush1.msra.mxu0 0.0
    %1984 = vmatprep.subr.mxu0 0.0
    %1985 = vmatpush1.msra.mxu0 0.0
    %1986 = vmatprep.subr.mxu0 0.0
    %1987 = vmatpush1.msra.mxu0 0.0
    %1988 = vmatprep.subr.mxu0 0.0
    %1989 = vmatpush1.msra.mxu0 0.0
    %1990 = vmatprep.subr.mxu0 0.0
    %1991 = vmatpush1.msra.mxu0 0.0
    %1992 = vmatprep.subr.mxu0 0.0
    %1993 = vmatpush1.msra.mxu0 0.0
    %1994 = vmatprep.subr.mxu0 0.0
    %1995 = vmatpush1.msra.mxu0 0.0
    %1996 = vmatprep.subr.mxu0 0.0
    %1997 = vmatpush1.msra.mxu0 0.0
    %1998 = vmatprep.subr.mxu0 0.0
    %1999 = vmatpush1.msra.mxu0 0.0
    %2000 = vmatprep.subr.mxu0 0.0
    %2001 = vmatpush1.msra.mxu0 0.0
    %2002 = vmatprep.subr.mxu0 0.0
    %2003 = vmatpush1.msra.mxu0 0.0
    %2004 = vmatprep.subr.mxu0 0.0
    %2005 = vmatpush1.msra.mxu0 0.0
    %2006 = vmatprep.subr.mxu0 0.0
    %2007 = vmatpush1.msra.mxu0 0.0
    %2008 = vmatprep.subr.mxu0 0.0
    %2009 = vmatpush1.msra.mxu0 0.0
    %2010 = vmatprep.mubr.f32.mxu0 0.0
    %2011 = vmatmul.mubr.f32.gmra.mrb[0].mxu0 %v1944
    %v2012 = vpop.f32.mrb[0].mxu0
    %v2013 = vadd.f32 0.0, %v2012
    %v2014 = vpop.f32.mrb[0].mxu0
    %v2015 = vadd.f32 0.0, %v2014
    %2016 = vdwg.mxu0
    %v2017 = vsel %vm152, %v2013, %v2015
    %v2018 = vadd.f32 %v1935, %v2017
    %v2019 = vxor.u32 %v2018, 2147483648
    %v2020 = vmul.f32 %v2019, 1.442695
    %v2021 = vpow.pop %v2020
    %v2022 = vadd.f32 %v2021, 1.0
    %v2023 = vrcp.pop %v2022
    %v2024 = vmul.f32 1.0, %v2023
    %v2025 = vtanh.pop %v2018
    %v2026 = vmul.f32 %v2024, %v1917
    %2028 = vrot.lane.b32.xlu0 %v2025, 32
    %v2029 = vpop.permute.xlu0 %2028
    %v2031 = vmul.f32 %v2024, %v2029
    %2033 = vrot.lane.b32.xlu0 %v2031, 32
    %v2034 = vpop.permute.xlu0 %2033
    %v2036 = vadd.f32 %v2026, %v2034
    %v2037 = vtanh.pop %v2036
    %2039 = vrot.lane.b32.xlu0 %v2037, 32
    %v2040 = vpop.permute.xlu0 %2039
    %v2042 = vmul.f32 %v2024, %v2040
    %2044 = vrot.lane.b32.xlu0 %v2042, 64
    %v2045 = vpop.permute.xlu0 %2044
    %2047 = vst.msk [vmem:[#allocation4 + $0x5] sm:$0x1] %vm1448, %v2045
    %2048 = vrot.lane.b32.xlu0 %v2042, 96
    %v2049 = vpop.permute.xlu0 %2048
    %2051 = vst.msk [vmem:[#allocation4] sm:$0x4] %vm1453, %v2049
    %2052 = vst.msk [vmem:[#allocation4 + $0xc] sm:$0x2] %vm1455, %v2045
    %2053 = vst.msk [vmem:[#allocation4 + $0x7] sm:$0x8] %vm1457, %v2049
    %v2054 = vld [vmem:[#allocation2 + $0x18] sm:$0xf]
    %v2055 = vld [vmem:[%s6] sm:$0xff]
    %v2056 = vld [vmem:[%s6 + $0x8] sm:$0xff]
    %v2057 = vld [vmem:[%s6 + $0x10] sm:$0xff]
    %v2058 = vld [vmem:[%s6 + $0x18] sm:$0xff]
    %v2059 = vld [vmem:[%s6 + $0x20] sm:$0xff]
    %v2060 = vld [vmem:[%s6 + $0x28] sm:$0xff]
    %v2061 = vld [vmem:[%s6 + $0x30] sm:$0xff]
    %v2062 = vld [vmem:[%s6 + $0x38] sm:$0xff]
    %v2063 = vsel %vm68, %v2045, 0
    %2065 = vmatprep.subr.mxu0 %v2056
    %2066 = vmatpush1.msra.mxu0 %v2055
    %2067 = vmatprep.subr.mxu0 %v2058
    %2068 = vmatpush1.msra.mxu0 %v2057
    %2069 = vmatprep.subr.mxu0 %v2060
    %2070 = vmatpush1.msra.mxu0 %v2059
    %2071 = vmatprep.subr.mxu0 %v2062
    %2072 = vmatpush1.msra.mxu0 %v2061
    %2073 = vmatprep.subr.mxu0 0.0
    %2074 = vmatpush1.msra.mxu0 0.0
    %2075 = vmatprep.subr.mxu0 0.0
    %2076 = vmatpush1.msra.mxu0 0.0
    %2077 = vmatprep.subr.mxu0 0.0
    %2078 = vmatpush1.msra.mxu0 0.0
    %2079 = vmatprep.subr.mxu0 0.0
    %2080 = vmatpush1.msra.mxu0 0.0
    %2081 = vmatprep.subr.mxu0 0.0
    %2082 = vmatpush1.msra.mxu0 0.0
    %2083 = vmatprep.subr.mxu0 0.0
    %2084 = vmatpush1.msra.mxu0 0.0
    %2085 = vmatprep.subr.mxu0 0.0
    %2086 = vmatpush1.msra.mxu0 0.0
    %2087 = vmatprep.subr.mxu0 0.0
    %2088 = vmatpush1.msra.mxu0 0.0
    %2089 = vmatprep.subr.mxu0 0.0
    %2090 = vmatpush1.msra.mxu0 0.0
    %2091 = vmatprep.subr.mxu0 0.0
    %2092 = vmatpush1.msra.mxu0 0.0
    %2093 = vmatprep.subr.mxu0 0.0
    %2094 = vmatpush1.msra.mxu0 0.0
    %2095 = vmatprep.subr.mxu0 0.0
    %2096 = vmatpush1.msra.mxu0 0.0
    %2097 = vmatprep.subr.mxu0 0.0
    %2098 = vmatpush1.msra.mxu0 0.0
    %2099 = vmatprep.subr.mxu0 0.0
    %2100 = vmatpush1.msra.mxu0 0.0
    %2101 = vmatprep.subr.mxu0 0.0
    %2102 = vmatpush1.msra.mxu0 0.0
    %2103 = vmatprep.subr.mxu0 0.0
    %2104 = vmatpush1.msra.mxu0 0.0
    %2105 = vmatprep.subr.mxu0 0.0
    %2106 = vmatpush1.msra.mxu0 0.0
    %2107 = vmatprep.subr.mxu0 0.0
    %2108 = vmatpush1.msra.mxu0 0.0
    %2109 = vmatprep.subr.mxu0 0.0
    %2110 = vmatpush1.msra.mxu0 0.0
    %2111 = vmatprep.subr.mxu0 0.0
    %2112 = vmatpush1.msra.mxu0 0.0
    %2113 = vmatprep.subr.mxu0 0.0
    %2114 = vmatpush1.msra.mxu0 0.0
    %2115 = vmatprep.subr.mxu0 0.0
    %2116 = vmatpush1.msra.mxu0 0.0
    %2117 = vmatprep.subr.mxu0 0.0
    %2118 = vmatpush1.msra.mxu0 0.0
    %2119 = vmatprep.subr.mxu0 0.0
    %2120 = vmatpush1.msra.mxu0 0.0
    %2121 = vmatprep.subr.mxu0 0.0
    %2122 = vmatpush1.msra.mxu0 0.0
    %2123 = vmatprep.subr.mxu0 0.0
    %2124 = vmatpush1.msra.mxu0 0.0
    %2125 = vmatprep.subr.mxu0 0.0
    %2126 = vmatpush1.msra.mxu0 0.0
    %2127 = vmatprep.subr.mxu0 0.0
    %2128 = vmatpush1.msra.mxu0 0.0
    %2129 = vmatprep.mubr.f32.mxu0 0.0
    %2130 = vmatmul.mubr.f32.gmra.mrb[0].mxu0 %v2063
    %v2131 = vpop.f32.mrb[0].mxu0
    %v2132 = vadd.f32 0.0, %v2131
    %v2133 = vpop.f32.mrb[0].mxu0
    %v2134 = vadd.f32 0.0, %v2133
    %2135 = vdwg.mxu0
    %v2136 = vsel %vm152, %v2132, %v2134
    %v2137 = vadd.f32 %v2054, %v2136
    %v2138 = vxor.u32 %v2137, 2147483648
    %v2139 = vmul.f32 %v2138, 1.442695
    %v2140 = vpow.pop %v2139
    %v2141 = vadd.f32 %v2140, 1.0
    %v2142 = vrcp.pop %v2141
    %v2143 = vmul.f32 1.0, %v2142
    %v2144 = vtanh.pop %v2137
    %v2145 = vmul.f32 %v2143, %v2036
    %2147 = vrot.lane.b32.xlu0 %v2144, 32
    %v2148 = vpop.permute.xlu0 %2147
    %v2150 = vmul.f32 %v2143, %v2148
    %2152 = vrot.lane.b32.xlu0 %v2150, 32
    %v2153 = vpop.permute.xlu0 %2152
    %v2155 = vadd.f32 %v2145, %v2153
    %v2156 = vtanh.pop %v2155
    %2158 = vrot.lane.b32.xlu0 %v2156, 32
    %v2159 = vpop.permute.xlu0 %2158
    %v2161 = vmul.f32 %v2143, %v2159
    %2163 = vrot.lane.b32.xlu0 %v2161, 64
    %v2164 = vpop.permute.xlu0 %2163
    %2166 = vst.msk [vmem:[#allocation4 + $0x6] sm:$0x1] %vm1448, %v2164
    %2167 = vrot.lane.b32.xlu0 %v2161, 96
    %v2168 = vpop.permute.xlu0 %2167
    %2170 = vst.msk [vmem:[#allocation4 - $0x1] sm:$0x4] %vm1453, %v2168
    %2171 = vst.msk [vmem:[#allocation4 + $0xd] sm:$0x2] %vm1455, %v2164
    %2172 = vst.msk [vmem:[#allocation4 + $0x6] sm:$0x8] %vm1457, %v2168
    %v2173 = vld [vmem:[#allocation2 + $0x1c] sm:$0xf]
    %v2174 = vld [vmem:[%s6] sm:$0xff]
    %v2175 = vld [vmem:[%s6 + $0x8] sm:$0xff]
    %v2176 = vld [vmem:[%s6 + $0x10] sm:$0xff]
    %v2177 = vld [vmem:[%s6 + $0x18] sm:$0xff]
    %v2178 = vld [vmem:[%s6 + $0x20] sm:$0xff]
    %v2179 = vld [vmem:[%s6 + $0x28] sm:$0xff]
    %v2180 = vld [vmem:[%s6 + $0x30] sm:$0xff]
    %v2181 = vld [vmem:[%s6 + $0x38] sm:$0xff]
    %v2182 = vsel %vm68, %v2164, 0
    %2184 = vmatprep.subr.mxu0 %v2175
    %2185 = vmatpush1.msra.mxu0 %v2174
    %2186 = vmatprep.subr.mxu0 %v2177
    %2187 = vmatpush1.msra.mxu0 %v2176
    %2188 = vmatprep.subr.mxu0 %v2179
    %2189 = vmatpush1.msra.mxu0 %v2178
    %2190 = vmatprep.subr.mxu0 %v2181
    %2191 = vmatpush1.msra.mxu0 %v2180
    %2192 = vmatprep.subr.mxu0 0.0
    %2193 = vmatpush1.msra.mxu0 0.0
    %2194 = vmatprep.subr.mxu0 0.0
    %2195 = vmatpush1.msra.mxu0 0.0
    %2196 = vmatprep.subr.mxu0 0.0
    %2197 = vmatpush1.msra.mxu0 0.0
    %2198 = vmatprep.subr.mxu0 0.0
    %2199 = vmatpush1.msra.mxu0 0.0
    %2200 = vmatprep.subr.mxu0 0.0
    %2201 = vmatpush1.msra.mxu0 0.0
    %2202 = vmatprep.subr.mxu0 0.0
    %2203 = vmatpush1.msra.mxu0 0.0
    %2204 = vmatprep.subr.mxu0 0.0
    %2205 = vmatpush1.msra.mxu0 0.0
    %2206 = vmatprep.subr.mxu0 0.0
    %2207 = vmatpush1.msra.mxu0 0.0
    %2208 = vmatprep.subr.mxu0 0.0
    %2209 = vmatpush1.msra.mxu0 0.0
    %2210 = vmatprep.subr.mxu0 0.0
    %2211 = vmatpush1.msra.mxu0 0.0
    %2212 = vmatprep.subr.mxu0 0.0
    %2213 = vmatpush1.msra.mxu0 0.0
    %2214 = vmatprep.subr.mxu0 0.0
    %2215 = vmatpush1.msra.mxu0 0.0
    %2216 = vmatprep.subr.mxu0 0.0
    %2217 = vmatpush1.msra.mxu0 0.0
    %2218 = vmatprep.subr.mxu0 0.0
    %2219 = vmatpush1.msra.mxu0 0.0
    %2220 = vmatprep.subr.mxu0 0.0
    %2221 = vmatpush1.msra.mxu0 0.0
    %2222 = vmatprep.subr.mxu0 0.0
    %2223 = vmatpush1.msra.mxu0 0.0
    %2224 = vmatprep.subr.mxu0 0.0
    %2225 = vmatpush1.msra.mxu0 0.0
    %2226 = vmatprep.subr.mxu0 0.0
    %2227 = vmatpush1.msra.mxu0 0.0
    %2228 = vmatprep.subr.mxu0 0.0
    %2229 = vmatpush1.msra.mxu0 0.0
    %2230 = vmatprep.subr.mxu0 0.0
    %2231 = vmatpush1.msra.mxu0 0.0
    %2232 = vmatprep.subr.mxu0 0.0
    %2233 = vmatpush1.msra.mxu0 0.0
    %2234 = vmatprep.subr.mxu0 0.0
    %2235 = vmatpush1.msra.mxu0 0.0
    %2236 = vmatprep.subr.mxu0 0.0
    %2237 = vmatpush1.msra.mxu0 0.0
    %2238 = vmatprep.subr.mxu0 0.0
    %2239 = vmatpush1.msra.mxu0 0.0
    %2240 = vmatprep.subr.mxu0 0.0
    %2241 = vmatpush1.msra.mxu0 0.0
    %2242 = vmatprep.subr.mxu0 0.0
    %2243 = vmatpush1.msra.mxu0 0.0
    %2244 = vmatprep.subr.mxu0 0.0
    %2245 = vmatpush1.msra.mxu0 0.0
    %2246 = vmatprep.subr.mxu0 0.0
    %2247 = vmatpush1.msra.mxu0 0.0
    %2248 = vmatprep.mubr.f32.mxu0 0.0
    %2249 = vmatmul.mubr.f32.gmra.mrb[0].mxu0 %v2182
    %v2250 = vpop.f32.mrb[0].mxu0
    %v2251 = vadd.f32 0.0, %v2250
    %v2252 = vpop.f32.mrb[0].mxu0
    %v2253 = vadd.f32 0.0, %v2252
    %2254 = vdwg.mxu0
    %v2255 = vsel %vm152, %v2251, %v2253
    %v2256 = vadd.f32 %v2173, %v2255
    %v2257 = vxor.u32 %v2256, 2147483648
    %v2258 = vmul.f32 %v2257, 1.442695
    %v2259 = vpow.pop %v2258
    %v2260 = vadd.f32 %v2259, 1.0
    %v2261 = vrcp.pop %v2260
    %v2262 = vmul.f32 1.0, %v2261
    %v2263 = vtanh.pop %v2256
    %v2264 = vmul.f32 %v2262, %v2155
    %2266 = vrot.lane.b32.xlu0 %v2263, 32
    %v2267 = vpop.permute.xlu0 %2266
    %v2269 = vmul.f32 %v2262, %v2267
    %2271 = vrot.lane.b32.xlu0 %v2269, 32
    %v2272 = vpop.permute.xlu0 %2271
    %v2274 = vadd.f32 %v2264, %v2272
    %v2275 = vtanh.pop %v2274
    %2277 = vrot.lane.b32.xlu0 %v2275, 32
    %v2278 = vpop.permute.xlu0 %2277
    %v2280 = vmul.f32 %v2262, %v2278
    %2282 = vrot.lane.b32.xlu0 %v2280, 64
    %v2283 = vpop.permute.xlu0 %2282
    %2285 = vst.msk [vmem:[#allocation4 + $0x7] sm:$0x1] %vm1448, %v2283
    %2286 = vrot.lane.b32.xlu0 %v2280, 96
    %v2287 = vpop.permute.xlu0 %2286
    %2289 = vst.msk [vmem:[#allocation4 - $0x2] sm:$0x4] %vm1453, %v2287
    %2290 = vst.msk [vmem:[#allocation4 + $0xe] sm:$0x2] %vm1455, %v2283
    %2291 = vst.msk [vmem:[#allocation4 + $0x5] sm:$0x8] %vm1457, %v2287
    %v2292 = vld [vmem:[#allocation4] sm:$0xff]
    %v2293 = vld [vmem:[#allocation4 + $0x8] sm:$0xff]
    %v2294 = vsel %vm1238, %v2292, 0.0
    %2295 = vadd.xlane.f32.xlu0 %v2294
    %v2296 = vpop.xlane.xlu0 %2295
    %v2297 = vsel %vm1238, %v2293, 0.0
    %2298 = vadd.xlane.f32.xlu0 %v2297
    %v2299 = vpop.xlane.xlu0 %2298
    %v2300 = vrcp.pop 64.0
    %v2301 = vmul.f32 %v2296, %v2300
    %v2302 = vmul.f32 %v2299, %v2300
    %v2303 = vsub.f32 %v2292, %v2301
    %v2304 = vsub.f32 %v2293, %v2302
    %v2305 = vmul.f32 %v2303, %v2303
    %v2306 = vmul.f32 %v2304, %v2304
    %v2307 = vsel %vm1238, %v2305, 0.0
    %2308 = vadd.xlane.f32.xlu0 %v2307
    %v2309 = vpop.xlane.xlu0 %2308
    %v2310 = vsel %vm1238, %v2306, 0.0
    %2311 = vadd.xlane.f32.xlu0 %v2310
    %v2312 = vpop.xlane.xlu0 %2311
    %v2313 = vmul.f32 %v2309, %v2300
    %v2314 = vmul.f32 %v2312, %v2300
    %v2315 = vadd.f32 %v2313, 1e-05
    %v2316 = vadd.f32 %v2314, 1e-05
    %v2317 = vrsqrt.pop %v2315
    %v2318 = vrsqrt.pop %v2316
    %v2319 = vmul.f32 %v2303, %v2317
    %v2320 = vmul.f32 %v2304, %v2318
    %v2321 = vld [vmem:[%s8] sm:$0x1]
    %v2323 = vlaneseq
    %v2324 = vshrl.u32 %v2323, 7
    %v2325 = vsub.s32 0, %v2324
    %v2326 = vrot.slane %v2321, %v2325
    %v2328 = vmul.f32 %v2319, %v2326
    %v2329 = vmul.f32 %v2320, %v2326
    %v2330 = vld [vmem:[%s9] sm:$0x1]
    %v2332 = vlaneseq
    %v2333 = vshrl.u32 %v2332, 7
    %v2334 = vsub.s32 0, %v2333
    %v2335 = vrot.slane %v2330, %v2334
    %v2337 = vadd.f32 %v2328, %v2335
    %v2338 = vadd.f32 %v2329, %v2335
    %v2339 = vld [vmem:[%s10] sm:$0xff]
    %v2340 = vld [vmem:[%s10 + $0x8] sm:$0xff]
    %v2341 = vld [vmem:[%s10 + $0x10] sm:$0xff]
    %v2342 = vld [vmem:[%s10 + $0x18] sm:$0xff]
    %v2343 = vld [vmem:[%s10 + $0x20] sm:$0xff]
    %v2344 = vld [vmem:[%s10 + $0x28] sm:$0xff]
    %v2345 = vld [vmem:[%s10 + $0x30] sm:$0xff]
    %v2346 = vld [vmem:[%s10 + $0x38] sm:$0xff]
    %v2347 = vld [vmem:[%s11] sm:$0x1]
    %v2349 = vlaneseq
    %v2350 = vshrl.u32 %v2349, 7
    %v2351 = vsub.s32 0, %v2350
    %v2352 = vrot.slane %v2347, %v2351
    %v2355 = vsel %vm1238, %v2337, 0
    %v2358 = vsel %vm1238, %v2338, 0
    %2360 = vmatprep.subr.mxu0 0.0
    %2361 = vmatpush1.msra.mxu0 %v2339
    %2362 = vmatprep.subr.mxu0 0.0
    %2363 = vmatpush1.msra.mxu0 %v2340
    %2364 = vmatprep.subr.mxu0 0.0
    %2365 = vmatpush1.msra.mxu0 %v2341
    %2366 = vmatprep.subr.mxu0 0.0
    %2367 = vmatpush1.msra.mxu0 %v2342
    %2368 = vmatprep.subr.mxu0 0.0
    %2369 = vmatpush1.msra.mxu0 %v2343
    %2370 = vmatprep.subr.mxu0 0.0
    %2371 = vmatpush1.msra.mxu0 %v2344
    %2372 = vmatprep.subr.mxu0 0.0
    %2373 = vmatpush1.msra.mxu0 %v2345
    %2374 = vmatprep.subr.mxu0 0.0
    %2375 = vmatpush1.msra.mxu0 %v2346
    %2376 = vmatprep.subr.mxu0 0.0
    %2377 = vmatpush1.msra.mxu0 0.0
    %2378 = vmatprep.subr.mxu0 0.0
    %2379 = vmatpush1.msra.mxu0 0.0
    %2380 = vmatprep.subr.mxu0 0.0
    %2381 = vmatpush1.msra.mxu0 0.0
    %2382 = vmatprep.subr.mxu0 0.0
    %2383 = vmatpush1.msra.mxu0 0.0
    %2384 = vmatprep.subr.mxu0 0.0
    %2385 = vmatpush1.msra.mxu0 0.0
    %2386 = vmatprep.subr.mxu0 0.0
    %2387 = vmatpush1.msra.mxu0 0.0
    %2388 = vmatprep.subr.mxu0 0.0
    %2389 = vmatpush1.msra.mxu0 0.0
    %2390 = vmatprep.subr.mxu0 0.0
    %2391 = vmatpush1.msra.mxu0 0.0
    %2392 = vmatprep.subr.mxu0 0.0
    %2393 = vmatpush1.msra.mxu0 0.0
    %2394 = vmatprep.subr.mxu0 0.0
    %2395 = vmatpush1.msra.mxu0 0.0
    %2396 = vmatprep.subr.mxu0 0.0
    %2397 = vmatpush1.msra.mxu0 0.0
    %2398 = vmatprep.subr.mxu0 0.0
    %2399 = vmatpush1.msra.mxu0 0.0
    %2400 = vmatprep.subr.mxu0 0.0
    %2401 = vmatpush1.msra.mxu0 0.0
    %2402 = vmatprep.subr.mxu0 0.0
    %2403 = vmatpush1.msra.mxu0 0.0
    %2404 = vmatprep.subr.mxu0 0.0
    %2405 = vmatpush1.msra.mxu0 0.0
    %2406 = vmatprep.subr.mxu0 0.0
    %2407 = vmatpush1.msra.mxu0 0.0
    %2408 = vmatprep.subr.mxu0 0.0
    %2409 = vmatpush1.msra.mxu0 0.0
    %2410 = vmatprep.subr.mxu0 0.0
    %2411 = vmatpush1.msra.mxu0 0.0
    %2412 = vmatprep.subr.mxu0 0.0
    %2413 = vmatpush1.msra.mxu0 0.0
    %2414 = vmatprep.subr.mxu0 0.0
    %2415 = vmatpush1.msra.mxu0 0.0
    %2416 = vmatprep.subr.mxu0 0.0
    %2417 = vmatpush1.msra.mxu0 0.0
    %2418 = vmatprep.subr.mxu0 0.0
    %2419 = vmatpush1.msra.mxu0 0.0
    %2420 = vmatprep.subr.mxu0 0.0
    %2421 = vmatpush1.msra.mxu0 0.0
    %2422 = vmatprep.subr.mxu0 0.0
    %2423 = vmatpush1.msra.mxu0 0.0
    %2424 = vmatprep.mubr.f32.mxu0 0.0
    %2425 = vmatmul.mubr.f32.gmra.mrb[0].mxu0 %v2355
    %v2426 = vpop.f32.mrb[0].mxu0
    %v2427 = vadd.f32 %v2352, %v2426
    %v2428 = vpop.f32.mrb[0].mxu0
    %2429 = vmatprep.mubr.f32.mxu0 0.0
    %2430 = vmatmul.mubr.f32.gmra.mrb[0].mxu0 %v2358
    %v2431 = vpop.f32.mrb[0].mxu0
    %v2432 = vadd.f32 %v2352, %v2431
    %v2433 = vpop.f32.mrb[0].mxu0
    %2434 = vdwg.mxu0
    %v2435 = vmul.f32 %v2427, 0.5
    %v2436 = vmul.f32 %v2432, 0.5
    %v2437 = vmul.f32 %v2427, 0.70710677
    %v2438 = vmul.f32 %v2432, 0.70710677
    %v2439 = verf.f32.pop %v2437
    %v2440 = verf.f32.pop %v2438
    %v2441 = vadd.f32 %v2439, 1.0
    %v2442 = vadd.f32 %v2440, 1.0
    %v2443 = vmul.f32 %v2435, %v2441
    %v2444 = vmul.f32 %v2436, %v2442
    %v2445 = vld [vmem:[%s12] sm:$0xff]
    %v2446 = vld [vmem:[%s12 + $0x8] sm:$0xff]
    %v2447 = vld [vmem:[%s12 + $0x10] sm:$0xff]
    %v2448 = vld [vmem:[%s12 + $0x18] sm:$0xff]
    %v2449 = vld [vmem:[%s13] sm:$0x1]
    %v2451 = vlaneseq
    %v2452 = vshrl.u32 %v2451, 7
    %v2453 = vsub.s32 0, %v2452
    %v2454 = vrot.slane %v2449, %v2453
    %v2457 = vsel %vm68, %v2443, 0
    %v2460 = vsel %vm68, %v2444, 0
    %2462 = vmatprep.subr.mxu0 0.0
    %2463 = vmatpush1.msra.mxu0 %v2445
    %2464 = vmatprep.subr.mxu0 0.0
    %2465 = vmatpush1.msra.mxu0 %v2446
    %2466 = vmatprep.subr.mxu0 0.0
    %2467 = vmatpush1.msra.mxu0 %v2447
    %2468 = vmatprep.subr.mxu0 0.0
    %2469 = vmatpush1.msra.mxu0 %v2448
    %2470 = vmatprep.subr.mxu0 0.0
    %2471 = vmatpush1.msra.mxu0 0.0
    %2472 = vmatprep.subr.mxu0 0.0
    %2473 = vmatpush1.msra.mxu0 0.0
    %2474 = vmatprep.subr.mxu0 0.0
    %2475 = vmatpush1.msra.mxu0 0.0
    %2476 = vmatprep.subr.mxu0 0.0
    %2477 = vmatpush1.msra.mxu0 0.0
    %2478 = vmatprep.subr.mxu0 0.0
    %2479 = vmatpush1.msra.mxu0 0.0
    %2480 = vmatprep.subr.mxu0 0.0
    %2481 = vmatpush1.msra.mxu0 0.0
    %2482 = vmatprep.subr.mxu0 0.0
    %2483 = vmatpush1.msra.mxu0 0.0
    %2484 = vmatprep.subr.mxu0 0.0
    %2485 = vmatpush1.msra.mxu0 0.0
    %2486 = vmatprep.subr.mxu0 0.0
    %2487 = vmatpush1.msra.mxu0 0.0
    %2488 = vmatprep.subr.mxu0 0.0
    %2489 = vmatpush1.msra.mxu0 0.0
    %2490 = vmatprep.subr.mxu0 0.0
    %2491 = vmatpush1.msra.mxu0 0.0
    %2492 = vmatprep.subr.mxu0 0.0
    %2493 = vmatpush1.msra.mxu0 0.0
    %2494 = vmatprep.subr.mxu0 0.0
    %2495 = vmatpush1.msra.mxu0 0.0
    %2496 = vmatprep.subr.mxu0 0.0
    %2497 = vmatpush1.msra.mxu0 0.0
    %2498 = vmatprep.subr.mxu0 0.0
    %2499 = vmatpush1.msra.mxu0 0.0
    %2500 = vmatprep.subr.mxu0 0.0
    %2501 = vmatpush1.msra.mxu0 0.0
    %2502 = vmatprep.subr.mxu0 0.0
    %2503 = vmatpush1.msra.mxu0 0.0
    %2504 = vmatprep.subr.mxu0 0.0
    %2505 = vmatpush1.msra.mxu0 0.0
    %2506 = vmatprep.subr.mxu0 0.0
    %2507 = vmatpush1.msra.mxu0 0.0
    %2508 = vmatprep.subr.mxu0 0.0
    %2509 = vmatpush1.msra.mxu0 0.0
    %2510 = vmatprep.subr.mxu0 0.0
    %2511 = vmatpush1.msra.mxu0 0.0
    %2512 = vmatprep.subr.mxu0 0.0
    %2513 = vmatpush1.msra.mxu0 0.0
    %2514 = vmatprep.subr.mxu0 0.0
    %2515 = vmatpush1.msra.mxu0 0.0
    %2516 = vmatprep.subr.mxu0 0.0
    %2517 = vmatpush1.msra.mxu0 0.0
    %2518 = vmatprep.subr.mxu0 0.0
    %2519 = vmatpush1.msra.mxu0 0.0
    %2520 = vmatprep.subr.mxu0 0.0
    %2521 = vmatpush1.msra.mxu0 0.0
    %2522 = vmatprep.subr.mxu0 0.0
    %2523 = vmatpush1.msra.mxu0 0.0
    %2524 = vmatprep.subr.mxu0 0.0
    %2525 = vmatpush1.msra.mxu0 0.0
    %2526 = vmatprep.mubr.f32.mxu0 0.0
    %2527 = vmatmul.mubr.f32.gmra.mrb[0].mxu0 %v2457
    %v2528 = vpop.f32.mrb[0].mxu0
    %v2529 = vadd.f32 %v2454, %v2528
    %v2530 = vpop.f32.mrb[0].mxu0
    %2531 = vmatprep.mubr.f32.mxu0 0.0
    %2532 = vmatmul.mubr.f32.gmra.mrb[0].mxu0 %v2460
    %v2533 = vpop.f32.mrb[0].mxu0
    %v2534 = vadd.f32 %v2454, %v2533
    %v2535 = vpop.f32.mrb[0].mxu0
    %2536 = vdwg.mxu0
    %2537 = vst.msk [vmem:[#allocation5] sm:$0xff] %vm68, %v2529
    %2538 = vst.msk [vmem:[#allocation5 + $0x8] sm:$0xff] %vm68, %v2534
    // Predicated region
    $region58: #{titano_forward.1} parent=1 // pred_check
      _
    $region59: #{titano_forward.1} parent=1 // pred_check_branch
      %2540 = sbr.rel (0) target = $region61
    $region60: #{titano_forward.1} parent=1 // pred_region
      %s2542 = ssub.s32 256, 256
      %2543 = vsyncadd [#allocation6], %s2542
      %s2544 = sshll.u32 [#allocation5], 4
      %s2545 = int_to_ptr.vmem [resolvable:$true] %s2544
      %2550 = dma.vmem_to_hbm [thread:$0]  %s2545, 256, %s14, [#allocation6], 128, 128, 8
    $region61: #{titano_forward.1} parent=1 // pred_fallthru
      _
    // Predicated region
    $region62: #{titano_forward.1} parent=1 // pred_check
      _
    $region63: #{titano_forward.1} parent=1 // pred_check_branch
      %2552 = sbr.rel (0) target = $region65
    $region64: #{titano_forward.1} parent=1 // pred_region
      %2553 = dma.done [#allocation6], 256
    $region65: #{titano_forward.1} parent=1 // pred_fallthru
      _
    %2554 = vsyncpa [#allocation6], 1

</llo_original>
